<compile_context>
chip_gen: v6e
topology: v6e:2x2x1
jax: 0.10.0
libtpu: 0.0.40
codegen_flags: <defaults>
</compile_context>

<pallas_src>
import functools

import jax
import jax.numpy as jnp
from jax.experimental import pallas as pl
from jax.experimental.pallas import tpu as pltpu


def _mv_lstm_kernel(xp_ref, whh_ref, h0_ref, c0_ref, wlin_ref, blin_ref,
                    out_ref, hs_scr, *, seq_len, hidden):
    """Single-invocation LSTM recurrence + fused final Linear.

    xp_ref:   (4, T, B, H)  precomputed x@W_ih^T + bias, split per gate (i,f,g,o)
    whh_ref:  (4, H, H)     per-gate W_hh^T blocks (lane-aligned)
    h0_ref:   (B, H)        initial hidden state
    c0_ref:   (B, H)        initial cell state
    wlin_ref: (T*H, n_out)  final Linear weight, transposed
    blin_ref: (1, n_out)    final Linear bias
    out_ref:  (B, n_out)    output
    hs_scr:   (B, T*H)      VMEM scratch holding all h_t for the fused Linear
    """
    H = hidden

    h = h0_ref[...]
    c = c0_ref[...]

    # Recurrent weights, one lane-aligned (H, H) block per gate.
    whh_i = whh_ref[0]
    whh_f = whh_ref[1]
    whh_g = whh_ref[2]
    whh_o = whh_ref[3]

    # Fully unrolled time loop (T is small and static): only h @ W_hh^T is on the
    # serial dependence chain; everything else is independent per step.
    for t in range(seq_len):
        pre_i = xp_ref[0, t] + jnp.dot(h, whh_i, preferred_element_type=jnp.float32)
        pre_f = xp_ref[1, t] + jnp.dot(h, whh_f, preferred_element_type=jnp.float32)
        pre_g = xp_ref[2, t] + jnp.dot(h, whh_g, preferred_element_type=jnp.float32)
        pre_o = xp_ref[3, t] + jnp.dot(h, whh_o, preferred_element_type=jnp.float32)

        i_g = jax.nn.sigmoid(pre_i)
        f_g = jax.nn.sigmoid(pre_f)
        g_g = jnp.tanh(pre_g)
        o_g = jax.nn.sigmoid(pre_o)

        c = f_g * c + i_g * g_g
        h = o_g * jnp.tanh(c)

        # Off the critical path: stash h_t for the fused end-of-sequence Linear.
        hs_scr[:, t * H:(t + 1) * H] = h

    # One fused (B, T*H) @ (T*H, n_out) matmul (K = T*H) + single output store.
    out_ref[...] = (jnp.dot(hs_scr[...], wlin_ref[...],
                            preferred_element_type=jnp.float32)
                    + blin_ref[...])


def mv_lstm_forward(x_btd, w_ih, w_hh, b_ih, b_hh, h0, c0, w_lin, b_lin):
    """x_btd: (B, T, D) batch-first, like the PyTorch module."""
    B, T, D = x_btd.shape
    H = h0.shape[-1]
    n_out = w_lin.shape[0]
    f32 = jnp.float32

    x = x_btd.astype(f32)
    bias = (b_ih + b_hh).astype(f32)                                 # (4H,)

    # Non-recurrent input projection for all timesteps in one batched matmul,
    # then split per gate and laid out (4, T, B, H) so each gate's pre-activation
    # block is lane-aligned inside the kernel (no in-loop lane slicing).
    xp = jnp.einsum('btd,gd->btg', x, w_ih.astype(f32)) + bias        # (B, T, 4H)
    xp = xp.reshape(B, T, 4, H).transpose(2, 1, 0, 3)                 # (4, T, B, H)

    # Per-gate recurrent weights, transposed so the kernel does h @ W_hh_g^T.
    whh = w_hh.astype(f32).reshape(4, H, H).transpose(0, 2, 1)        # (4, H, H)

    wlin_t = jnp.transpose(w_lin).astype(f32)                         # (T*H, n_out)
    blin = b_lin.reshape(1, n_out).astype(f32)                        # (1, n_out)

    kernel = functools.partial(_mv_lstm_kernel, seq_len=T, hidden=H)

    out = pl.pallas_call(
        kernel,
        out_shape=jax.ShapeDtypeStruct((B, n_out), f32),
        grid_spec=pltpu.PrefetchScalarGridSpec(
            num_scalar_prefetch=0,
            grid=(1,),                       # single invocation: no per-step pipeline overhead
            in_specs=[
                pl.BlockSpec((4, T, B, H), lambda i: (0, 0, 0, 0)),   # gate inputs
                pl.BlockSpec((4, H, H), lambda i: (0, 0, 0)),         # W_hh^T per gate
                pl.BlockSpec((B, H), lambda i: (0, 0)),               # h0
                pl.BlockSpec((B, H), lambda i: (0, 0)),               # c0
                pl.BlockSpec((T * H, n_out), lambda i: (0, 0)),       # W_lin^T
                pl.BlockSpec((1, n_out), lambda i: (0, 0)),           # b_lin
            ],
            out_specs=pl.BlockSpec((B, n_out), lambda i: (0, 0)),
            scratch_shapes=[
                pltpu.VMEM((B, T * H), f32),   # all h_t, for the fused final Linear
            ],
        ),
        compiler_params=pltpu.CompilerParams(
            dimension_semantics=("arbitrary",)),
    )(xp, whh, h0.astype(f32), c0.astype(f32), wlin_t, blin)
    return out


def mv_lstm_reference(x_btd, w_ih, w_hh, b_ih, b_hh, h0, c0, w_lin, b_lin):
    """Pure-JAX reference matching torch.nn.LSTM (i,f,g,o gate order) + Linear."""
    B, T, D = x_btd.shape
    H = h0.shape[-1]

    def step(carry, x_t):
        h, c = carry
        gates = x_t @ w_ih.T + h @ w_hh.T + b_ih + b_hh
        i = jax.nn.sigmoid(gates[:, 0 * H:1 * H])
        f = jax.nn.sigmoid(gates[:, 1 * H:2 * H])
        g = jnp.tanh(gates[:, 2 * H:3 * H])
        o = jax.nn.sigmoid(gates[:, 3 * H:4 * H])
        c_new = f * c + i * g
        h_new = o * jnp.tanh(c_new)
        return (h_new, c_new), h_new

    (_, _), hs = jax.lax.scan(step, (h0, c0), jnp.transpose(x_btd, (1, 0, 2)))
    lstm_out = jnp.transpose(hs, (1, 0, 2))              # (B, T, H)
    flat = lstm_out.reshape(B, T * H)
    return flat @ w_lin.T + b_lin


if __name__ == "__main__":
    # Small shapes consistent with the module's forward.
    B, T, D = 4, 8, 16          # batch, seq_len, input_size
    H, N_OUT = 32, 4            # n_hidden, num_output

    key = jax.random.PRNGKey(0)
    ks = jax.random.split(key, 10)
    bound = 1.0 / jnp.sqrt(H)

    x = jax.random.normal(ks[0], (B, T, D), dtype=jnp.float32)

    # LSTM parameters (torch layout: (4H, D), (4H, H), (4H,), (4H,)).
    w_ih = jax.random.uniform(ks[1], (4 * H, D), minval=-bound, maxval=bound)
    w_hh = jax.random.uniform(ks[2], (4 * H, H), minval=-bound, maxval=bound)
    b_ih = jax.random.uniform(ks[3], (4 * H,), minval=-bound, maxval=bound)
    b_hh = jax.random.uniform(ks[4], (4 * H,), minval=-bound, maxval=bound)

    # init_hidden: randn states.
    h0 = jax.random.normal(ks[5], (B, H), dtype=jnp.float32)
    c0 = jax.random.normal(ks[6], (B, H), dtype=jnp.float32)

    # Final Linear: (num_output, T*H), (num_output,).
    lin_bound = 1.0 / jnp.sqrt(T * H)
    w_lin = jax.random.uniform(ks[7], (N_OUT, T * H), minval=-lin_bound, maxval=lin_bound)
    b_lin = jax.random.uniform(ks[8], (N_OUT,), minval=-lin_bound, maxval=lin_bound)

    out = mv_lstm_forward(x, w_ih, w_hh, b_ih, b_hh, h0, c0, w_lin, b_lin)
    out = jax.block_until_ready(out)

    ref = mv_lstm_reference(x, w_ih, w_hh, b_ih, b_hh, h0, c0, w_lin, b_lin)
    assert out.shape == (B, N_OUT)
    assert jnp.allclose(out, ref, atol=1e-4, rtol=1e-4), "mismatch vs reference"

    print("KERNEL_OK")
</pallas_src>

<mosaic_0001>
module attributes {stable_mosaic.version = 11 : i64} {
  func.func @_mv_lstm_kernel(%arg0: i32, %arg1: memref<4x8x4x32xf32, #tpu.memory_space<vmem>>, %arg2: memref<4x32x32xf32, #tpu.memory_space<vmem>>, %arg3: memref<4x32xf32, #tpu.memory_space<vmem>>, %arg4: memref<4x32xf32, #tpu.memory_space<vmem>>, %arg5: memref<256x4xf32, #tpu.memory_space<vmem>>, %arg6: memref<1x4xf32, #tpu.memory_space<vmem>>, %arg7: memref<4x4xf32, #tpu.memory_space<vmem>>, %arg8: memref<4x256xf32, #tpu.memory_space<vmem>>) attributes {dimension_semantics = [#tpu.dimension_semantics<arbitrary>], iteration_bounds = array<i64: 1>, scalar_prefetch = 0 : i64, scratch_operands = 1 : i64, tpu.core_type = #tpu.core_type<tc>, window_params = [{pipeline_mode = #tpu.pipeline_mode<synchronous>, transform_indices = @transform_0, window_bounds = array<i64: 4, 8, 4, 32>}, {pipeline_mode = #tpu.pipeline_mode<synchronous>, transform_indices = @transform_1, window_bounds = array<i64: 4, 32, 32>}, {pipeline_mode = #tpu.pipeline_mode<synchronous>, transform_indices = @transform_2, window_bounds = array<i64: 4, 32>}, {pipeline_mode = #tpu.pipeline_mode<synchronous>, transform_indices = @transform_3, window_bounds = array<i64: 4, 32>}, {pipeline_mode = #tpu.pipeline_mode<synchronous>, transform_indices = @transform_4, window_bounds = array<i64: 256, 4>}, {pipeline_mode = #tpu.pipeline_mode<synchronous>, transform_indices = @transform_5, window_bounds = array<i64: 1, 4>}, {pipeline_mode = #tpu.pipeline_mode<synchronous>, transform_indices = @transform_6, window_bounds = array<i64: 4, 4>}]} {
    %c0 = arith.constant 0 : index
    %c0_0 = arith.constant 0 : index
    %0 = vector.load %arg3[%c0, %c0_0] : memref<4x32xf32, #tpu.memory_space<vmem>>, vector<4x32xf32>
    %c0_1 = arith.constant 0 : index
    %c0_2 = arith.constant 0 : index
    %1 = vector.load %arg4[%c0_1, %c0_2] : memref<4x32xf32, #tpu.memory_space<vmem>>, vector<4x32xf32>
    %c0_3 = arith.constant 0 : index
    %c0_4 = arith.constant 0 : index
    %c0_5 = arith.constant 0 : index
    %2 = vector.load %arg2[%c0_3, %c0_4, %c0_5] : memref<4x32x32xf32, #tpu.memory_space<vmem>>, vector<1x32x32xf32>
    %3 = vector.shape_cast %2 : vector<1x32x32xf32> to vector<32x32xf32>
    %c1 = arith.constant 1 : index
    %c0_6 = arith.constant 0 : index
    %c0_7 = arith.constant 0 : index
    %4 = vector.load %arg2[%c1, %c0_6, %c0_7] : memref<4x32x32xf32, #tpu.memory_space<vmem>>, vector<1x32x32xf32>
    %5 = vector.shape_cast %4 : vector<1x32x32xf32> to vector<32x32xf32>
    %c2 = arith.constant 2 : index
    %c0_8 = arith.constant 0 : index
    %c0_9 = arith.constant 0 : index
    %6 = vector.load %arg2[%c2, %c0_8, %c0_9] : memref<4x32x32xf32, #tpu.memory_space<vmem>>, vector<1x32x32xf32>
    %7 = vector.shape_cast %6 : vector<1x32x32xf32> to vector<32x32xf32>
    %c3 = arith.constant 3 : index
    %c0_10 = arith.constant 0 : index
    %c0_11 = arith.constant 0 : index
    %8 = vector.load %arg2[%c3, %c0_10, %c0_11] : memref<4x32x32xf32, #tpu.memory_space<vmem>>, vector<1x32x32xf32>
    %9 = vector.shape_cast %8 : vector<1x32x32xf32> to vector<32x32xf32>
    %c0_12 = arith.constant 0 : index
    %c0_13 = arith.constant 0 : index
    %c0_14 = arith.constant 0 : index
    %c0_15 = arith.constant 0 : index
    %10 = vector.load %arg1[%c0_12, %c0_13, %c0_14, %c0_15] : memref<4x8x4x32xf32, #tpu.memory_space<vmem>>, vector<1x1x4x32xf32>
    %11 = vector.shape_cast %10 : vector<1x1x4x32xf32> to vector<4x32xf32>
    %cst = arith.constant dense<0.000000e+00> : vector<4x32xf32>
    %12 = tpu.matmul %0, %3, %cst {dimension_numbers = #tpu.dot_dimension_numbers<[1], [0], [0], [1], [0, 0, 1, 1], [], []>} : vector<4x32xf32>, vector<32x32xf32>, vector<4x32xf32> -> vector<4x32xf32>
    %13 = arith.addf %11, %12 : vector<4x32xf32>
    %c1_16 = arith.constant 1 : index
    %c0_17 = arith.constant 0 : index
    %c0_18 = arith.constant 0 : index
    %c0_19 = arith.constant 0 : index
    %14 = vector.load %arg1[%c1_16, %c0_17, %c0_18, %c0_19] : memref<4x8x4x32xf32, #tpu.memory_space<vmem>>, vector<1x1x4x32xf32>
    %15 = vector.shape_cast %14 : vector<1x1x4x32xf32> to vector<4x32xf32>
    %cst_20 = arith.constant dense<0.000000e+00> : vector<4x32xf32>
    %16 = tpu.matmul %0, %5, %cst_20 {dimension_numbers = #tpu.dot_dimension_numbers<[1], [0], [0], [1], [0, 0, 1, 1], [], []>} : vector<4x32xf32>, vector<32x32xf32>, vector<4x32xf32> -> vector<4x32xf32>
    %17 = arith.addf %15, %16 : vector<4x32xf32>
    %c2_21 = arith.constant 2 : index
    %c0_22 = arith.constant 0 : index
    %c0_23 = arith.constant 0 : index
    %c0_24 = arith.constant 0 : index
    %18 = vector.load %arg1[%c2_21, %c0_22, %c0_23, %c0_24] : memref<4x8x4x32xf32, #tpu.memory_space<vmem>>, vector<1x1x4x32xf32>
    %19 = vector.shape_cast %18 : vector<1x1x4x32xf32> to vector<4x32xf32>
    %cst_25 = arith.constant dense<0.000000e+00> : vector<4x32xf32>
    %20 = tpu.matmul %0, %7, %cst_25 {dimension_numbers = #tpu.dot_dimension_numbers<[1], [0], [0], [1], [0, 0, 1, 1], [], []>} : vector<4x32xf32>, vector<32x32xf32>, vector<4x32xf32> -> vector<4x32xf32>
    %21 = arith.addf %19, %20 : vector<4x32xf32>
    %c3_26 = arith.constant 3 : index
    %c0_27 = arith.constant 0 : index
    %c0_28 = arith.constant 0 : index
    %c0_29 = arith.constant 0 : index
    %22 = vector.load %arg1[%c3_26, %c0_27, %c0_28, %c0_29] : memref<4x8x4x32xf32, #tpu.memory_space<vmem>>, vector<1x1x4x32xf32>
    %23 = vector.shape_cast %22 : vector<1x1x4x32xf32> to vector<4x32xf32>
    %cst_30 = arith.constant dense<0.000000e+00> : vector<4x32xf32>
    %24 = tpu.matmul %0, %9, %cst_30 {dimension_numbers = #tpu.dot_dimension_numbers<[1], [0], [0], [1], [0, 0, 1, 1], [], []>} : vector<4x32xf32>, vector<32x32xf32>, vector<4x32xf32> -> vector<4x32xf32>
    %25 = arith.addf %23, %24 : vector<4x32xf32>
    %26 = arith.negf %13 : vector<4x32xf32>
    %27 = math.exp %26 : vector<4x32xf32>
    %cst_31 = arith.constant 1.000000e+00 : f32
    %28 = vector.broadcast %cst_31 : f32 to vector<4x32xf32>
    %29 = arith.addf %28, %27 : vector<4x32xf32>
    %30 = arith.divf %28, %29 : vector<4x32xf32>
    %31 = arith.negf %17 : vector<4x32xf32>
    %32 = math.exp %31 : vector<4x32xf32>
    %cst_32 = arith.constant 1.000000e+00 : f32
    %33 = vector.broadcast %cst_32 : f32 to vector<4x32xf32>
    %34 = arith.addf %33, %32 : vector<4x32xf32>
    %35 = arith.divf %33, %34 : vector<4x32xf32>
    %36 = math.tanh %21 : vector<4x32xf32>
    %37 = arith.negf %25 : vector<4x32xf32>
    %38 = math.exp %37 : vector<4x32xf32>
    %cst_33 = arith.constant 1.000000e+00 : f32
    %39 = vector.broadcast %cst_33 : f32 to vector<4x32xf32>
    %40 = arith.addf %39, %38 : vector<4x32xf32>
    %41 = arith.divf %39, %40 : vector<4x32xf32>
    %42 = arith.mulf %35, %1 : vector<4x32xf32>
    %43 = arith.mulf %30, %36 : vector<4x32xf32>
    %44 = arith.addf %42, %43 : vector<4x32xf32>
    %45 = math.tanh %44 : vector<4x32xf32>
    %46 = arith.mulf %41, %45 : vector<4x32xf32>
    %c0_34 = arith.constant 0 : index
    %c0_35 = arith.constant 0 : index
    %47 = vector.load %arg8[%c0_34, %c0_35] : memref<4x256xf32, #tpu.memory_space<vmem>>, vector<4x32xf32>
    tpu.vector_store %arg8[%c0_34, %c0_35], %46 {strides = array<i32>} : memref<4x256xf32, #tpu.memory_space<vmem>>, vector<4x32xf32>,
    %c0_36 = arith.constant 0 : index
    %c1_37 = arith.constant 1 : index
    %c0_38 = arith.constant 0 : index
    %c0_39 = arith.constant 0 : index
    %48 = vector.load %arg1[%c0_36, %c1_37, %c0_38, %c0_39] : memref<4x8x4x32xf32, #tpu.memory_space<vmem>>, vector<1x1x4x32xf32>
    %49 = vector.shape_cast %48 : vector<1x1x4x32xf32> to vector<4x32xf32>
    %cst_40 = arith.constant dense<0.000000e+00> : vector<4x32xf32>
    %50 = tpu.matmul %46, %3, %cst_40 {dimension_numbers = #tpu.dot_dimension_numbers<[1], [0], [0], [1], [0, 0, 1, 1], [], []>} : vector<4x32xf32>, vector<32x32xf32>, vector<4x32xf32> -> vector<4x32xf32>
    %51 = arith.addf %49, %50 : vector<4x32xf32>
    %c1_41 = arith.constant 1 : index
    %c1_42 = arith.constant 1 : index
    %c0_43 = arith.constant 0 : index
    %c0_44 = arith.constant 0 : index
    %52 = vector.load %arg1[%c1_41, %c1_42, %c0_43, %c0_44] : memref<4x8x4x32xf32, #tpu.memory_space<vmem>>, vector<1x1x4x32xf32>
    %53 = vector.shape_cast %52 : vector<1x1x4x32xf32> to vector<4x32xf32>
    %cst_45 = arith.constant dense<0.000000e+00> : vector<4x32xf32>
    %54 = tpu.matmul %46, %5, %cst_45 {dimension_numbers = #tpu.dot_dimension_numbers<[1], [0], [0], [1], [0, 0, 1, 1], [], []>} : vector<4x32xf32>, vector<32x32xf32>, vector<4x32xf32> -> vector<4x32xf32>
    %55 = arith.addf %53, %54 : vector<4x32xf32>
    %c2_46 = arith.constant 2 : index
    %c1_47 = arith.constant 1 : index
    %c0_48 = arith.constant 0 : index
    %c0_49 = arith.constant 0 : index
    %56 = vector.load %arg1[%c2_46, %c1_47, %c0_48, %c0_49] : memref<4x8x4x32xf32, #tpu.memory_space<vmem>>, vector<1x1x4x32xf32>
    %57 = vector.shape_cast %56 : vector<1x1x4x32xf32> to vector<4x32xf32>
    %cst_50 = arith.constant dense<0.000000e+00> : vector<4x32xf32>
    %58 = tpu.matmul %46, %7, %cst_50 {dimension_numbers = #tpu.dot_dimension_numbers<[1], [0], [0], [1], [0, 0, 1, 1], [], []>} : vector<4x32xf32>, vector<32x32xf32>, vector<4x32xf32> -> vector<4x32xf32>
    %59 = arith.addf %57, %58 : vector<4x32xf32>
    %c3_51 = arith.constant 3 : index
    %c1_52 = arith.constant 1 : index
    %c0_53 = arith.constant 0 : index
    %c0_54 = arith.constant 0 : index
    %60 = vector.load %arg1[%c3_51, %c1_52, %c0_53, %c0_54] : memref<4x8x4x32xf32, #tpu.memory_space<vmem>>, vector<1x1x4x32xf32>
    %61 = vector.shape_cast %60 : vector<1x1x4x32xf32> to vector<4x32xf32>
    %cst_55 = arith.constant dense<0.000000e+00> : vector<4x32xf32>
    %62 = tpu.matmul %46, %9, %cst_55 {dimension_numbers = #tpu.dot_dimension_numbers<[1], [0], [0], [1], [0, 0, 1, 1], [], []>} : vector<4x32xf32>, vector<32x32xf32>, vector<4x32xf32> -> vector<4x32xf32>
    %63 = arith.addf %61, %62 : vector<4x32xf32>
    %64 = arith.negf %51 : vector<4x32xf32>
    %65 = math.exp %64 : vector<4x32xf32>
    %cst_56 = arith.constant 1.000000e+00 : f32
    %66 = vector.broadcast %cst_56 : f32 to vector<4x32xf32>
    %67 = arith.addf %66, %65 : vector<4x32xf32>
    %68 = arith.divf %66, %67 : vector<4x32xf32>
    %69 = arith.negf %55 : vector<4x32xf32>
    %70 = math.exp %69 : vector<4x32xf32>
    %cst_57 = arith.constant 1.000000e+00 : f32
    %71 = vector.broadcast %cst_57 : f32 to vector<4x32xf32>
    %72 = arith.addf %71, %70 : vector<4x32xf32>
    %73 = arith.divf %71, %72 : vector<4x32xf32>
    %74 = math.tanh %59 : vector<4x32xf32>
    %75 = arith.negf %63 : vector<4x32xf32>
    %76 = math.exp %75 : vector<4x32xf32>
    %cst_58 = arith.constant 1.000000e+00 : f32
    %77 = vector.broadcast %cst_58 : f32 to vector<4x32xf32>
    %78 = arith.addf %77, %76 : vector<4x32xf32>
    %79 = arith.divf %77, %78 : vector<4x32xf32>
    %80 = arith.mulf %73, %44 : vector<4x32xf32>
    %81 = arith.mulf %68, %74 : vector<4x32xf32>
    %82 = arith.addf %80, %81 : vector<4x32xf32>
    %83 = math.tanh %82 : vector<4x32xf32>
    %84 = arith.mulf %79, %83 : vector<4x32xf32>
    %c0_59 = arith.constant 0 : index
    %c32 = arith.constant 32 : index
    %85 = vector.load %arg8[%c0_59, %c32] : memref<4x256xf32, #tpu.memory_space<vmem>>, vector<4x32xf32>
    tpu.vector_store %arg8[%c0_59, %c32], %84 {strides = array<i32>} : memref<4x256xf32, #tpu.memory_space<vmem>>, vector<4x32xf32>,
    %c0_60 = arith.constant 0 : index
    %c2_61 = arith.constant 2 : index
    %c0_62 = arith.constant 0 : index
    %c0_63 = arith.constant 0 : index
    %86 = vector.load %arg1[%c0_60, %c2_61, %c0_62, %c0_63] : memref<4x8x4x32xf32, #tpu.memory_space<vmem>>, vector<1x1x4x32xf32>
    %87 = vector.shape_cast %86 : vector<1x1x4x32xf32> to vector<4x32xf32>
    %cst_64 = arith.constant dense<0.000000e+00> : vector<4x32xf32>
    %88 = tpu.matmul %84, %3, %cst_64 {dimension_numbers = #tpu.dot_dimension_numbers<[1], [0], [0], [1], [0, 0, 1, 1], [], []>} : vector<4x32xf32>, vector<32x32xf32>, vector<4x32xf32> -> vector<4x32xf32>
    %89 = arith.addf %87, %88 : vector<4x32xf32>
    %c1_65 = arith.constant 1 : index
    %c2_66 = arith.constant 2 : index
    %c0_67 = arith.constant 0 : index
    %c0_68 = arith.constant 0 : index
    %90 = vector.load %arg1[%c1_65, %c2_66, %c0_67, %c0_68] : memref<4x8x4x32xf32, #tpu.memory_space<vmem>>, vector<1x1x4x32xf32>
    %91 = vector.shape_cast %90 : vector<1x1x4x32xf32> to vector<4x32xf32>
    %cst_69 = arith.constant dense<0.000000e+00> : vector<4x32xf32>
    %92 = tpu.matmul %84, %5, %cst_69 {dimension_numbers = #tpu.dot_dimension_numbers<[1], [0], [0], [1], [0, 0, 1, 1], [], []>} : vector<4x32xf32>, vector<32x32xf32>, vector<4x32xf32> -> vector<4x32xf32>
    %93 = arith.addf %91, %92 : vector<4x32xf32>
    %c2_70 = arith.constant 2 : index
    %c2_71 = arith.constant 2 : index
    %c0_72 = arith.constant 0 : index
    %c0_73 = arith.constant 0 : index
    %94 = vector.load %arg1[%c2_70, %c2_71, %c0_72, %c0_73] : memref<4x8x4x32xf32, #tpu.memory_space<vmem>>, vector<1x1x4x32xf32>
    %95 = vector.shape_cast %94 : vector<1x1x4x32xf32> to vector<4x32xf32>
    %cst_74 = arith.constant dense<0.000000e+00> : vector<4x32xf32>
    %96 = tpu.matmul %84, %7, %cst_74 {dimension_numbers = #tpu.dot_dimension_numbers<[1], [0], [0], [1], [0, 0, 1, 1], [], []>} : vector<4x32xf32>, vector<32x32xf32>, vector<4x32xf32> -> vector<4x32xf32>
    %97 = arith.addf %95, %96 : vector<4x32xf32>
    %c3_75 = arith.constant 3 : index
    %c2_76 = arith.constant 2 : index
    %c0_77 = arith.constant 0 : index
    %c0_78 = arith.constant 0 : index
    %98 = vector.load %arg1[%c3_75, %c2_76, %c0_77, %c0_78] : memref<4x8x4x32xf32, #tpu.memory_space<vmem>>, vector<1x1x4x32xf32>
    %99 = vector.shape_cast %98 : vector<1x1x4x32xf32> to vector<4x32xf32>
    %cst_79 = arith.constant dense<0.000000e+00> : vector<4x32xf32>
    %100 = tpu.matmul %84, %9, %cst_79 {dimension_numbers = #tpu.dot_dimension_numbers<[1], [0], [0], [1], [0, 0, 1, 1], [], []>} : vector<4x32xf32>, vector<32x32xf32>, vector<4x32xf32> -> vector<4x32xf32>
    %101 = arith.addf %99, %100 : vector<4x32xf32>
    %102 = arith.negf %89 : vector<4x32xf32>
    %103 = math.exp %102 : vector<4x32xf32>
    %cst_80 = arith.constant 1.000000e+00 : f32
    %104 = vector.broadcast %cst_80 : f32 to vector<4x32xf32>
    %105 = arith.addf %104, %103 : vector<4x32xf32>
    %106 = arith.divf %104, %105 : vector<4x32xf32>
    %107 = arith.negf %93 : vector<4x32xf32>
    %108 = math.exp %107 : vector<4x32xf32>
    %cst_81 = arith.constant 1.000000e+00 : f32
    %109 = vector.broadcast %cst_81 : f32 to vector<4x32xf32>
    %110 = arith.addf %109, %108 : vector<4x32xf32>
    %111 = arith.divf %109, %110 : vector<4x32xf32>
    %112 = math.tanh %97 : vector<4x32xf32>
    %113 = arith.negf %101 : vector<4x32xf32>
    %114 = math.exp %113 : vector<4x32xf32>
    %cst_82 = arith.constant 1.000000e+00 : f32
    %115 = vector.broadcast %cst_82 : f32 to vector<4x32xf32>
    %116 = arith.addf %115, %114 : vector<4x32xf32>
    %117 = arith.divf %115, %116 : vector<4x32xf32>
    %118 = arith.mulf %111, %82 : vector<4x32xf32>
    %119 = arith.mulf %106, %112 : vector<4x32xf32>
    %120 = arith.addf %118, %119 : vector<4x32xf32>
    %121 = math.tanh %120 : vector<4x32xf32>
    %122 = arith.mulf %117, %121 : vector<4x32xf32>
    %c0_83 = arith.constant 0 : index
    %c64 = arith.constant 64 : index
    %123 = vector.load %arg8[%c0_83, %c64] : memref<4x256xf32, #tpu.memory_space<vmem>>, vector<4x32xf32>
    tpu.vector_store %arg8[%c0_83, %c64], %122 {strides = array<i32>} : memref<4x256xf32, #tpu.memory_space<vmem>>, vector<4x32xf32>,
    %c0_84 = arith.constant 0 : index
    %c3_85 = arith.constant 3 : index
    %c0_86 = arith.constant 0 : index
    %c0_87 = arith.constant 0 : index
    %124 = vector.load %arg1[%c0_84, %c3_85, %c0_86, %c0_87] : memref<4x8x4x32xf32, #tpu.memory_space<vmem>>, vector<1x1x4x32xf32>
    %125 = vector.shape_cast %124 : vector<1x1x4x32xf32> to vector<4x32xf32>
    %cst_88 = arith.constant dense<0.000000e+00> : vector<4x32xf32>
    %126 = tpu.matmul %122, %3, %cst_88 {dimension_numbers = #tpu.dot_dimension_numbers<[1], [0], [0], [1], [0, 0, 1, 1], [], []>} : vector<4x32xf32>, vector<32x32xf32>, vector<4x32xf32> -> vector<4x32xf32>
    %127 = arith.addf %125, %126 : vector<4x32xf32>
    %c1_89 = arith.constant 1 : index
    %c3_90 = arith.constant 3 : index
    %c0_91 = arith.constant 0 : index
    %c0_92 = arith.constant 0 : index
    %128 = vector.load %arg1[%c1_89, %c3_90, %c0_91, %c0_92] : memref<4x8x4x32xf32, #tpu.memory_space<vmem>>, vector<1x1x4x32xf32>
    %129 = vector.shape_cast %128 : vector<1x1x4x32xf32> to vector<4x32xf32>
    %cst_93 = arith.constant dense<0.000000e+00> : vector<4x32xf32>
    %130 = tpu.matmul %122, %5, %cst_93 {dimension_numbers = #tpu.dot_dimension_numbers<[1], [0], [0], [1], [0, 0, 1, 1], [], []>} : vector<4x32xf32>, vector<32x32xf32>, vector<4x32xf32> -> vector<4x32xf32>
    %131 = arith.addf %129, %130 : vector<4x32xf32>
    %c2_94 = arith.constant 2 : index
    %c3_95 = arith.constant 3 : index
    %c0_96 = arith.constant 0 : index
    %c0_97 = arith.constant 0 : index
    %132 = vector.load %arg1[%c2_94, %c3_95, %c0_96, %c0_97] : memref<4x8x4x32xf32, #tpu.memory_space<vmem>>, vector<1x1x4x32xf32>
    %133 = vector.shape_cast %132 : vector<1x1x4x32xf32> to vector<4x32xf32>
    %cst_98 = arith.constant dense<0.000000e+00> : vector<4x32xf32>
    %134 = tpu.matmul %122, %7, %cst_98 {dimension_numbers = #tpu.dot_dimension_numbers<[1], [0], [0], [1], [0, 0, 1, 1], [], []>} : vector<4x32xf32>, vector<32x32xf32>, vector<4x32xf32> -> vector<4x32xf32>
    %135 = arith.addf %133, %134 : vector<4x32xf32>
    %c3_99 = arith.constant 3 : index
    %c3_100 = arith.constant 3 : index
    %c0_101 = arith.constant 0 : index
    %c0_102 = arith.constant 0 : index
    %136 = vector.load %arg1[%c3_99, %c3_100, %c0_101, %c0_102] : memref<4x8x4x32xf32, #tpu.memory_space<vmem>>, vector<1x1x4x32xf32>
    %137 = vector.shape_cast %136 : vector<1x1x4x32xf32> to vector<4x32xf32>
    %cst_103 = arith.constant dense<0.000000e+00> : vector<4x32xf32>
    %138 = tpu.matmul %122, %9, %cst_103 {dimension_numbers = #tpu.dot_dimension_numbers<[1], [0], [0], [1], [0, 0, 1, 1], [], []>} : vector<4x32xf32>, vector<32x32xf32>, vector<4x32xf32> -> vector<4x32xf32>
    %139 = arith.addf %137, %138 : vector<4x32xf32>
    %140 = arith.negf %127 : vector<4x32xf32>
    %141 = math.exp %140 : vector<4x32xf32>
    %cst_104 = arith.constant 1.000000e+00 : f32
    %142 = vector.broadcast %cst_104 : f32 to vector<4x32xf32>
    %143 = arith.addf %142, %141 : vector<4x32xf32>
    %144 = arith.divf %142, %143 : vector<4x32xf32>
    %145 = arith.negf %131 : vector<4x32xf32>
    %146 = math.exp %145 : vector<4x32xf32>
    %cst_105 = arith.constant 1.000000e+00 : f32
    %147 = vector.broadcast %cst_105 : f32 to vector<4x32xf32>
    %148 = arith.addf %147, %146 : vector<4x32xf32>
    %149 = arith.divf %147, %148 : vector<4x32xf32>
    %150 = math.tanh %135 : vector<4x32xf32>
    %151 = arith.negf %139 : vector<4x32xf32>
    %152 = math.exp %151 : vector<4x32xf32>
    %cst_106 = arith.constant 1.000000e+00 : f32
    %153 = vector.broadcast %cst_106 : f32 to vector<4x32xf32>
    %154 = arith.addf %153, %152 : vector<4x32xf32>
    %155 = arith.divf %153, %154 : vector<4x32xf32>
    %156 = arith.mulf %149, %120 : vector<4x32xf32>
    %157 = arith.mulf %144, %150 : vector<4x32xf32>
    %158 = arith.addf %156, %157 : vector<4x32xf32>
    %159 = math.tanh %158 : vector<4x32xf32>
    %160 = arith.mulf %155, %159 : vector<4x32xf32>
    %c0_107 = arith.constant 0 : index
    %c96 = arith.constant 96 : index
    %161 = vector.load %arg8[%c0_107, %c96] : memref<4x256xf32, #tpu.memory_space<vmem>>, vector<4x32xf32>
    tpu.vector_store %arg8[%c0_107, %c96], %160 {strides = array<i32>} : memref<4x256xf32, #tpu.memory_space<vmem>>, vector<4x32xf32>,
    %c0_108 = arith.constant 0 : index
    %c4 = arith.constant 4 : index
    %c0_109 = arith.constant 0 : index
    %c0_110 = arith.constant 0 : index
    %162 = vector.load %arg1[%c0_108, %c4, %c0_109, %c0_110] : memref<4x8x4x32xf32, #tpu.memory_space<vmem>>, vector<1x1x4x32xf32>
    %163 = vector.shape_cast %162 : vector<1x1x4x32xf32> to vector<4x32xf32>
    %cst_111 = arith.constant dense<0.000000e+00> : vector<4x32xf32>
    %164 = tpu.matmul %160, %3, %cst_111 {dimension_numbers = #tpu.dot_dimension_numbers<[1], [0], [0], [1], [0, 0, 1, 1], [], []>} : vector<4x32xf32>, vector<32x32xf32>, vector<4x32xf32> -> vector<4x32xf32>
    %165 = arith.addf %163, %164 : vector<4x32xf32>
    %c1_112 = arith.constant 1 : index
    %c4_113 = arith.constant 4 : index
    %c0_114 = arith.constant 0 : index
    %c0_115 = arith.constant 0 : index
    %166 = vector.load %arg1[%c1_112, %c4_113, %c0_114, %c0_115] : memref<4x8x4x32xf32, #tpu.memory_space<vmem>>, vector<1x1x4x32xf32>
    %167 = vector.shape_cast %166 : vector<1x1x4x32xf32> to vector<4x32xf32>
    %cst_116 = arith.constant dense<0.000000e+00> : vector<4x32xf32>
    %168 = tpu.matmul %160, %5, %cst_116 {dimension_numbers = #tpu.dot_dimension_numbers<[1], [0], [0], [1], [0, 0, 1, 1], [], []>} : vector<4x32xf32>, vector<32x32xf32>, vector<4x32xf32> -> vector<4x32xf32>
    %169 = arith.addf %167, %168 : vector<4x32xf32>
    %c2_117 = arith.constant 2 : index
    %c4_118 = arith.constant 4 : index
    %c0_119 = arith.constant 0 : index
    %c0_120 = arith.constant 0 : index
    %170 = vector.load %arg1[%c2_117, %c4_118, %c0_119, %c0_120] : memref<4x8x4x32xf32, #tpu.memory_space<vmem>>, vector<1x1x4x32xf32>
    %171 = vector.shape_cast %170 : vector<1x1x4x32xf32> to vector<4x32xf32>
    %cst_121 = arith.constant dense<0.000000e+00> : vector<4x32xf32>
    %172 = tpu.matmul %160, %7, %cst_121 {dimension_numbers = #tpu.dot_dimension_numbers<[1], [0], [0], [1], [0, 0, 1, 1], [], []>} : vector<4x32xf32>, vector<32x32xf32>, vector<4x32xf32> -> vector<4x32xf32>
    %173 = arith.addf %171, %172 : vector<4x32xf32>
    %c3_122 = arith.constant 3 : index
    %c4_123 = arith.constant 4 : index
    %c0_124 = arith.constant 0 : index
    %c0_125 = arith.constant 0 : index
    %174 = vector.load %arg1[%c3_122, %c4_123, %c0_124, %c0_125] : memref<4x8x4x32xf32, #tpu.memory_space<vmem>>, vector<1x1x4x32xf32>
    %175 = vector.shape_cast %174 : vector<1x1x4x32xf32> to vector<4x32xf32>
    %cst_126 = arith.constant dense<0.000000e+00> : vector<4x32xf32>
    %176 = tpu.matmul %160, %9, %cst_126 {dimension_numbers = #tpu.dot_dimension_numbers<[1], [0], [0], [1], [0, 0, 1, 1], [], []>} : vector<4x32xf32>, vector<32x32xf32>, vector<4x32xf32> -> vector<4x32xf32>
    %177 = arith.addf %175, %176 : vector<4x32xf32>
    %178 = arith.negf %165 : vector<4x32xf32>
    %179 = math.exp %178 : vector<4x32xf32>
    %cst_127 = arith.constant 1.000000e+00 : f32
    %180 = vector.broadcast %cst_127 : f32 to vector<4x32xf32>
    %181 = arith.addf %180, %179 : vector<4x32xf32>
    %182 = arith.divf %180, %181 : vector<4x32xf32>
    %183 = arith.negf %169 : vector<4x32xf32>
    %184 = math.exp %183 : vector<4x32xf32>
    %cst_128 = arith.constant 1.000000e+00 : f32
    %185 = vector.broadcast %cst_128 : f32 to vector<4x32xf32>
    %186 = arith.addf %185, %184 : vector<4x32xf32>
    %187 = arith.divf %185, %186 : vector<4x32xf32>
    %188 = math.tanh %173 : vector<4x32xf32>
    %189 = arith.negf %177 : vector<4x32xf32>
    %190 = math.exp %189 : vector<4x32xf32>
    %cst_129 = arith.constant 1.000000e+00 : f32
    %191 = vector.broadcast %cst_129 : f32 to vector<4x32xf32>
    %192 = arith.addf %191, %190 : vector<4x32xf32>
    %193 = arith.divf %191, %192 : vector<4x32xf32>
    %194 = arith.mulf %187, %158 : vector<4x32xf32>
    %195 = arith.mulf %182, %188 : vector<4x32xf32>
    %196 = arith.addf %194, %195 : vector<4x32xf32>
    %197 = math.tanh %196 : vector<4x32xf32>
    %198 = arith.mulf %193, %197 : vector<4x32xf32>
    %c0_130 = arith.constant 0 : index
    %c128 = arith.constant 128 : index
    %199 = vector.load %arg8[%c0_130, %c128] : memref<4x256xf32, #tpu.memory_space<vmem>>, vector<4x32xf32>
    tpu.vector_store %arg8[%c0_130, %c128], %198 {strides = array<i32>} : memref<4x256xf32, #tpu.memory_space<vmem>>, vector<4x32xf32>,
    %c0_131 = arith.constant 0 : index
    %c5 = arith.constant 5 : index
    %c0_132 = arith.constant 0 : index
    %c0_133 = arith.constant 0 : index
    %200 = vector.load %arg1[%c0_131, %c5, %c0_132, %c0_133] : memref<4x8x4x32xf32, #tpu.memory_space<vmem>>, vector<1x1x4x32xf32>
    %201 = vector.shape_cast %200 : vector<1x1x4x32xf32> to vector<4x32xf32>
    %cst_134 = arith.constant dense<0.000000e+00> : vector<4x32xf32>
    %202 = tpu.matmul %198, %3, %cst_134 {dimension_numbers = #tpu.dot_dimension_numbers<[1], [0], [0], [1], [0, 0, 1, 1], [], []>} : vector<4x32xf32>, vector<32x32xf32>, vector<4x32xf32> -> vector<4x32xf32>
    %203 = arith.addf %201, %202 : vector<4x32xf32>
    %c1_135 = arith.constant 1 : index
    %c5_136 = arith.constant 5 : index
    %c0_137 = arith.constant 0 : index
    %c0_138 = arith.constant 0 : index
    %204 = vector.load %arg1[%c1_135, %c5_136, %c0_137, %c0_138] : memref<4x8x4x32xf32, #tpu.memory_space<vmem>>, vector<1x1x4x32xf32>
    %205 = vector.shape_cast %204 : vector<1x1x4x32xf32> to vector<4x32xf32>
    %cst_139 = arith.constant dense<0.000000e+00> : vector<4x32xf32>
    %206 = tpu.matmul %198, %5, %cst_139 {dimension_numbers = #tpu.dot_dimension_numbers<[1], [0], [0], [1], [0, 0, 1, 1], [], []>} : vector<4x32xf32>, vector<32x32xf32>, vector<4x32xf32> -> vector<4x32xf32>
    %207 = arith.addf %205, %206 : vector<4x32xf32>
    %c2_140 = arith.constant 2 : index
    %c5_141 = arith.constant 5 : index
    %c0_142 = arith.constant 0 : index
    %c0_143 = arith.constant 0 : index
    %208 = vector.load %arg1[%c2_140, %c5_141, %c0_142, %c0_143] : memref<4x8x4x32xf32, #tpu.memory_space<vmem>>, vector<1x1x4x32xf32>
    %209 = vector.shape_cast %208 : vector<1x1x4x32xf32> to vector<4x32xf32>
    %cst_144 = arith.constant dense<0.000000e+00> : vector<4x32xf32>
    %210 = tpu.matmul %198, %7, %cst_144 {dimension_numbers = #tpu.dot_dimension_numbers<[1], [0], [0], [1], [0, 0, 1, 1], [], []>} : vector<4x32xf32>, vector<32x32xf32>, vector<4x32xf32> -> vector<4x32xf32>
    %211 = arith.addf %209, %210 : vector<4x32xf32>
    %c3_145 = arith.constant 3 : index
    %c5_146 = arith.constant 5 : index
    %c0_147 = arith.constant 0 : index
    %c0_148 = arith.constant 0 : index
    %212 = vector.load %arg1[%c3_145, %c5_146, %c0_147, %c0_148] : memref<4x8x4x32xf32, #tpu.memory_space<vmem>>, vector<1x1x4x32xf32>
    %213 = vector.shape_cast %212 : vector<1x1x4x32xf32> to vector<4x32xf32>
    %cst_149 = arith.constant dense<0.000000e+00> : vector<4x32xf32>
    %214 = tpu.matmul %198, %9, %cst_149 {dimension_numbers = #tpu.dot_dimension_numbers<[1], [0], [0], [1], [0, 0, 1, 1], [], []>} : vector<4x32xf32>, vector<32x32xf32>, vector<4x32xf32> -> vector<4x32xf32>
    %215 = arith.addf %213, %214 : vector<4x32xf32>
    %216 = arith.negf %203 : vector<4x32xf32>
    %217 = math.exp %216 : vector<4x32xf32>
    %cst_150 = arith.constant 1.000000e+00 : f32
    %218 = vector.broadcast %cst_150 : f32 to vector<4x32xf32>
    %219 = arith.addf %218, %217 : vector<4x32xf32>
    %220 = arith.divf %218, %219 : vector<4x32xf32>
    %221 = arith.negf %207 : vector<4x32xf32>
    %222 = math.exp %221 : vector<4x32xf32>
    %cst_151 = arith.constant 1.000000e+00 : f32
    %223 = vector.broadcast %cst_151 : f32 to vector<4x32xf32>
    %224 = arith.addf %223, %222 : vector<4x32xf32>
    %225 = arith.divf %223, %224 : vector<4x32xf32>
    %226 = math.tanh %211 : vector<4x32xf32>
    %227 = arith.negf %215 : vector<4x32xf32>
    %228 = math.exp %227 : vector<4x32xf32>
    %cst_152 = arith.constant 1.000000e+00 : f32
    %229 = vector.broadcast %cst_152 : f32 to vector<4x32xf32>
    %230 = arith.addf %229, %228 : vector<4x32xf32>
    %231 = arith.divf %229, %230 : vector<4x32xf32>
    %232 = arith.mulf %225, %196 : vector<4x32xf32>
    %233 = arith.mulf %220, %226 : vector<4x32xf32>
    %234 = arith.addf %232, %233 : vector<4x32xf32>
    %235 = math.tanh %234 : vector<4x32xf32>
    %236 = arith.mulf %231, %235 : vector<4x32xf32>
    %c0_153 = arith.constant 0 : index
    %c160 = arith.constant 160 : index
    %237 = vector.load %arg8[%c0_153, %c160] : memref<4x256xf32, #tpu.memory_space<vmem>>, vector<4x32xf32>
    tpu.vector_store %arg8[%c0_153, %c160], %236 {strides = array<i32>} : memref<4x256xf32, #tpu.memory_space<vmem>>, vector<4x32xf32>,
    %c0_154 = arith.constant 0 : index
    %c6 = arith.constant 6 : index
    %c0_155 = arith.constant 0 : index
    %c0_156 = arith.constant 0 : index
    %238 = vector.load %arg1[%c0_154, %c6, %c0_155, %c0_156] : memref<4x8x4x32xf32, #tpu.memory_space<vmem>>, vector<1x1x4x32xf32>
    %239 = vector.shape_cast %238 : vector<1x1x4x32xf32> to vector<4x32xf32>
    %cst_157 = arith.constant dense<0.000000e+00> : vector<4x32xf32>
    %240 = tpu.matmul %236, %3, %cst_157 {dimension_numbers = #tpu.dot_dimension_numbers<[1], [0], [0], [1], [0, 0, 1, 1], [], []>} : vector<4x32xf32>, vector<32x32xf32>, vector<4x32xf32> -> vector<4x32xf32>
    %241 = arith.addf %239, %240 : vector<4x32xf32>
    %c1_158 = arith.constant 1 : index
    %c6_159 = arith.constant 6 : index
    %c0_160 = arith.constant 0 : index
    %c0_161 = arith.constant 0 : index
    %242 = vector.load %arg1[%c1_158, %c6_159, %c0_160, %c0_161] : memref<4x8x4x32xf32, #tpu.memory_space<vmem>>, vector<1x1x4x32xf32>
    %243 = vector.shape_cast %242 : vector<1x1x4x32xf32> to vector<4x32xf32>
    %cst_162 = arith.constant dense<0.000000e+00> : vector<4x32xf32>
    %244 = tpu.matmul %236, %5, %cst_162 {dimension_numbers = #tpu.dot_dimension_numbers<[1], [0], [0], [1], [0, 0, 1, 1], [], []>} : vector<4x32xf32>, vector<32x32xf32>, vector<4x32xf32> -> vector<4x32xf32>
    %245 = arith.addf %243, %244 : vector<4x32xf32>
    %c2_163 = arith.constant 2 : index
    %c6_164 = arith.constant 6 : index
    %c0_165 = arith.constant 0 : index
    %c0_166 = arith.constant 0 : index
    %246 = vector.load %arg1[%c2_163, %c6_164, %c0_165, %c0_166] : memref<4x8x4x32xf32, #tpu.memory_space<vmem>>, vector<1x1x4x32xf32>
    %247 = vector.shape_cast %246 : vector<1x1x4x32xf32> to vector<4x32xf32>
    %cst_167 = arith.constant dense<0.000000e+00> : vector<4x32xf32>
    %248 = tpu.matmul %236, %7, %cst_167 {dimension_numbers = #tpu.dot_dimension_numbers<[1], [0], [0], [1], [0, 0, 1, 1], [], []>} : vector<4x32xf32>, vector<32x32xf32>, vector<4x32xf32> -> vector<4x32xf32>
    %249 = arith.addf %247, %248 : vector<4x32xf32>
    %c3_168 = arith.constant 3 : index
    %c6_169 = arith.constant 6 : index
    %c0_170 = arith.constant 0 : index
    %c0_171 = arith.constant 0 : index
    %250 = vector.load %arg1[%c3_168, %c6_169, %c0_170, %c0_171] : memref<4x8x4x32xf32, #tpu.memory_space<vmem>>, vector<1x1x4x32xf32>
    %251 = vector.shape_cast %250 : vector<1x1x4x32xf32> to vector<4x32xf32>
    %cst_172 = arith.constant dense<0.000000e+00> : vector<4x32xf32>
    %252 = tpu.matmul %236, %9, %cst_172 {dimension_numbers = #tpu.dot_dimension_numbers<[1], [0], [0], [1], [0, 0, 1, 1], [], []>} : vector<4x32xf32>, vector<32x32xf32>, vector<4x32xf32> -> vector<4x32xf32>
    %253 = arith.addf %251, %252 : vector<4x32xf32>
    %254 = arith.negf %241 : vector<4x32xf32>
    %255 = math.exp %254 : vector<4x32xf32>
    %cst_173 = arith.constant 1.000000e+00 : f32
    %256 = vector.broadcast %cst_173 : f32 to vector<4x32xf32>
    %257 = arith.addf %256, %255 : vector<4x32xf32>
    %258 = arith.divf %256, %257 : vector<4x32xf32>
    %259 = arith.negf %245 : vector<4x32xf32>
    %260 = math.exp %259 : vector<4x32xf32>
    %cst_174 = arith.constant 1.000000e+00 : f32
    %261 = vector.broadcast %cst_174 : f32 to vector<4x32xf32>
    %262 = arith.addf %261, %260 : vector<4x32xf32>
    %263 = arith.divf %261, %262 : vector<4x32xf32>
    %264 = math.tanh %249 : vector<4x32xf32>
    %265 = arith.negf %253 : vector<4x32xf32>
    %266 = math.exp %265 : vector<4x32xf32>
    %cst_175 = arith.constant 1.000000e+00 : f32
    %267 = vector.broadcast %cst_175 : f32 to vector<4x32xf32>
    %268 = arith.addf %267, %266 : vector<4x32xf32>
    %269 = arith.divf %267, %268 : vector<4x32xf32>
    %270 = arith.mulf %263, %234 : vector<4x32xf32>
    %271 = arith.mulf %258, %264 : vector<4x32xf32>
    %272 = arith.addf %270, %271 : vector<4x32xf32>
    %273 = math.tanh %272 : vector<4x32xf32>
    %274 = arith.mulf %269, %273 : vector<4x32xf32>
    %c0_176 = arith.constant 0 : index
    %c192 = arith.constant 192 : index
    %275 = vector.load %arg8[%c0_176, %c192] : memref<4x256xf32, #tpu.memory_space<vmem>>, vector<4x32xf32>
    tpu.vector_store %arg8[%c0_176, %c192], %274 {strides = array<i32>} : memref<4x256xf32, #tpu.memory_space<vmem>>, vector<4x32xf32>,
    %c0_177 = arith.constant 0 : index
    %c7 = arith.constant 7 : index
    %c0_178 = arith.constant 0 : index
    %c0_179 = arith.constant 0 : index
    %276 = vector.load %arg1[%c0_177, %c7, %c0_178, %c0_179] : memref<4x8x4x32xf32, #tpu.memory_space<vmem>>, vector<1x1x4x32xf32>
    %277 = vector.shape_cast %276 : vector<1x1x4x32xf32> to vector<4x32xf32>
    %cst_180 = arith.constant dense<0.000000e+00> : vector<4x32xf32>
    %278 = tpu.matmul %274, %3, %cst_180 {dimension_numbers = #tpu.dot_dimension_numbers<[1], [0], [0], [1], [0, 0, 1, 1], [], []>} : vector<4x32xf32>, vector<32x32xf32>, vector<4x32xf32> -> vector<4x32xf32>
    %279 = arith.addf %277, %278 : vector<4x32xf32>
    %c1_181 = arith.constant 1 : index
    %c7_182 = arith.constant 7 : index
    %c0_183 = arith.constant 0 : index
    %c0_184 = arith.constant 0 : index
    %280 = vector.load %arg1[%c1_181, %c7_182, %c0_183, %c0_184] : memref<4x8x4x32xf32, #tpu.memory_space<vmem>>, vector<1x1x4x32xf32>
    %281 = vector.shape_cast %280 : vector<1x1x4x32xf32> to vector<4x32xf32>
    %cst_185 = arith.constant dense<0.000000e+00> : vector<4x32xf32>
    %282 = tpu.matmul %274, %5, %cst_185 {dimension_numbers = #tpu.dot_dimension_numbers<[1], [0], [0], [1], [0, 0, 1, 1], [], []>} : vector<4x32xf32>, vector<32x32xf32>, vector<4x32xf32> -> vector<4x32xf32>
    %283 = arith.addf %281, %282 : vector<4x32xf32>
    %c2_186 = arith.constant 2 : index
    %c7_187 = arith.constant 7 : index
    %c0_188 = arith.constant 0 : index
    %c0_189 = arith.constant 0 : index
    %284 = vector.load %arg1[%c2_186, %c7_187, %c0_188, %c0_189] : memref<4x8x4x32xf32, #tpu.memory_space<vmem>>, vector<1x1x4x32xf32>
    %285 = vector.shape_cast %284 : vector<1x1x4x32xf32> to vector<4x32xf32>
    %cst_190 = arith.constant dense<0.000000e+00> : vector<4x32xf32>
    %286 = tpu.matmul %274, %7, %cst_190 {dimension_numbers = #tpu.dot_dimension_numbers<[1], [0], [0], [1], [0, 0, 1, 1], [], []>} : vector<4x32xf32>, vector<32x32xf32>, vector<4x32xf32> -> vector<4x32xf32>
    %287 = arith.addf %285, %286 : vector<4x32xf32>
    %c3_191 = arith.constant 3 : index
    %c7_192 = arith.constant 7 : index
    %c0_193 = arith.constant 0 : index
    %c0_194 = arith.constant 0 : index
    %288 = vector.load %arg1[%c3_191, %c7_192, %c0_193, %c0_194] : memref<4x8x4x32xf32, #tpu.memory_space<vmem>>, vector<1x1x4x32xf32>
    %289 = vector.shape_cast %288 : vector<1x1x4x32xf32> to vector<4x32xf32>
    %cst_195 = arith.constant dense<0.000000e+00> : vector<4x32xf32>
    %290 = tpu.matmul %274, %9, %cst_195 {dimension_numbers = #tpu.dot_dimension_numbers<[1], [0], [0], [1], [0, 0, 1, 1], [], []>} : vector<4x32xf32>, vector<32x32xf32>, vector<4x32xf32> -> vector<4x32xf32>
    %291 = arith.addf %289, %290 : vector<4x32xf32>
    %292 = arith.negf %279 : vector<4x32xf32>
    %293 = math.exp %292 : vector<4x32xf32>
    %cst_196 = arith.constant 1.000000e+00 : f32
    %294 = vector.broadcast %cst_196 : f32 to vector<4x32xf32>
    %295 = arith.addf %294, %293 : vector<4x32xf32>
    %296 = arith.divf %294, %295 : vector<4x32xf32>
    %297 = arith.negf %283 : vector<4x32xf32>
    %298 = math.exp %297 : vector<4x32xf32>
    %cst_197 = arith.constant 1.000000e+00 : f32
    %299 = vector.broadcast %cst_197 : f32 to vector<4x32xf32>
    %300 = arith.addf %299, %298 : vector<4x32xf32>
    %301 = arith.divf %299, %300 : vector<4x32xf32>
    %302 = math.tanh %287 : vector<4x32xf32>
    %303 = arith.negf %291 : vector<4x32xf32>
    %304 = math.exp %303 : vector<4x32xf32>
    %cst_198 = arith.constant 1.000000e+00 : f32
    %305 = vector.broadcast %cst_198 : f32 to vector<4x32xf32>
    %306 = arith.addf %305, %304 : vector<4x32xf32>
    %307 = arith.divf %305, %306 : vector<4x32xf32>
    %308 = arith.mulf %301, %272 : vector<4x32xf32>
    %309 = arith.mulf %296, %302 : vector<4x32xf32>
    %310 = arith.addf %308, %309 : vector<4x32xf32>
    %311 = math.tanh %310 : vector<4x32xf32>
    %312 = arith.mulf %307, %311 : vector<4x32xf32>
    %c0_199 = arith.constant 0 : index
    %c224 = arith.constant 224 : index
    %313 = vector.load %arg8[%c0_199, %c224] : memref<4x256xf32, #tpu.memory_space<vmem>>, vector<4x32xf32>
    tpu.vector_store %arg8[%c0_199, %c224], %312 {strides = array<i32>} : memref<4x256xf32, #tpu.memory_space<vmem>>, vector<4x32xf32>,
    %c0_200 = arith.constant 0 : index
    %c0_201 = arith.constant 0 : index
    %314 = vector.load %arg8[%c0_200, %c0_201] : memref<4x256xf32, #tpu.memory_space<vmem>>, vector<4x256xf32>
    %c0_202 = arith.constant 0 : index
    %c0_203 = arith.constant 0 : index
    %315 = vector.load %arg5[%c0_202, %c0_203] : memref<256x4xf32, #tpu.memory_space<vmem>>, vector<256x4xf32>
    %cst_204 = arith.constant dense<0.000000e+00> : vector<4x4xf32>
    %316 = tpu.matmul %314, %315, %cst_204 {dimension_numbers = #tpu.dot_dimension_numbers<[1], [0], [0], [1], [0, 0, 1, 1], [], []>} : vector<4x256xf32>, vector<256x4xf32>, vector<4x4xf32> -> vector<4x4xf32>
    %c0_205 = arith.constant 0 : index
    %c0_206 = arith.constant 0 : index
    %317 = vector.load %arg6[%c0_205, %c0_206] : memref<1x4xf32, #tpu.memory_space<vmem>>, vector<1x4xf32>
    %318 = vector.broadcast %317 : vector<1x4xf32> to vector<4x4xf32>
    %319 = arith.addf %316, %318 : vector<4x4xf32>
    %c0_207 = arith.constant 0 : index
    %c0_208 = arith.constant 0 : index
    %320 = vector.load %arg7[%c0_207, %c0_208] : memref<4x4xf32, #tpu.memory_space<vmem>>, vector<4x4xf32>
    tpu.vector_store %arg7[%c0_207, %c0_208], %319 {strides = array<i32>} : memref<4x4xf32, #tpu.memory_space<vmem>>, vector<4x4xf32>,
    return
  }
  func.func @transform_0(%arg0: i32) -> (i32, i32, i32, i32) {
    %c0_i32 = arith.constant 0 : i32
    %c0_i32_0 = arith.constant 0 : i32
    %c0_i32_1 = arith.constant 0 : i32
    %c0_i32_2 = arith.constant 0 : i32
    %c0_i32_3 = arith.constant 0 : i32
    return %c0_i32, %c0_i32_0, %c0_i32_1, %c0_i32_2 : i32, i32, i32, i32
  }
  func.func @transform_1(%arg0: i32) -> (i32, i32, i32) {
    %c0_i32 = arith.constant 0 : i32
    %c0_i32_0 = arith.constant 0 : i32
    %c0_i32_1 = arith.constant 0 : i32
    %c0_i32_2 = arith.constant 0 : i32
    return %c0_i32, %c0_i32_0, %c0_i32_1 : i32, i32, i32
  }
  func.func @transform_2(%arg0: i32) -> (i32, i32) {
    %c0_i32 = arith.constant 0 : i32
    %c0_i32_0 = arith.constant 0 : i32
    %c0_i32_1 = arith.constant 0 : i32
    return %c0_i32, %c0_i32_0 : i32, i32
  }
  func.func @transform_3(%arg0: i32) -> (i32, i32) {
    %c0_i32 = arith.constant 0 : i32
    %c0_i32_0 = arith.constant 0 : i32
    %c0_i32_1 = arith.constant 0 : i32
    return %c0_i32, %c0_i32_0 : i32, i32
  }
  func.func @transform_4(%arg0: i32) -> (i32, i32) {
    %c0_i32 = arith.constant 0 : i32
    %c0_i32_0 = arith.constant 0 : i32
    %c0_i32_1 = arith.constant 0 : i32
    return %c0_i32, %c0_i32_0 : i32, i32
  }
  func.func @transform_5(%arg0: i32) -> (i32, i32) {
    %c0_i32 = arith.constant 0 : i32
    %c0_i32_0 = arith.constant 0 : i32
    %c0_i32_1 = arith.constant 0 : i32
    return %c0_i32, %c0_i32_0 : i32, i32
  }
  func.func @transform_6(%arg0: i32) -> (i32, i32) {
    %c0_i32 = arith.constant 0 : i32
    %c0_i32_0 = arith.constant 0 : i32
    %c0_i32_1 = arith.constant 0 : i32
    return %c0_i32, %c0_i32_0 : i32, i32
  }
}

</mosaic_0001>

<llo_original>
// kernel: tpu_custom_call.1
$region0: #{tpu_custom_call.1}
  #allocation0 [shape = 'u32[]', space=smem, size = 0x4, offset = 0x4, fixed_abs, tag = 'smem constant byte address 0x4 - core index']
  #allocation1 [shape = 'u32[144,128]{1,0:T(1,128)}', space=vmem, size = 0x12000, scoped, tag = 'internal scratch']
  #allocation2 [shape = 'f32[4,256]{1,0:T(4,128)}', space=vmem, size = 0x1000, scoped, tag = 'scratch operand']
  %s0 = inlined_call_operand.vmem [shape: f32[4,8,4,32], index: 0, kind: input, shape index: {}]
  %s1 = inlined_call_operand.vmem [shape: f32[4,32,32], index: 1, kind: input, shape index: {}]
  %s2 = inlined_call_operand.vmem [shape: f32[4,32], index: 2, kind: input, shape index: {}]
  %s3 = inlined_call_operand.vmem [shape: f32[4,32], index: 3, kind: input, shape index: {}]
  %s4 = inlined_call_operand.vmem [shape: f32[256,4], index: 4, kind: input, shape index: {}]
  %s5 = inlined_call_operand.vmem [shape: f32[1,4], index: 5, kind: input, shape index: {}]
  %s6 = inlined_call_operand.hbm [shape: f32[4,4], index: 6, kind: output, shape index: {}]
  %s7 = sld [smem:[#allocation0]]
  $region34: #{tpu_custom_call.1} parent=0
    _
  %s9 = ssub.s32 1, %s7
  %s10 = scalar_select 0, %s9, %s7
  $region1: #{tpu_custom_call.1} parent=0
    #allocation3 [shape = 'u8[2048]{0}', space=vmem, size = 0x800, scoped, tag = 'output window, operand 0, single buffered']
    #allocation4 [shape = 's32[1]{0}', space=sflag, size = 0x4, scoped, tag = 'scoped memory for tpu_custom_call.1']
    %11 = vsyncpa [#allocation4], 0
    // Predicated region
    $region2: #{tpu_custom_call.1} parent=1 // pred_check
      _
    $region3: #{tpu_custom_call.1} parent=1 // pred_check_branch
      %13 = sbr.rel (0) target = $region5
    $region4: #{tpu_custom_call.1} parent=1 // pred_region
      _
    $region5: #{tpu_custom_call.1} parent=1 // pred_fallthru
      _
    // Predicated region
    $region6: #{tpu_custom_call.1} parent=1 // pred_check
      _
    $region7: #{tpu_custom_call.1} parent=1 // pred_check_branch
      %15 = sbr.rel (0) target = $region9
    $region8: #{tpu_custom_call.1} parent=1 // pred_region
      _
    $region9: #{tpu_custom_call.1} parent=1 // pred_fallthru
      _
    // Predicated region
    $region10: #{tpu_custom_call.1} parent=1 // pred_check
      _
    $region11: #{tpu_custom_call.1} parent=1 // pred_check_branch
      %17 = sbr.rel (0) target = $region13
    $region12: #{tpu_custom_call.1} parent=1 // pred_region
      _
    $region13: #{tpu_custom_call.1} parent=1 // pred_fallthru
      _
    // Predicated region
    $region14: #{tpu_custom_call.1} parent=1 // pred_check
      _
    $region15: #{tpu_custom_call.1} parent=1 // pred_check_branch
      %19 = sbr.rel (0) target = $region17
    $region16: #{tpu_custom_call.1} parent=1 // pred_region
      _
    $region17: #{tpu_custom_call.1} parent=1 // pred_fallthru
      _
    // Predicated region
    $region18: #{tpu_custom_call.1} parent=1 // pred_check
      _
    $region19: #{tpu_custom_call.1} parent=1 // pred_check_branch
      %21 = sbr.rel (0) target = $region21
    $region20: #{tpu_custom_call.1} parent=1 // pred_region
      _
    $region21: #{tpu_custom_call.1} parent=1 // pred_fallthru
      _
    // Predicated region
    $region22: #{tpu_custom_call.1} parent=1 // pred_check
      _
    $region23: #{tpu_custom_call.1} parent=1 // pred_check_branch
      %23 = sbr.rel (0) target = $region25
    $region24: #{tpu_custom_call.1} parent=1 // pred_region
      _
    $region25: #{tpu_custom_call.1} parent=1 // pred_fallthru
      _
    %v24 = vld [vmem:[%s2] sm:$0xf]
    %v25 = vld [vmem:[%s3] sm:$0xf]
    %v26 = vld [vmem:[%s1] sm:$0xff]
    %v27 = vld [vmem:[%s1 + $0x8] sm:$0xff]
    %v28 = vld [vmem:[%s1 + $0x10] sm:$0xff]
    %v29 = vld [vmem:[%s1 + $0x18] sm:$0xff]
    %s30 = scalar_lea.vmem %s1, 32
    %v31 = vld [vmem:[%s30] sm:$0xff]
    %v32 = vld [vmem:[%s30 + $0x8] sm:$0xff]
    %v33 = vld [vmem:[%s30 + $0x10] sm:$0xff]
    %v34 = vld [vmem:[%s30 + $0x18] sm:$0xff]
    %s35 = scalar_lea.vmem %s1, 64
    %v36 = vld [vmem:[%s35] sm:$0xff]
    %v37 = vld [vmem:[%s35 + $0x8] sm:$0xff]
    %v38 = vld [vmem:[%s35 + $0x10] sm:$0xff]
    %v39 = vld [vmem:[%s35 + $0x18] sm:$0xff]
    %s40 = scalar_lea.vmem %s1, 96
    %v41 = vld [vmem:[%s40] sm:$0xff]
    %v42 = vld [vmem:[%s40 + $0x8] sm:$0xff]
    %v43 = vld [vmem:[%s40 + $0x10] sm:$0xff]
    %v44 = vld [vmem:[%s40 + $0x18] sm:$0xff]
    %v45 = vld [vmem:[%s0] sm:$0xf]
    %vm46 = vcmask 261120
    %v48 = vsel %vm46, %v24, 0
    %50 = vmatprep.subr.mxu0 0.0
    %51 = vmatpush1.msra.mxu0 0.0
    %52 = vmatprep.subr.mxu0 0.0
    %53 = vmatpush1.msra.mxu0 0.0
    %54 = vmatprep.subr.mxu0 0.0
    %55 = vmatpush1.msra.mxu0 0.0
    %56 = vmatprep.subr.mxu0 0.0
    %57 = vmatpush1.msra.mxu0 0.0
    %58 = vmatprep.subr.mxu0 0.0
    %59 = vmatpush1.msra.mxu0 0.0
    %60 = vmatprep.subr.mxu0 0.0
    %61 = vmatpush1.msra.mxu0 0.0
    %62 = vmatprep.subr.mxu0 0.0
    %63 = vmatpush1.msra.mxu0 0.0
    %64 = vmatprep.subr.mxu0 0.0
    %65 = vmatpush1.msra.mxu0 0.0
    %66 = vmatprep.subr.mxu0 0.0
    %67 = vmatpush1.msra.mxu0 0.0
    %68 = vmatprep.subr.mxu0 0.0
    %69 = vmatpush1.msra.mxu0 0.0
    %70 = vmatprep.subr.mxu0 0.0
    %71 = vmatpush1.msra.mxu0 0.0
    %72 = vmatprep.subr.mxu0 0.0
    %73 = vmatpush1.msra.mxu0 0.0
    %74 = vmatprep.subr.mxu0 0.0
    %75 = vmatpush1.msra.mxu0 %v29
    %76 = vmatprep.subr.mxu0 0.0
    %77 = vmatpush1.msra.mxu0 %v28
    %78 = vmatprep.subr.mxu0 0.0
    %79 = vmatpush1.msra.mxu0 %v27
    %80 = vmatprep.subr.mxu0 0.0
    %81 = vmatpush1.msra.mxu0 %v26
    %82 = vmatprep.subr.mxu0 0.0
    %83 = vmatpush2.msra.mxu0 0.0
    %84 = vmatprep.subr.mxu0 0.0
    %85 = vmatpush2.msra.mxu0 0.0
    %86 = vmatprep.subr.mxu0 0.0
    %87 = vmatpush2.msra.mxu0 0.0
    %88 = vmatprep.subr.mxu0 0.0
    %89 = vmatpush2.msra.mxu0 0.0
    %90 = vmatprep.subr.mxu0 0.0
    %91 = vmatpush2.msra.mxu0 0.0
    %92 = vmatprep.subr.mxu0 0.0
    %93 = vmatpush2.msra.mxu0 0.0
    %94 = vmatprep.subr.mxu0 0.0
    %95 = vmatpush2.msra.mxu0 0.0
    %96 = vmatprep.subr.mxu0 0.0
    %97 = vmatpush2.msra.mxu0 0.0
    %98 = vmatprep.subr.mxu0 0.0
    %99 = vmatpush2.msra.mxu0 0.0
    %100 = vmatprep.subr.mxu0 0.0
    %101 = vmatpush2.msra.mxu0 0.0
    %102 = vmatprep.subr.mxu0 0.0
    %103 = vmatpush2.msra.mxu0 0.0
    %104 = vmatprep.subr.mxu0 0.0
    %105 = vmatpush2.msra.mxu0 0.0
    %106 = vmatprep.subr.mxu0 0.0
    %107 = vmatpush2.msra.mxu0 0.0
    %108 = vmatprep.subr.mxu0 0.0
    %109 = vmatpush2.msra.mxu0 0.0
    %110 = vmatprep.subr.mxu0 0.0
    %111 = vmatpush2.msra.mxu0 0.0
    %112 = vmatprep.subr.mxu0 0.0
    %113 = vmatpush2.msra.mxu0 0.0
    %114 = vmatprep.mubr.f32.mxu0 0.0
    %115 = vmatmul.mubr.f32.gmra.mxu0 %v48
    %v116 = vpop.f32.mrf.mxu0
    %v117 = vadd.f32 0.0, %v116
    %v118 = vpop.f32.mrf.mxu0
    %119 = vdwg.mxu0
    %v120 = vadd.f32 %v45, %v117
    %s121 = scalar_lea.vmem %s0, 32
    %v122 = vld [vmem:[%s121] sm:$0xf]
    %123 = vmatprep.subr.mxu0 0.0
    %124 = vmatpush1.msra.mxu0 0.0
    %125 = vmatprep.subr.mxu0 0.0
    %126 = vmatpush1.msra.mxu0 0.0
    %127 = vmatprep.subr.mxu0 0.0
    %128 = vmatpush1.msra.mxu0 0.0
    %129 = vmatprep.subr.mxu0 0.0
    %130 = vmatpush1.msra.mxu0 0.0
    %131 = vmatprep.subr.mxu0 0.0
    %132 = vmatpush1.msra.mxu0 0.0
    %133 = vmatprep.subr.mxu0 0.0
    %134 = vmatpush1.msra.mxu0 0.0
    %135 = vmatprep.subr.mxu0 0.0
    %136 = vmatpush1.msra.mxu0 0.0
    %137 = vmatprep.subr.mxu0 0.0
    %138 = vmatpush1.msra.mxu0 0.0
    %139 = vmatprep.subr.mxu0 0.0
    %140 = vmatpush1.msra.mxu0 0.0
    %141 = vmatprep.subr.mxu0 0.0
    %142 = vmatpush1.msra.mxu0 0.0
    %143 = vmatprep.subr.mxu0 0.0
    %144 = vmatpush1.msra.mxu0 0.0
    %145 = vmatprep.subr.mxu0 0.0
    %146 = vmatpush1.msra.mxu0 0.0
    %147 = vmatprep.subr.mxu0 0.0
    %148 = vmatpush1.msra.mxu0 %v34
    %149 = vmatprep.subr.mxu0 0.0
    %150 = vmatpush1.msra.mxu0 %v33
    %151 = vmatprep.subr.mxu0 0.0
    %152 = vmatpush1.msra.mxu0 %v32
    %153 = vmatprep.subr.mxu0 0.0
    %154 = vmatpush1.msra.mxu0 %v31
    %155 = vmatprep.subr.mxu0 0.0
    %156 = vmatpush2.msra.mxu0 0.0
    %157 = vmatprep.subr.mxu0 0.0
    %158 = vmatpush2.msra.mxu0 0.0
    %159 = vmatprep.subr.mxu0 0.0
    %160 = vmatpush2.msra.mxu0 0.0
    %161 = vmatprep.subr.mxu0 0.0
    %162 = vmatpush2.msra.mxu0 0.0
    %163 = vmatprep.subr.mxu0 0.0
    %164 = vmatpush2.msra.mxu0 0.0
    %165 = vmatprep.subr.mxu0 0.0
    %166 = vmatpush2.msra.mxu0 0.0
    %167 = vmatprep.subr.mxu0 0.0
    %168 = vmatpush2.msra.mxu0 0.0
    %169 = vmatprep.subr.mxu0 0.0
    %170 = vmatpush2.msra.mxu0 0.0
    %171 = vmatprep.subr.mxu0 0.0
    %172 = vmatpush2.msra.mxu0 0.0
    %173 = vmatprep.subr.mxu0 0.0
    %174 = vmatpush2.msra.mxu0 0.0
    %175 = vmatprep.subr.mxu0 0.0
    %176 = vmatpush2.msra.mxu0 0.0
    %177 = vmatprep.subr.mxu0 0.0
    %178 = vmatpush2.msra.mxu0 0.0
    %179 = vmatprep.subr.mxu0 0.0
    %180 = vmatpush2.msra.mxu0 0.0
    %181 = vmatprep.subr.mxu0 0.0
    %182 = vmatpush2.msra.mxu0 0.0
    %183 = vmatprep.subr.mxu0 0.0
    %184 = vmatpush2.msra.mxu0 0.0
    %185 = vmatprep.subr.mxu0 0.0
    %186 = vmatpush2.msra.mxu0 0.0
    %187 = vmatprep.mubr.f32.mxu0 0.0
    %188 = vmatmul.mubr.f32.gmra.mxu0 %v48
    %v189 = vpop.f32.mrf.mxu0
    %v190 = vadd.f32 0.0, %v189
    %v191 = vpop.f32.mrf.mxu0
    %192 = vdwg.mxu0
    %v193 = vadd.f32 %v122, %v190
    %s194 = scalar_lea.vmem %s0, 64
    %v195 = vld [vmem:[%s194] sm:$0xf]
    %196 = vmatprep.subr.mxu0 0.0
    %197 = vmatpush1.msra.mxu0 0.0
    %198 = vmatprep.subr.mxu0 0.0
    %199 = vmatpush1.msra.mxu0 0.0
    %200 = vmatprep.subr.mxu0 0.0
    %201 = vmatpush1.msra.mxu0 0.0
    %202 = vmatprep.subr.mxu0 0.0
    %203 = vmatpush1.msra.mxu0 0.0
    %204 = vmatprep.subr.mxu0 0.0
    %205 = vmatpush1.msra.mxu0 0.0
    %206 = vmatprep.subr.mxu0 0.0
    %207 = vmatpush1.msra.mxu0 0.0
    %208 = vmatprep.subr.mxu0 0.0
    %209 = vmatpush1.msra.mxu0 0.0
    %210 = vmatprep.subr.mxu0 0.0
    %211 = vmatpush1.msra.mxu0 0.0
    %212 = vmatprep.subr.mxu0 0.0
    %213 = vmatpush1.msra.mxu0 0.0
    %214 = vmatprep.subr.mxu0 0.0
    %215 = vmatpush1.msra.mxu0 0.0
    %216 = vmatprep.subr.mxu0 0.0
    %217 = vmatpush1.msra.mxu0 0.0
    %218 = vmatprep.subr.mxu0 0.0
    %219 = vmatpush1.msra.mxu0 0.0
    %220 = vmatprep.subr.mxu0 0.0
    %221 = vmatpush1.msra.mxu0 %v39
    %222 = vmatprep.subr.mxu0 0.0
    %223 = vmatpush1.msra.mxu0 %v38
    %224 = vmatprep.subr.mxu0 0.0
    %225 = vmatpush1.msra.mxu0 %v37
    %226 = vmatprep.subr.mxu0 0.0
    %227 = vmatpush1.msra.mxu0 %v36
    %228 = vmatprep.subr.mxu0 0.0
    %229 = vmatpush2.msra.mxu0 0.0
    %230 = vmatprep.subr.mxu0 0.0
    %231 = vmatpush2.msra.mxu0 0.0
    %232 = vmatprep.subr.mxu0 0.0
    %233 = vmatpush2.msra.mxu0 0.0
    %234 = vmatprep.subr.mxu0 0.0
    %235 = vmatpush2.msra.mxu0 0.0
    %236 = vmatprep.subr.mxu0 0.0
    %237 = vmatpush2.msra.mxu0 0.0
    %238 = vmatprep.subr.mxu0 0.0
    %239 = vmatpush2.msra.mxu0 0.0
    %240 = vmatprep.subr.mxu0 0.0
    %241 = vmatpush2.msra.mxu0 0.0
    %242 = vmatprep.subr.mxu0 0.0
    %243 = vmatpush2.msra.mxu0 0.0
    %244 = vmatprep.subr.mxu0 0.0
    %245 = vmatpush2.msra.mxu0 0.0
    %246 = vmatprep.subr.mxu0 0.0
    %247 = vmatpush2.msra.mxu0 0.0
    %248 = vmatprep.subr.mxu0 0.0
    %249 = vmatpush2.msra.mxu0 0.0
    %250 = vmatprep.subr.mxu0 0.0
    %251 = vmatpush2.msra.mxu0 0.0
    %252 = vmatprep.subr.mxu0 0.0
    %253 = vmatpush2.msra.mxu0 0.0
    %254 = vmatprep.subr.mxu0 0.0
    %255 = vmatpush2.msra.mxu0 0.0
    %256 = vmatprep.subr.mxu0 0.0
    %257 = vmatpush2.msra.mxu0 0.0
    %258 = vmatprep.subr.mxu0 0.0
    %259 = vmatpush2.msra.mxu0 0.0
    %260 = vmatprep.mubr.f32.mxu0 0.0
    %261 = vmatmul.mubr.f32.gmra.mxu0 %v48
    %v262 = vpop.f32.mrf.mxu0
    %v263 = vadd.f32 0.0, %v262
    %v264 = vpop.f32.mrf.mxu0
    %265 = vdwg.mxu0
    %v266 = vadd.f32 %v195, %v263
    %s267 = scalar_lea.vmem %s0, 96
    %v268 = vld [vmem:[%s267] sm:$0xf]
    %269 = vmatprep.subr.mxu0 0.0
    %270 = vmatpush1.msra.mxu0 0.0
    %271 = vmatprep.subr.mxu0 0.0
    %272 = vmatpush1.msra.mxu0 0.0
    %273 = vmatprep.subr.mxu0 0.0
    %274 = vmatpush1.msra.mxu0 0.0
    %275 = vmatprep.subr.mxu0 0.0
    %276 = vmatpush1.msra.mxu0 0.0
    %277 = vmatprep.subr.mxu0 0.0
    %278 = vmatpush1.msra.mxu0 0.0
    %279 = vmatprep.subr.mxu0 0.0
    %280 = vmatpush1.msra.mxu0 0.0
    %281 = vmatprep.subr.mxu0 0.0
    %282 = vmatpush1.msra.mxu0 0.0
    %283 = vmatprep.subr.mxu0 0.0
    %284 = vmatpush1.msra.mxu0 0.0
    %285 = vmatprep.subr.mxu0 0.0
    %286 = vmatpush1.msra.mxu0 0.0
    %287 = vmatprep.subr.mxu0 0.0
    %288 = vmatpush1.msra.mxu0 0.0
    %289 = vmatprep.subr.mxu0 0.0
    %290 = vmatpush1.msra.mxu0 0.0
    %291 = vmatprep.subr.mxu0 0.0
    %292 = vmatpush1.msra.mxu0 0.0
    %293 = vmatprep.subr.mxu0 0.0
    %294 = vmatpush1.msra.mxu0 %v44
    %295 = vmatprep.subr.mxu0 0.0
    %296 = vmatpush1.msra.mxu0 %v43
    %297 = vmatprep.subr.mxu0 0.0
    %298 = vmatpush1.msra.mxu0 %v42
    %299 = vmatprep.subr.mxu0 0.0
    %300 = vmatpush1.msra.mxu0 %v41
    %301 = vmatprep.subr.mxu0 0.0
    %302 = vmatpush2.msra.mxu0 0.0
    %303 = vmatprep.subr.mxu0 0.0
    %304 = vmatpush2.msra.mxu0 0.0
    %305 = vmatprep.subr.mxu0 0.0
    %306 = vmatpush2.msra.mxu0 0.0
    %307 = vmatprep.subr.mxu0 0.0
    %308 = vmatpush2.msra.mxu0 0.0
    %309 = vmatprep.subr.mxu0 0.0
    %310 = vmatpush2.msra.mxu0 0.0
    %311 = vmatprep.subr.mxu0 0.0
    %312 = vmatpush2.msra.mxu0 0.0
    %313 = vmatprep.subr.mxu0 0.0
    %314 = vmatpush2.msra.mxu0 0.0
    %315 = vmatprep.subr.mxu0 0.0
    %316 = vmatpush2.msra.mxu0 0.0
    %317 = vmatprep.subr.mxu0 0.0
    %318 = vmatpush2.msra.mxu0 0.0
    %319 = vmatprep.subr.mxu0 0.0
    %320 = vmatpush2.msra.mxu0 0.0
    %321 = vmatprep.subr.mxu0 0.0
    %322 = vmatpush2.msra.mxu0 0.0
    %323 = vmatprep.subr.mxu0 0.0
    %324 = vmatpush2.msra.mxu0 0.0
    %325 = vmatprep.subr.mxu0 0.0
    %326 = vmatpush2.msra.mxu0 0.0
    %327 = vmatprep.subr.mxu0 0.0
    %328 = vmatpush2.msra.mxu0 0.0
    %329 = vmatprep.subr.mxu0 0.0
    %330 = vmatpush2.msra.mxu0 0.0
    %331 = vmatprep.subr.mxu0 0.0
    %332 = vmatpush2.msra.mxu0 0.0
    %333 = vmatprep.mubr.f32.mxu0 0.0
    %334 = vmatmul.mubr.f32.gmra.mxu0 %v48
    %v335 = vpop.f32.mrf.mxu0
    %v336 = vadd.f32 0.0, %v335
    %v337 = vpop.f32.mrf.mxu0
    %338 = vdwg.mxu0
    %v339 = vadd.f32 %v268, %v336
    %v340 = vxor.u32 %v120, 2147483648
    %v341 = vmul.f32 %v340, 1.442695
    %v342 = vpow.pop %v341
    %v343 = vadd.f32 %v342, 1.0
    %v344 = vrcp.pop %v343
    %v345 = vmul.f32 1.0, %v344
    %v346 = vxor.u32 %v193, 2147483648
    %v347 = vmul.f32 %v346, 1.442695
    %v348 = vpow.pop %v347
    %v349 = vadd.f32 %v348, 1.0
    %v350 = vrcp.pop %v349
    %v351 = vmul.f32 1.0, %v350
    %v352 = vtanh.pop %v266
    %v353 = vxor.u32 %v339, 2147483648
    %v354 = vmul.f32 %v353, 1.442695
    %v355 = vpow.pop %v354
    %v356 = vadd.f32 %v355, 1.0
    %v357 = vrcp.pop %v356
    %v358 = vmul.f32 1.0, %v357
    %v359 = vmul.f32 %v351, %v25
    %v360 = vmul.f32 %v345, %v352
    %v361 = vadd.f32 %v359, %v360
    %v362 = vtanh.pop %v361
    %v363 = vmul.f32 %v358, %v362
    %vm364 = vcmask 257024
    %365 = vst.msk [vmem:[#allocation2] sm:$0xf] %vm364, %v363
    %s366 = scalar_lea.vmem %s0, 4
    %v367 = vld [vmem:[%s366] sm:$0xf]
    %v369 = vsel %vm46, %v363, 0
    %371 = vmatprep.subr.mxu0 0.0
    %372 = vmatpush1.msra.mxu0 0.0
    %373 = vmatprep.subr.mxu0 0.0
    %374 = vmatpush1.msra.mxu0 0.0
    %375 = vmatprep.subr.mxu0 0.0
    %376 = vmatpush1.msra.mxu0 0.0
    %377 = vmatprep.subr.mxu0 0.0
    %378 = vmatpush1.msra.mxu0 0.0
    %379 = vmatprep.subr.mxu0 0.0
    %380 = vmatpush1.msra.mxu0 0.0
    %381 = vmatprep.subr.mxu0 0.0
    %382 = vmatpush1.msra.mxu0 0.0
    %383 = vmatprep.subr.mxu0 0.0
    %384 = vmatpush1.msra.mxu0 0.0
    %385 = vmatprep.subr.mxu0 0.0
    %386 = vmatpush1.msra.mxu0 0.0
    %387 = vmatprep.subr.mxu0 0.0
    %388 = vmatpush1.msra.mxu0 0.0
    %389 = vmatprep.subr.mxu0 0.0
    %390 = vmatpush1.msra.mxu0 0.0
    %391 = vmatprep.subr.mxu0 0.0
    %392 = vmatpush1.msra.mxu0 0.0
    %393 = vmatprep.subr.mxu0 0.0
    %394 = vmatpush1.msra.mxu0 0.0
    %395 = vmatprep.subr.mxu0 0.0
    %396 = vmatpush1.msra.mxu0 %v29
    %397 = vmatprep.subr.mxu0 0.0
    %398 = vmatpush1.msra.mxu0 %v28
    %399 = vmatprep.subr.mxu0 0.0
    %400 = vmatpush1.msra.mxu0 %v27
    %401 = vmatprep.subr.mxu0 0.0
    %402 = vmatpush1.msra.mxu0 %v26
    %403 = vmatprep.subr.mxu0 0.0
    %404 = vmatpush2.msra.mxu0 0.0
    %405 = vmatprep.subr.mxu0 0.0
    %406 = vmatpush2.msra.mxu0 0.0
    %407 = vmatprep.subr.mxu0 0.0
    %408 = vmatpush2.msra.mxu0 0.0
    %409 = vmatprep.subr.mxu0 0.0
    %410 = vmatpush2.msra.mxu0 0.0
    %411 = vmatprep.subr.mxu0 0.0
    %412 = vmatpush2.msra.mxu0 0.0
    %413 = vmatprep.subr.mxu0 0.0
    %414 = vmatpush2.msra.mxu0 0.0
    %415 = vmatprep.subr.mxu0 0.0
    %416 = vmatpush2.msra.mxu0 0.0
    %417 = vmatprep.subr.mxu0 0.0
    %418 = vmatpush2.msra.mxu0 0.0
    %419 = vmatprep.subr.mxu0 0.0
    %420 = vmatpush2.msra.mxu0 0.0
    %421 = vmatprep.subr.mxu0 0.0
    %422 = vmatpush2.msra.mxu0 0.0
    %423 = vmatprep.subr.mxu0 0.0
    %424 = vmatpush2.msra.mxu0 0.0
    %425 = vmatprep.subr.mxu0 0.0
    %426 = vmatpush2.msra.mxu0 0.0
    %427 = vmatprep.subr.mxu0 0.0
    %428 = vmatpush2.msra.mxu0 0.0
    %429 = vmatprep.subr.mxu0 0.0
    %430 = vmatpush2.msra.mxu0 0.0
    %431 = vmatprep.subr.mxu0 0.0
    %432 = vmatpush2.msra.mxu0 0.0
    %433 = vmatprep.subr.mxu0 0.0
    %434 = vmatpush2.msra.mxu0 0.0
    %435 = vmatprep.mubr.f32.mxu0 0.0
    %436 = vmatmul.mubr.f32.gmra.mxu0 %v369
    %v437 = vpop.f32.mrf.mxu0
    %v438 = vadd.f32 0.0, %v437
    %v439 = vpop.f32.mrf.mxu0
    %440 = vdwg.mxu0
    %v441 = vadd.f32 %v367, %v438
    %s442 = scalar_lea.vmem %s0, 36
    %v443 = vld [vmem:[%s442] sm:$0xf]
    %444 = vmatprep.subr.mxu0 0.0
    %445 = vmatpush1.msra.mxu0 0.0
    %446 = vmatprep.subr.mxu0 0.0
    %447 = vmatpush1.msra.mxu0 0.0
    %448 = vmatprep.subr.mxu0 0.0
    %449 = vmatpush1.msra.mxu0 0.0
    %450 = vmatprep.subr.mxu0 0.0
    %451 = vmatpush1.msra.mxu0 0.0
    %452 = vmatprep.subr.mxu0 0.0
    %453 = vmatpush1.msra.mxu0 0.0
    %454 = vmatprep.subr.mxu0 0.0
    %455 = vmatpush1.msra.mxu0 0.0
    %456 = vmatprep.subr.mxu0 0.0
    %457 = vmatpush1.msra.mxu0 0.0
    %458 = vmatprep.subr.mxu0 0.0
    %459 = vmatpush1.msra.mxu0 0.0
    %460 = vmatprep.subr.mxu0 0.0
    %461 = vmatpush1.msra.mxu0 0.0
    %462 = vmatprep.subr.mxu0 0.0
    %463 = vmatpush1.msra.mxu0 0.0
    %464 = vmatprep.subr.mxu0 0.0
    %465 = vmatpush1.msra.mxu0 0.0
    %466 = vmatprep.subr.mxu0 0.0
    %467 = vmatpush1.msra.mxu0 0.0
    %468 = vmatprep.subr.mxu0 0.0
    %469 = vmatpush1.msra.mxu0 %v34
    %470 = vmatprep.subr.mxu0 0.0
    %471 = vmatpush1.msra.mxu0 %v33
    %472 = vmatprep.subr.mxu0 0.0
    %473 = vmatpush1.msra.mxu0 %v32
    %474 = vmatprep.subr.mxu0 0.0
    %475 = vmatpush1.msra.mxu0 %v31
    %476 = vmatprep.subr.mxu0 0.0
    %477 = vmatpush2.msra.mxu0 0.0
    %478 = vmatprep.subr.mxu0 0.0
    %479 = vmatpush2.msra.mxu0 0.0
    %480 = vmatprep.subr.mxu0 0.0
    %481 = vmatpush2.msra.mxu0 0.0
    %482 = vmatprep.subr.mxu0 0.0
    %483 = vmatpush2.msra.mxu0 0.0
    %484 = vmatprep.subr.mxu0 0.0
    %485 = vmatpush2.msra.mxu0 0.0
    %486 = vmatprep.subr.mxu0 0.0
    %487 = vmatpush2.msra.mxu0 0.0
    %488 = vmatprep.subr.mxu0 0.0
    %489 = vmatpush2.msra.mxu0 0.0
    %490 = vmatprep.subr.mxu0 0.0
    %491 = vmatpush2.msra.mxu0 0.0
    %492 = vmatprep.subr.mxu0 0.0
    %493 = vmatpush2.msra.mxu0 0.0
    %494 = vmatprep.subr.mxu0 0.0
    %495 = vmatpush2.msra.mxu0 0.0
    %496 = vmatprep.subr.mxu0 0.0
    %497 = vmatpush2.msra.mxu0 0.0
    %498 = vmatprep.subr.mxu0 0.0
    %499 = vmatpush2.msra.mxu0 0.0
    %500 = vmatprep.subr.mxu0 0.0
    %501 = vmatpush2.msra.mxu0 0.0
    %502 = vmatprep.subr.mxu0 0.0
    %503 = vmatpush2.msra.mxu0 0.0
    %504 = vmatprep.subr.mxu0 0.0
    %505 = vmatpush2.msra.mxu0 0.0
    %506 = vmatprep.subr.mxu0 0.0
    %507 = vmatpush2.msra.mxu0 0.0
    %508 = vmatprep.mubr.f32.mxu0 0.0
    %509 = vmatmul.mubr.f32.gmra.mxu0 %v369
    %v510 = vpop.f32.mrf.mxu0
    %v511 = vadd.f32 0.0, %v510
    %v512 = vpop.f32.mrf.mxu0
    %513 = vdwg.mxu0
    %v514 = vadd.f32 %v443, %v511
    %s515 = scalar_lea.vmem %s0, 68
    %v516 = vld [vmem:[%s515] sm:$0xf]
    %517 = vmatprep.subr.mxu0 0.0
    %518 = vmatpush1.msra.mxu0 0.0
    %519 = vmatprep.subr.mxu0 0.0
    %520 = vmatpush1.msra.mxu0 0.0
    %521 = vmatprep.subr.mxu0 0.0
    %522 = vmatpush1.msra.mxu0 0.0
    %523 = vmatprep.subr.mxu0 0.0
    %524 = vmatpush1.msra.mxu0 0.0
    %525 = vmatprep.subr.mxu0 0.0
    %526 = vmatpush1.msra.mxu0 0.0
    %527 = vmatprep.subr.mxu0 0.0
    %528 = vmatpush1.msra.mxu0 0.0
    %529 = vmatprep.subr.mxu0 0.0
    %530 = vmatpush1.msra.mxu0 0.0
    %531 = vmatprep.subr.mxu0 0.0
    %532 = vmatpush1.msra.mxu0 0.0
    %533 = vmatprep.subr.mxu0 0.0
    %534 = vmatpush1.msra.mxu0 0.0
    %535 = vmatprep.subr.mxu0 0.0
    %536 = vmatpush1.msra.mxu0 0.0
    %537 = vmatprep.subr.mxu0 0.0
    %538 = vmatpush1.msra.mxu0 0.0
    %539 = vmatprep.subr.mxu0 0.0
    %540 = vmatpush1.msra.mxu0 0.0
    %541 = vmatprep.subr.mxu0 0.0
    %542 = vmatpush1.msra.mxu0 %v39
    %543 = vmatprep.subr.mxu0 0.0
    %544 = vmatpush1.msra.mxu0 %v38
    %545 = vmatprep.subr.mxu0 0.0
    %546 = vmatpush1.msra.mxu0 %v37
    %547 = vmatprep.subr.mxu0 0.0
    %548 = vmatpush1.msra.mxu0 %v36
    %549 = vmatprep.subr.mxu0 0.0
    %550 = vmatpush2.msra.mxu0 0.0
    %551 = vmatprep.subr.mxu0 0.0
    %552 = vmatpush2.msra.mxu0 0.0
    %553 = vmatprep.subr.mxu0 0.0
    %554 = vmatpush2.msra.mxu0 0.0
    %555 = vmatprep.subr.mxu0 0.0
    %556 = vmatpush2.msra.mxu0 0.0
    %557 = vmatprep.subr.mxu0 0.0
    %558 = vmatpush2.msra.mxu0 0.0
    %559 = vmatprep.subr.mxu0 0.0
    %560 = vmatpush2.msra.mxu0 0.0
    %561 = vmatprep.subr.mxu0 0.0
    %562 = vmatpush2.msra.mxu0 0.0
    %563 = vmatprep.subr.mxu0 0.0
    %564 = vmatpush2.msra.mxu0 0.0
    %565 = vmatprep.subr.mxu0 0.0
    %566 = vmatpush2.msra.mxu0 0.0
    %567 = vmatprep.subr.mxu0 0.0
    %568 = vmatpush2.msra.mxu0 0.0
    %569 = vmatprep.subr.mxu0 0.0
    %570 = vmatpush2.msra.mxu0 0.0
    %571 = vmatprep.subr.mxu0 0.0
    %572 = vmatpush2.msra.mxu0 0.0
    %573 = vmatprep.subr.mxu0 0.0
    %574 = vmatpush2.msra.mxu0 0.0
    %575 = vmatprep.subr.mxu0 0.0
    %576 = vmatpush2.msra.mxu0 0.0
    %577 = vmatprep.subr.mxu0 0.0
    %578 = vmatpush2.msra.mxu0 0.0
    %579 = vmatprep.subr.mxu0 0.0
    %580 = vmatpush2.msra.mxu0 0.0
    %581 = vmatprep.mubr.f32.mxu0 0.0
    %582 = vmatmul.mubr.f32.gmra.mxu0 %v369
    %v583 = vpop.f32.mrf.mxu0
    %v584 = vadd.f32 0.0, %v583
    %v585 = vpop.f32.mrf.mxu0
    %586 = vdwg.mxu0
    %v587 = vadd.f32 %v516, %v584
    %s588 = scalar_lea.vmem %s0, 100
    %v589 = vld [vmem:[%s588] sm:$0xf]
    %590 = vmatprep.subr.mxu0 0.0
    %591 = vmatpush1.msra.mxu0 0.0
    %592 = vmatprep.subr.mxu0 0.0
    %593 = vmatpush1.msra.mxu0 0.0
    %594 = vmatprep.subr.mxu0 0.0
    %595 = vmatpush1.msra.mxu0 0.0
    %596 = vmatprep.subr.mxu0 0.0
    %597 = vmatpush1.msra.mxu0 0.0
    %598 = vmatprep.subr.mxu0 0.0
    %599 = vmatpush1.msra.mxu0 0.0
    %600 = vmatprep.subr.mxu0 0.0
    %601 = vmatpush1.msra.mxu0 0.0
    %602 = vmatprep.subr.mxu0 0.0
    %603 = vmatpush1.msra.mxu0 0.0
    %604 = vmatprep.subr.mxu0 0.0
    %605 = vmatpush1.msra.mxu0 0.0
    %606 = vmatprep.subr.mxu0 0.0
    %607 = vmatpush1.msra.mxu0 0.0
    %608 = vmatprep.subr.mxu0 0.0
    %609 = vmatpush1.msra.mxu0 0.0
    %610 = vmatprep.subr.mxu0 0.0
    %611 = vmatpush1.msra.mxu0 0.0
    %612 = vmatprep.subr.mxu0 0.0
    %613 = vmatpush1.msra.mxu0 0.0
    %614 = vmatprep.subr.mxu0 0.0
    %615 = vmatpush1.msra.mxu0 %v44
    %616 = vmatprep.subr.mxu0 0.0
    %617 = vmatpush1.msra.mxu0 %v43
    %618 = vmatprep.subr.mxu0 0.0
    %619 = vmatpush1.msra.mxu0 %v42
    %620 = vmatprep.subr.mxu0 0.0
    %621 = vmatpush1.msra.mxu0 %v41
    %622 = vmatprep.subr.mxu0 0.0
    %623 = vmatpush2.msra.mxu0 0.0
    %624 = vmatprep.subr.mxu0 0.0
    %625 = vmatpush2.msra.mxu0 0.0
    %626 = vmatprep.subr.mxu0 0.0
    %627 = vmatpush2.msra.mxu0 0.0
    %628 = vmatprep.subr.mxu0 0.0
    %629 = vmatpush2.msra.mxu0 0.0
    %630 = vmatprep.subr.mxu0 0.0
    %631 = vmatpush2.msra.mxu0 0.0
    %632 = vmatprep.subr.mxu0 0.0
    %633 = vmatpush2.msra.mxu0 0.0
    %634 = vmatprep.subr.mxu0 0.0
    %635 = vmatpush2.msra.mxu0 0.0
    %636 = vmatprep.subr.mxu0 0.0
    %637 = vmatpush2.msra.mxu0 0.0
    %638 = vmatprep.subr.mxu0 0.0
    %639 = vmatpush2.msra.mxu0 0.0
    %640 = vmatprep.subr.mxu0 0.0
    %641 = vmatpush2.msra.mxu0 0.0
    %642 = vmatprep.subr.mxu0 0.0
    %643 = vmatpush2.msra.mxu0 0.0
    %644 = vmatprep.subr.mxu0 0.0
    %645 = vmatpush2.msra.mxu0 0.0
    %646 = vmatprep.subr.mxu0 0.0
    %647 = vmatpush2.msra.mxu0 0.0
    %648 = vmatprep.subr.mxu0 0.0
    %649 = vmatpush2.msra.mxu0 0.0
    %650 = vmatprep.subr.mxu0 0.0
    %651 = vmatpush2.msra.mxu0 0.0
    %652 = vmatprep.subr.mxu0 0.0
    %653 = vmatpush2.msra.mxu0 0.0
    %654 = vmatprep.mubr.f32.mxu0 0.0
    %655 = vmatmul.mubr.f32.gmra.mxu0 %v369
    %v656 = vpop.f32.mrf.mxu0
    %v657 = vadd.f32 0.0, %v656
    %v658 = vpop.f32.mrf.mxu0
    %659 = vdwg.mxu0
    %v660 = vadd.f32 %v589, %v657
    %v661 = vxor.u32 %v441, 2147483648
    %v662 = vmul.f32 %v661, 1.442695
    %v663 = vpow.pop %v662
    %v664 = vadd.f32 %v663, 1.0
    %v665 = vrcp.pop %v664
    %v666 = vmul.f32 1.0, %v665
    %v667 = vxor.u32 %v514, 2147483648
    %v668 = vmul.f32 %v667, 1.442695
    %v669 = vpow.pop %v668
    %v670 = vadd.f32 %v669, 1.0
    %v671 = vrcp.pop %v670
    %v672 = vmul.f32 1.0, %v671
    %v673 = vtanh.pop %v587
    %v674 = vxor.u32 %v660, 2147483648
    %v675 = vmul.f32 %v674, 1.442695
    %v676 = vpow.pop %v675
    %v677 = vadd.f32 %v676, 1.0
    %v678 = vrcp.pop %v677
    %v679 = vmul.f32 1.0, %v678
    %v680 = vmul.f32 %v672, %v361
    %v681 = vmul.f32 %v666, %v673
    %v682 = vadd.f32 %v680, %v681
    %v683 = vtanh.pop %v682
    %v684 = vmul.f32 %v679, %v683
    %686 = vrot.lane.b32.xlu0 %v684, 32
    %v687 = vpop.permute.xlu0 %686
    %vm689 = vcmask 519424
    %690 = vst.msk [vmem:[#allocation2] sm:$0xf] %vm689, %v687
    %s691 = scalar_lea.vmem %s0, 8
    %v692 = vld [vmem:[%s691] sm:$0xf]
    %v693 = vsel %vm46, %v684, 0
    %695 = vmatprep.subr.mxu0 0.0
    %696 = vmatpush1.msra.mxu0 0.0
    %697 = vmatprep.subr.mxu0 0.0
    %698 = vmatpush1.msra.mxu0 0.0
    %699 = vmatprep.subr.mxu0 0.0
    %700 = vmatpush1.msra.mxu0 0.0
    %701 = vmatprep.subr.mxu0 0.0
    %702 = vmatpush1.msra.mxu0 0.0
    %703 = vmatprep.subr.mxu0 0.0
    %704 = vmatpush1.msra.mxu0 0.0
    %705 = vmatprep.subr.mxu0 0.0
    %706 = vmatpush1.msra.mxu0 0.0
    %707 = vmatprep.subr.mxu0 0.0
    %708 = vmatpush1.msra.mxu0 0.0
    %709 = vmatprep.subr.mxu0 0.0
    %710 = vmatpush1.msra.mxu0 0.0
    %711 = vmatprep.subr.mxu0 0.0
    %712 = vmatpush1.msra.mxu0 0.0
    %713 = vmatprep.subr.mxu0 0.0
    %714 = vmatpush1.msra.mxu0 0.0
    %715 = vmatprep.subr.mxu0 0.0
    %716 = vmatpush1.msra.mxu0 0.0
    %717 = vmatprep.subr.mxu0 0.0
    %718 = vmatpush1.msra.mxu0 0.0
    %719 = vmatprep.subr.mxu0 0.0
    %720 = vmatpush1.msra.mxu0 %v29
    %721 = vmatprep.subr.mxu0 0.0
    %722 = vmatpush1.msra.mxu0 %v28
    %723 = vmatprep.subr.mxu0 0.0
    %724 = vmatpush1.msra.mxu0 %v27
    %725 = vmatprep.subr.mxu0 0.0
    %726 = vmatpush1.msra.mxu0 %v26
    %727 = vmatprep.subr.mxu0 0.0
    %728 = vmatpush2.msra.mxu0 0.0
    %729 = vmatprep.subr.mxu0 0.0
    %730 = vmatpush2.msra.mxu0 0.0
    %731 = vmatprep.subr.mxu0 0.0
    %732 = vmatpush2.msra.mxu0 0.0
    %733 = vmatprep.subr.mxu0 0.0
    %734 = vmatpush2.msra.mxu0 0.0
    %735 = vmatprep.subr.mxu0 0.0
    %736 = vmatpush2.msra.mxu0 0.0
    %737 = vmatprep.subr.mxu0 0.0
    %738 = vmatpush2.msra.mxu0 0.0
    %739 = vmatprep.subr.mxu0 0.0
    %740 = vmatpush2.msra.mxu0 0.0
    %741 = vmatprep.subr.mxu0 0.0
    %742 = vmatpush2.msra.mxu0 0.0
    %743 = vmatprep.subr.mxu0 0.0
    %744 = vmatpush2.msra.mxu0 0.0
    %745 = vmatprep.subr.mxu0 0.0
    %746 = vmatpush2.msra.mxu0 0.0
    %747 = vmatprep.subr.mxu0 0.0
    %748 = vmatpush2.msra.mxu0 0.0
    %749 = vmatprep.subr.mxu0 0.0
    %750 = vmatpush2.msra.mxu0 0.0
    %751 = vmatprep.subr.mxu0 0.0
    %752 = vmatpush2.msra.mxu0 0.0
    %753 = vmatprep.subr.mxu0 0.0
    %754 = vmatpush2.msra.mxu0 0.0
    %755 = vmatprep.subr.mxu0 0.0
    %756 = vmatpush2.msra.mxu0 0.0
    %757 = vmatprep.subr.mxu0 0.0
    %758 = vmatpush2.msra.mxu0 0.0
    %759 = vmatprep.mubr.f32.mxu0 0.0
    %760 = vmatmul.mubr.f32.gmra.mxu0 %v693
    %v761 = vpop.f32.mrf.mxu0
    %v762 = vadd.f32 0.0, %v761
    %v763 = vpop.f32.mrf.mxu0
    %764 = vdwg.mxu0
    %v765 = vadd.f32 %v692, %v762
    %s766 = scalar_lea.vmem %s0, 40
    %v767 = vld [vmem:[%s766] sm:$0xf]
    %768 = vmatprep.subr.mxu0 0.0
    %769 = vmatpush1.msra.mxu0 0.0
    %770 = vmatprep.subr.mxu0 0.0
    %771 = vmatpush1.msra.mxu0 0.0
    %772 = vmatprep.subr.mxu0 0.0
    %773 = vmatpush1.msra.mxu0 0.0
    %774 = vmatprep.subr.mxu0 0.0
    %775 = vmatpush1.msra.mxu0 0.0
    %776 = vmatprep.subr.mxu0 0.0
    %777 = vmatpush1.msra.mxu0 0.0
    %778 = vmatprep.subr.mxu0 0.0
    %779 = vmatpush1.msra.mxu0 0.0
    %780 = vmatprep.subr.mxu0 0.0
    %781 = vmatpush1.msra.mxu0 0.0
    %782 = vmatprep.subr.mxu0 0.0
    %783 = vmatpush1.msra.mxu0 0.0
    %784 = vmatprep.subr.mxu0 0.0
    %785 = vmatpush1.msra.mxu0 0.0
    %786 = vmatprep.subr.mxu0 0.0
    %787 = vmatpush1.msra.mxu0 0.0
    %788 = vmatprep.subr.mxu0 0.0
    %789 = vmatpush1.msra.mxu0 0.0
    %790 = vmatprep.subr.mxu0 0.0
    %791 = vmatpush1.msra.mxu0 0.0
    %792 = vmatprep.subr.mxu0 0.0
    %793 = vmatpush1.msra.mxu0 %v34
    %794 = vmatprep.subr.mxu0 0.0
    %795 = vmatpush1.msra.mxu0 %v33
    %796 = vmatprep.subr.mxu0 0.0
    %797 = vmatpush1.msra.mxu0 %v32
    %798 = vmatprep.subr.mxu0 0.0
    %799 = vmatpush1.msra.mxu0 %v31
    %800 = vmatprep.subr.mxu0 0.0
    %801 = vmatpush2.msra.mxu0 0.0
    %802 = vmatprep.subr.mxu0 0.0
    %803 = vmatpush2.msra.mxu0 0.0
    %804 = vmatprep.subr.mxu0 0.0
    %805 = vmatpush2.msra.mxu0 0.0
    %806 = vmatprep.subr.mxu0 0.0
    %807 = vmatpush2.msra.mxu0 0.0
    %808 = vmatprep.subr.mxu0 0.0
    %809 = vmatpush2.msra.mxu0 0.0
    %810 = vmatprep.subr.mxu0 0.0
    %811 = vmatpush2.msra.mxu0 0.0
    %812 = vmatprep.subr.mxu0 0.0
    %813 = vmatpush2.msra.mxu0 0.0
    %814 = vmatprep.subr.mxu0 0.0
    %815 = vmatpush2.msra.mxu0 0.0
    %816 = vmatprep.subr.mxu0 0.0
    %817 = vmatpush2.msra.mxu0 0.0
    %818 = vmatprep.subr.mxu0 0.0
    %819 = vmatpush2.msra.mxu0 0.0
    %820 = vmatprep.subr.mxu0 0.0
    %821 = vmatpush2.msra.mxu0 0.0
    %822 = vmatprep.subr.mxu0 0.0
    %823 = vmatpush2.msra.mxu0 0.0
    %824 = vmatprep.subr.mxu0 0.0
    %825 = vmatpush2.msra.mxu0 0.0
    %826 = vmatprep.subr.mxu0 0.0
    %827 = vmatpush2.msra.mxu0 0.0
    %828 = vmatprep.subr.mxu0 0.0
    %829 = vmatpush2.msra.mxu0 0.0
    %830 = vmatprep.subr.mxu0 0.0
    %831 = vmatpush2.msra.mxu0 0.0
    %832 = vmatprep.mubr.f32.mxu0 0.0
    %833 = vmatmul.mubr.f32.gmra.mxu0 %v693
    %v834 = vpop.f32.mrf.mxu0
    %v835 = vadd.f32 0.0, %v834
    %v836 = vpop.f32.mrf.mxu0
    %837 = vdwg.mxu0
    %v838 = vadd.f32 %v767, %v835
    %s839 = scalar_lea.vmem %s0, 72
    %v840 = vld [vmem:[%s839] sm:$0xf]
    %841 = vmatprep.subr.mxu0 0.0
    %842 = vmatpush1.msra.mxu0 0.0
    %843 = vmatprep.subr.mxu0 0.0
    %844 = vmatpush1.msra.mxu0 0.0
    %845 = vmatprep.subr.mxu0 0.0
    %846 = vmatpush1.msra.mxu0 0.0
    %847 = vmatprep.subr.mxu0 0.0
    %848 = vmatpush1.msra.mxu0 0.0
    %849 = vmatprep.subr.mxu0 0.0
    %850 = vmatpush1.msra.mxu0 0.0
    %851 = vmatprep.subr.mxu0 0.0
    %852 = vmatpush1.msra.mxu0 0.0
    %853 = vmatprep.subr.mxu0 0.0
    %854 = vmatpush1.msra.mxu0 0.0
    %855 = vmatprep.subr.mxu0 0.0
    %856 = vmatpush1.msra.mxu0 0.0
    %857 = vmatprep.subr.mxu0 0.0
    %858 = vmatpush1.msra.mxu0 0.0
    %859 = vmatprep.subr.mxu0 0.0
    %860 = vmatpush1.msra.mxu0 0.0
    %861 = vmatprep.subr.mxu0 0.0
    %862 = vmatpush1.msra.mxu0 0.0
    %863 = vmatprep.subr.mxu0 0.0
    %864 = vmatpush1.msra.mxu0 0.0
    %865 = vmatprep.subr.mxu0 0.0
    %866 = vmatpush1.msra.mxu0 %v39
    %867 = vmatprep.subr.mxu0 0.0
    %868 = vmatpush1.msra.mxu0 %v38
    %869 = vmatprep.subr.mxu0 0.0
    %870 = vmatpush1.msra.mxu0 %v37
    %871 = vmatprep.subr.mxu0 0.0
    %872 = vmatpush1.msra.mxu0 %v36
    %873 = vmatprep.subr.mxu0 0.0
    %874 = vmatpush2.msra.mxu0 0.0
    %875 = vmatprep.subr.mxu0 0.0
    %876 = vmatpush2.msra.mxu0 0.0
    %877 = vmatprep.subr.mxu0 0.0
    %878 = vmatpush2.msra.mxu0 0.0
    %879 = vmatprep.subr.mxu0 0.0
    %880 = vmatpush2.msra.mxu0 0.0
    %881 = vmatprep.subr.mxu0 0.0
    %882 = vmatpush2.msra.mxu0 0.0
    %883 = vmatprep.subr.mxu0 0.0
    %884 = vmatpush2.msra.mxu0 0.0
    %885 = vmatprep.subr.mxu0 0.0
    %886 = vmatpush2.msra.mxu0 0.0
    %887 = vmatprep.subr.mxu0 0.0
    %888 = vmatpush2.msra.mxu0 0.0
    %889 = vmatprep.subr.mxu0 0.0
    %890 = vmatpush2.msra.mxu0 0.0
    %891 = vmatprep.subr.mxu0 0.0
    %892 = vmatpush2.msra.mxu0 0.0
    %893 = vmatprep.subr.mxu0 0.0
    %894 = vmatpush2.msra.mxu0 0.0
    %895 = vmatprep.subr.mxu0 0.0
    %896 = vmatpush2.msra.mxu0 0.0
    %897 = vmatprep.subr.mxu0 0.0
    %898 = vmatpush2.msra.mxu0 0.0
    %899 = vmatprep.subr.mxu0 0.0
    %900 = vmatpush2.msra.mxu0 0.0
    %901 = vmatprep.subr.mxu0 0.0
    %902 = vmatpush2.msra.mxu0 0.0
    %903 = vmatprep.subr.mxu0 0.0
    %904 = vmatpush2.msra.mxu0 0.0
    %905 = vmatprep.mubr.f32.mxu0 0.0
    %906 = vmatmul.mubr.f32.gmra.mxu0 %v693
    %v907 = vpop.f32.mrf.mxu0
    %v908 = vadd.f32 0.0, %v907
    %v909 = vpop.f32.mrf.mxu0
    %910 = vdwg.mxu0
    %v911 = vadd.f32 %v840, %v908
    %s912 = scalar_lea.vmem %s0, 104
    %v913 = vld [vmem:[%s912] sm:$0xf]
    %914 = vmatprep.subr.mxu0 0.0
    %915 = vmatpush1.msra.mxu0 0.0
    %916 = vmatprep.subr.mxu0 0.0
    %917 = vmatpush1.msra.mxu0 0.0
    %918 = vmatprep.subr.mxu0 0.0
    %919 = vmatpush1.msra.mxu0 0.0
    %920 = vmatprep.subr.mxu0 0.0
    %921 = vmatpush1.msra.mxu0 0.0
    %922 = vmatprep.subr.mxu0 0.0
    %923 = vmatpush1.msra.mxu0 0.0
    %924 = vmatprep.subr.mxu0 0.0
    %925 = vmatpush1.msra.mxu0 0.0
    %926 = vmatprep.subr.mxu0 0.0
    %927 = vmatpush1.msra.mxu0 0.0
    %928 = vmatprep.subr.mxu0 0.0
    %929 = vmatpush1.msra.mxu0 0.0
    %930 = vmatprep.subr.mxu0 0.0
    %931 = vmatpush1.msra.mxu0 0.0
    %932 = vmatprep.subr.mxu0 0.0
    %933 = vmatpush1.msra.mxu0 0.0
    %934 = vmatprep.subr.mxu0 0.0
    %935 = vmatpush1.msra.mxu0 0.0
    %936 = vmatprep.subr.mxu0 0.0
    %937 = vmatpush1.msra.mxu0 0.0
    %938 = vmatprep.subr.mxu0 0.0
    %939 = vmatpush1.msra.mxu0 %v44
    %940 = vmatprep.subr.mxu0 0.0
    %941 = vmatpush1.msra.mxu0 %v43
    %942 = vmatprep.subr.mxu0 0.0
    %943 = vmatpush1.msra.mxu0 %v42
    %944 = vmatprep.subr.mxu0 0.0
    %945 = vmatpush1.msra.mxu0 %v41
    %946 = vmatprep.subr.mxu0 0.0
    %947 = vmatpush2.msra.mxu0 0.0
    %948 = vmatprep.subr.mxu0 0.0
    %949 = vmatpush2.msra.mxu0 0.0
    %950 = vmatprep.subr.mxu0 0.0
    %951 = vmatpush2.msra.mxu0 0.0
    %952 = vmatprep.subr.mxu0 0.0
    %953 = vmatpush2.msra.mxu0 0.0
    %954 = vmatprep.subr.mxu0 0.0
    %955 = vmatpush2.msra.mxu0 0.0
    %956 = vmatprep.subr.mxu0 0.0
    %957 = vmatpush2.msra.mxu0 0.0
    %958 = vmatprep.subr.mxu0 0.0
    %959 = vmatpush2.msra.mxu0 0.0
    %960 = vmatprep.subr.mxu0 0.0
    %961 = vmatpush2.msra.mxu0 0.0
    %962 = vmatprep.subr.mxu0 0.0
    %963 = vmatpush2.msra.mxu0 0.0
    %964 = vmatprep.subr.mxu0 0.0
    %965 = vmatpush2.msra.mxu0 0.0
    %966 = vmatprep.subr.mxu0 0.0
    %967 = vmatpush2.msra.mxu0 0.0
    %968 = vmatprep.subr.mxu0 0.0
    %969 = vmatpush2.msra.mxu0 0.0
    %970 = vmatprep.subr.mxu0 0.0
    %971 = vmatpush2.msra.mxu0 0.0
    %972 = vmatprep.subr.mxu0 0.0
    %973 = vmatpush2.msra.mxu0 0.0
    %974 = vmatprep.subr.mxu0 0.0
    %975 = vmatpush2.msra.mxu0 0.0
    %976 = vmatprep.subr.mxu0 0.0
    %977 = vmatpush2.msra.mxu0 0.0
    %978 = vmatprep.mubr.f32.mxu0 0.0
    %979 = vmatmul.mubr.f32.gmra.mxu0 %v693
    %v980 = vpop.f32.mrf.mxu0
    %v981 = vadd.f32 0.0, %v980
    %v982 = vpop.f32.mrf.mxu0
    %983 = vdwg.mxu0
    %v984 = vadd.f32 %v913, %v981
    %v985 = vxor.u32 %v765, 2147483648
    %v986 = vmul.f32 %v985, 1.442695
    %v987 = vpow.pop %v986
    %v988 = vadd.f32 %v987, 1.0
    %v989 = vrcp.pop %v988
    %v990 = vmul.f32 1.0, %v989
    %v991 = vxor.u32 %v838, 2147483648
    %v992 = vmul.f32 %v991, 1.442695
    %v993 = vpow.pop %v992
    %v994 = vadd.f32 %v993, 1.0
    %v995 = vrcp.pop %v994
    %v996 = vmul.f32 1.0, %v995
    %v997 = vtanh.pop %v911
    %v998 = vxor.u32 %v984, 2147483648
    %v999 = vmul.f32 %v998, 1.442695
    %v1000 = vpow.pop %v999
    %v1001 = vadd.f32 %v1000, 1.0
    %v1002 = vrcp.pop %v1001
    %v1003 = vmul.f32 1.0, %v1002
    %v1004 = vmul.f32 %v996, %v682
    %v1005 = vmul.f32 %v990, %v997
    %v1006 = vadd.f32 %v1004, %v1005
    %v1007 = vtanh.pop %v1006
    %v1008 = vmul.f32 %v1003, %v1007
    %1010 = vrot.lane.b32.xlu0 %v1008, 64
    %v1011 = vpop.permute.xlu0 %1010
    %vm1013 = vcmask 781824
    %1014 = vst.msk [vmem:[#allocation2] sm:$0xf] %vm1013, %v1011
    %s1015 = scalar_lea.vmem %s0, 12
    %v1016 = vld [vmem:[%s1015] sm:$0xf]
    %v1017 = vsel %vm46, %v1008, 0
    %1019 = vmatprep.subr.mxu0 0.0
    %1020 = vmatpush1.msra.mxu0 0.0
    %1021 = vmatprep.subr.mxu0 0.0
    %1022 = vmatpush1.msra.mxu0 0.0
    %1023 = vmatprep.subr.mxu0 0.0
    %1024 = vmatpush1.msra.mxu0 0.0
    %1025 = vmatprep.subr.mxu0 0.0
    %1026 = vmatpush1.msra.mxu0 0.0
    %1027 = vmatprep.subr.mxu0 0.0
    %1028 = vmatpush1.msra.mxu0 0.0
    %1029 = vmatprep.subr.mxu0 0.0
    %1030 = vmatpush1.msra.mxu0 0.0
    %1031 = vmatprep.subr.mxu0 0.0
    %1032 = vmatpush1.msra.mxu0 0.0
    %1033 = vmatprep.subr.mxu0 0.0
    %1034 = vmatpush1.msra.mxu0 0.0
    %1035 = vmatprep.subr.mxu0 0.0
    %1036 = vmatpush1.msra.mxu0 0.0
    %1037 = vmatprep.subr.mxu0 0.0
    %1038 = vmatpush1.msra.mxu0 0.0
    %1039 = vmatprep.subr.mxu0 0.0
    %1040 = vmatpush1.msra.mxu0 0.0
    %1041 = vmatprep.subr.mxu0 0.0
    %1042 = vmatpush1.msra.mxu0 0.0
    %1043 = vmatprep.subr.mxu0 0.0
    %1044 = vmatpush1.msra.mxu0 %v29
    %1045 = vmatprep.subr.mxu0 0.0
    %1046 = vmatpush1.msra.mxu0 %v28
    %1047 = vmatprep.subr.mxu0 0.0
    %1048 = vmatpush1.msra.mxu0 %v27
    %1049 = vmatprep.subr.mxu0 0.0
    %1050 = vmatpush1.msra.mxu0 %v26
    %1051 = vmatprep.subr.mxu0 0.0
    %1052 = vmatpush2.msra.mxu0 0.0
    %1053 = vmatprep.subr.mxu0 0.0
    %1054 = vmatpush2.msra.mxu0 0.0
    %1055 = vmatprep.subr.mxu0 0.0
    %1056 = vmatpush2.msra.mxu0 0.0
    %1057 = vmatprep.subr.mxu0 0.0
    %1058 = vmatpush2.msra.mxu0 0.0
    %1059 = vmatprep.subr.mxu0 0.0
    %1060 = vmatpush2.msra.mxu0 0.0
    %1061 = vmatprep.subr.mxu0 0.0
    %1062 = vmatpush2.msra.mxu0 0.0
    %1063 = vmatprep.subr.mxu0 0.0
    %1064 = vmatpush2.msra.mxu0 0.0
    %1065 = vmatprep.subr.mxu0 0.0
    %1066 = vmatpush2.msra.mxu0 0.0
    %1067 = vmatprep.subr.mxu0 0.0
    %1068 = vmatpush2.msra.mxu0 0.0
    %1069 = vmatprep.subr.mxu0 0.0
    %1070 = vmatpush2.msra.mxu0 0.0
    %1071 = vmatprep.subr.mxu0 0.0
    %1072 = vmatpush2.msra.mxu0 0.0
    %1073 = vmatprep.subr.mxu0 0.0
    %1074 = vmatpush2.msra.mxu0 0.0
    %1075 = vmatprep.subr.mxu0 0.0
    %1076 = vmatpush2.msra.mxu0 0.0
    %1077 = vmatprep.subr.mxu0 0.0
    %1078 = vmatpush2.msra.mxu0 0.0
    %1079 = vmatprep.subr.mxu0 0.0
    %1080 = vmatpush2.msra.mxu0 0.0
    %1081 = vmatprep.subr.mxu0 0.0
    %1082 = vmatpush2.msra.mxu0 0.0
    %1083 = vmatprep.mubr.f32.mxu0 0.0
    %1084 = vmatmul.mubr.f32.gmra.mxu0 %v1017
    %v1085 = vpop.f32.mrf.mxu0
    %v1086 = vadd.f32 0.0, %v1085
    %v1087 = vpop.f32.mrf.mxu0
    %1088 = vdwg.mxu0
    %v1089 = vadd.f32 %v1016, %v1086
    %s1090 = scalar_lea.vmem %s0, 44
    %v1091 = vld [vmem:[%s1090] sm:$0xf]
    %1092 = vmatprep.subr.mxu0 0.0
    %1093 = vmatpush1.msra.mxu0 0.0
    %1094 = vmatprep.subr.mxu0 0.0
    %1095 = vmatpush1.msra.mxu0 0.0
    %1096 = vmatprep.subr.mxu0 0.0
    %1097 = vmatpush1.msra.mxu0 0.0
    %1098 = vmatprep.subr.mxu0 0.0
    %1099 = vmatpush1.msra.mxu0 0.0
    %1100 = vmatprep.subr.mxu0 0.0
    %1101 = vmatpush1.msra.mxu0 0.0
    %1102 = vmatprep.subr.mxu0 0.0
    %1103 = vmatpush1.msra.mxu0 0.0
    %1104 = vmatprep.subr.mxu0 0.0
    %1105 = vmatpush1.msra.mxu0 0.0
    %1106 = vmatprep.subr.mxu0 0.0
    %1107 = vmatpush1.msra.mxu0 0.0
    %1108 = vmatprep.subr.mxu0 0.0
    %1109 = vmatpush1.msra.mxu0 0.0
    %1110 = vmatprep.subr.mxu0 0.0
    %1111 = vmatpush1.msra.mxu0 0.0
    %1112 = vmatprep.subr.mxu0 0.0
    %1113 = vmatpush1.msra.mxu0 0.0
    %1114 = vmatprep.subr.mxu0 0.0
    %1115 = vmatpush1.msra.mxu0 0.0
    %1116 = vmatprep.subr.mxu0 0.0
    %1117 = vmatpush1.msra.mxu0 %v34
    %1118 = vmatprep.subr.mxu0 0.0
    %1119 = vmatpush1.msra.mxu0 %v33
    %1120 = vmatprep.subr.mxu0 0.0
    %1121 = vmatpush1.msra.mxu0 %v32
    %1122 = vmatprep.subr.mxu0 0.0
    %1123 = vmatpush1.msra.mxu0 %v31
    %1124 = vmatprep.subr.mxu0 0.0
    %1125 = vmatpush2.msra.mxu0 0.0
    %1126 = vmatprep.subr.mxu0 0.0
    %1127 = vmatpush2.msra.mxu0 0.0
    %1128 = vmatprep.subr.mxu0 0.0
    %1129 = vmatpush2.msra.mxu0 0.0
    %1130 = vmatprep.subr.mxu0 0.0
    %1131 = vmatpush2.msra.mxu0 0.0
    %1132 = vmatprep.subr.mxu0 0.0
    %1133 = vmatpush2.msra.mxu0 0.0
    %1134 = vmatprep.subr.mxu0 0.0
    %1135 = vmatpush2.msra.mxu0 0.0
    %1136 = vmatprep.subr.mxu0 0.0
    %1137 = vmatpush2.msra.mxu0 0.0
    %1138 = vmatprep.subr.mxu0 0.0
    %1139 = vmatpush2.msra.mxu0 0.0
    %1140 = vmatprep.subr.mxu0 0.0
    %1141 = vmatpush2.msra.mxu0 0.0
    %1142 = vmatprep.subr.mxu0 0.0
    %1143 = vmatpush2.msra.mxu0 0.0
    %1144 = vmatprep.subr.mxu0 0.0
    %1145 = vmatpush2.msra.mxu0 0.0
    %1146 = vmatprep.subr.mxu0 0.0
    %1147 = vmatpush2.msra.mxu0 0.0
    %1148 = vmatprep.subr.mxu0 0.0
    %1149 = vmatpush2.msra.mxu0 0.0
    %1150 = vmatprep.subr.mxu0 0.0
    %1151 = vmatpush2.msra.mxu0 0.0
    %1152 = vmatprep.subr.mxu0 0.0
    %1153 = vmatpush2.msra.mxu0 0.0
    %1154 = vmatprep.subr.mxu0 0.0
    %1155 = vmatpush2.msra.mxu0 0.0
    %1156 = vmatprep.mubr.f32.mxu0 0.0
    %1157 = vmatmul.mubr.f32.gmra.mxu0 %v1017
    %v1158 = vpop.f32.mrf.mxu0
    %v1159 = vadd.f32 0.0, %v1158
    %v1160 = vpop.f32.mrf.mxu0
    %1161 = vdwg.mxu0
    %v1162 = vadd.f32 %v1091, %v1159
    %s1163 = scalar_lea.vmem %s0, 76
    %v1164 = vld [vmem:[%s1163] sm:$0xf]
    %1165 = vmatprep.subr.mxu0 0.0
    %1166 = vmatpush1.msra.mxu0 0.0
    %1167 = vmatprep.subr.mxu0 0.0
    %1168 = vmatpush1.msra.mxu0 0.0
    %1169 = vmatprep.subr.mxu0 0.0
    %1170 = vmatpush1.msra.mxu0 0.0
    %1171 = vmatprep.subr.mxu0 0.0
    %1172 = vmatpush1.msra.mxu0 0.0
    %1173 = vmatprep.subr.mxu0 0.0
    %1174 = vmatpush1.msra.mxu0 0.0
    %1175 = vmatprep.subr.mxu0 0.0
    %1176 = vmatpush1.msra.mxu0 0.0
    %1177 = vmatprep.subr.mxu0 0.0
    %1178 = vmatpush1.msra.mxu0 0.0
    %1179 = vmatprep.subr.mxu0 0.0
    %1180 = vmatpush1.msra.mxu0 0.0
    %1181 = vmatprep.subr.mxu0 0.0
    %1182 = vmatpush1.msra.mxu0 0.0
    %1183 = vmatprep.subr.mxu0 0.0
    %1184 = vmatpush1.msra.mxu0 0.0
    %1185 = vmatprep.subr.mxu0 0.0
    %1186 = vmatpush1.msra.mxu0 0.0
    %1187 = vmatprep.subr.mxu0 0.0
    %1188 = vmatpush1.msra.mxu0 0.0
    %1189 = vmatprep.subr.mxu0 0.0
    %1190 = vmatpush1.msra.mxu0 %v39
    %1191 = vmatprep.subr.mxu0 0.0
    %1192 = vmatpush1.msra.mxu0 %v38
    %1193 = vmatprep.subr.mxu0 0.0
    %1194 = vmatpush1.msra.mxu0 %v37
    %1195 = vmatprep.subr.mxu0 0.0
    %1196 = vmatpush1.msra.mxu0 %v36
    %1197 = vmatprep.subr.mxu0 0.0
    %1198 = vmatpush2.msra.mxu0 0.0
    %1199 = vmatprep.subr.mxu0 0.0
    %1200 = vmatpush2.msra.mxu0 0.0
    %1201 = vmatprep.subr.mxu0 0.0
    %1202 = vmatpush2.msra.mxu0 0.0
    %1203 = vmatprep.subr.mxu0 0.0
    %1204 = vmatpush2.msra.mxu0 0.0
    %1205 = vmatprep.subr.mxu0 0.0
    %1206 = vmatpush2.msra.mxu0 0.0
    %1207 = vmatprep.subr.mxu0 0.0
    %1208 = vmatpush2.msra.mxu0 0.0
    %1209 = vmatprep.subr.mxu0 0.0
    %1210 = vmatpush2.msra.mxu0 0.0
    %1211 = vmatprep.subr.mxu0 0.0
    %1212 = vmatpush2.msra.mxu0 0.0
    %1213 = vmatprep.subr.mxu0 0.0
    %1214 = vmatpush2.msra.mxu0 0.0
    %1215 = vmatprep.subr.mxu0 0.0
    %1216 = vmatpush2.msra.mxu0 0.0
    %1217 = vmatprep.subr.mxu0 0.0
    %1218 = vmatpush2.msra.mxu0 0.0
    %1219 = vmatprep.subr.mxu0 0.0
    %1220 = vmatpush2.msra.mxu0 0.0
    %1221 = vmatprep.subr.mxu0 0.0
    %1222 = vmatpush2.msra.mxu0 0.0
    %1223 = vmatprep.subr.mxu0 0.0
    %1224 = vmatpush2.msra.mxu0 0.0
    %1225 = vmatprep.subr.mxu0 0.0
    %1226 = vmatpush2.msra.mxu0 0.0
    %1227 = vmatprep.subr.mxu0 0.0
    %1228 = vmatpush2.msra.mxu0 0.0
    %1229 = vmatprep.mubr.f32.mxu0 0.0
    %1230 = vmatmul.mubr.f32.gmra.mxu0 %v1017
    %v1231 = vpop.f32.mrf.mxu0
    %v1232 = vadd.f32 0.0, %v1231
    %v1233 = vpop.f32.mrf.mxu0
    %1234 = vdwg.mxu0
    %v1235 = vadd.f32 %v1164, %v1232
    %s1236 = scalar_lea.vmem %s0, 108
    %v1237 = vld [vmem:[%s1236] sm:$0xf]
    %1238 = vmatprep.subr.mxu0 0.0
    %1239 = vmatpush1.msra.mxu0 0.0
    %1240 = vmatprep.subr.mxu0 0.0
    %1241 = vmatpush1.msra.mxu0 0.0
    %1242 = vmatprep.subr.mxu0 0.0
    %1243 = vmatpush1.msra.mxu0 0.0
    %1244 = vmatprep.subr.mxu0 0.0
    %1245 = vmatpush1.msra.mxu0 0.0
    %1246 = vmatprep.subr.mxu0 0.0
    %1247 = vmatpush1.msra.mxu0 0.0
    %1248 = vmatprep.subr.mxu0 0.0
    %1249 = vmatpush1.msra.mxu0 0.0
    %1250 = vmatprep.subr.mxu0 0.0
    %1251 = vmatpush1.msra.mxu0 0.0
    %1252 = vmatprep.subr.mxu0 0.0
    %1253 = vmatpush1.msra.mxu0 0.0
    %1254 = vmatprep.subr.mxu0 0.0
    %1255 = vmatpush1.msra.mxu0 0.0
    %1256 = vmatprep.subr.mxu0 0.0
    %1257 = vmatpush1.msra.mxu0 0.0
    %1258 = vmatprep.subr.mxu0 0.0
    %1259 = vmatpush1.msra.mxu0 0.0
    %1260 = vmatprep.subr.mxu0 0.0
    %1261 = vmatpush1.msra.mxu0 0.0
    %1262 = vmatprep.subr.mxu0 0.0
    %1263 = vmatpush1.msra.mxu0 %v44
    %1264 = vmatprep.subr.mxu0 0.0
    %1265 = vmatpush1.msra.mxu0 %v43
    %1266 = vmatprep.subr.mxu0 0.0
    %1267 = vmatpush1.msra.mxu0 %v42
    %1268 = vmatprep.subr.mxu0 0.0
    %1269 = vmatpush1.msra.mxu0 %v41
    %1270 = vmatprep.subr.mxu0 0.0
    %1271 = vmatpush2.msra.mxu0 0.0
    %1272 = vmatprep.subr.mxu0 0.0
    %1273 = vmatpush2.msra.mxu0 0.0
    %1274 = vmatprep.subr.mxu0 0.0
    %1275 = vmatpush2.msra.mxu0 0.0
    %1276 = vmatprep.subr.mxu0 0.0
    %1277 = vmatpush2.msra.mxu0 0.0
    %1278 = vmatprep.subr.mxu0 0.0
    %1279 = vmatpush2.msra.mxu0 0.0
    %1280 = vmatprep.subr.mxu0 0.0
    %1281 = vmatpush2.msra.mxu0 0.0
    %1282 = vmatprep.subr.mxu0 0.0
    %1283 = vmatpush2.msra.mxu0 0.0
    %1284 = vmatprep.subr.mxu0 0.0
    %1285 = vmatpush2.msra.mxu0 0.0
    %1286 = vmatprep.subr.mxu0 0.0
    %1287 = vmatpush2.msra.mxu0 0.0
    %1288 = vmatprep.subr.mxu0 0.0
    %1289 = vmatpush2.msra.mxu0 0.0
    %1290 = vmatprep.subr.mxu0 0.0
    %1291 = vmatpush2.msra.mxu0 0.0
    %1292 = vmatprep.subr.mxu0 0.0
    %1293 = vmatpush2.msra.mxu0 0.0
    %1294 = vmatprep.subr.mxu0 0.0
    %1295 = vmatpush2.msra.mxu0 0.0
    %1296 = vmatprep.subr.mxu0 0.0
    %1297 = vmatpush2.msra.mxu0 0.0
    %1298 = vmatprep.subr.mxu0 0.0
    %1299 = vmatpush2.msra.mxu0 0.0
    %1300 = vmatprep.subr.mxu0 0.0
    %1301 = vmatpush2.msra.mxu0 0.0
    %1302 = vmatprep.mubr.f32.mxu0 0.0
    %1303 = vmatmul.mubr.f32.gmra.mxu0 %v1017
    %v1304 = vpop.f32.mrf.mxu0
    %v1305 = vadd.f32 0.0, %v1304
    %v1306 = vpop.f32.mrf.mxu0
    %1307 = vdwg.mxu0
    %v1308 = vadd.f32 %v1237, %v1305
    %v1309 = vxor.u32 %v1089, 2147483648
    %v1310 = vmul.f32 %v1309, 1.442695
    %v1311 = vpow.pop %v1310
    %v1312 = vadd.f32 %v1311, 1.0
    %v1313 = vrcp.pop %v1312
    %v1314 = vmul.f32 1.0, %v1313
    %v1315 = vxor.u32 %v1162, 2147483648
    %v1316 = vmul.f32 %v1315, 1.442695
    %v1317 = vpow.pop %v1316
    %v1318 = vadd.f32 %v1317, 1.0
    %v1319 = vrcp.pop %v1318
    %v1320 = vmul.f32 1.0, %v1319
    %v1321 = vtanh.pop %v1235
    %v1322 = vxor.u32 %v1308, 2147483648
    %v1323 = vmul.f32 %v1322, 1.442695
    %v1324 = vpow.pop %v1323
    %v1325 = vadd.f32 %v1324, 1.0
    %v1326 = vrcp.pop %v1325
    %v1327 = vmul.f32 1.0, %v1326
    %v1328 = vmul.f32 %v1320, %v1006
    %v1329 = vmul.f32 %v1314, %v1321
    %v1330 = vadd.f32 %v1328, %v1329
    %v1331 = vtanh.pop %v1330
    %v1332 = vmul.f32 %v1327, %v1331
    %1334 = vrot.lane.b32.xlu0 %v1332, 96
    %v1335 = vpop.permute.xlu0 %1334
    %vm1337 = vcmask 1044224
    %1338 = vst.msk [vmem:[#allocation2] sm:$0xf] %vm1337, %v1335
    %s1339 = scalar_lea.vmem %s0, 16
    %v1340 = vld [vmem:[%s1339] sm:$0xf]
    %v1341 = vsel %vm46, %v1332, 0
    %1343 = vmatprep.subr.mxu0 0.0
    %1344 = vmatpush1.msra.mxu0 0.0
    %1345 = vmatprep.subr.mxu0 0.0
    %1346 = vmatpush1.msra.mxu0 0.0
    %1347 = vmatprep.subr.mxu0 0.0
    %1348 = vmatpush1.msra.mxu0 0.0
    %1349 = vmatprep.subr.mxu0 0.0
    %1350 = vmatpush1.msra.mxu0 0.0
    %1351 = vmatprep.subr.mxu0 0.0
    %1352 = vmatpush1.msra.mxu0 0.0
    %1353 = vmatprep.subr.mxu0 0.0
    %1354 = vmatpush1.msra.mxu0 0.0
    %1355 = vmatprep.subr.mxu0 0.0
    %1356 = vmatpush1.msra.mxu0 0.0
    %1357 = vmatprep.subr.mxu0 0.0
    %1358 = vmatpush1.msra.mxu0 0.0
    %1359 = vmatprep.subr.mxu0 0.0
    %1360 = vmatpush1.msra.mxu0 0.0
    %1361 = vmatprep.subr.mxu0 0.0
    %1362 = vmatpush1.msra.mxu0 0.0
    %1363 = vmatprep.subr.mxu0 0.0
    %1364 = vmatpush1.msra.mxu0 0.0
    %1365 = vmatprep.subr.mxu0 0.0
    %1366 = vmatpush1.msra.mxu0 0.0
    %1367 = vmatprep.subr.mxu0 0.0
    %1368 = vmatpush1.msra.mxu0 %v29
    %1369 = vmatprep.subr.mxu0 0.0
    %1370 = vmatpush1.msra.mxu0 %v28
    %1371 = vmatprep.subr.mxu0 0.0
    %1372 = vmatpush1.msra.mxu0 %v27
    %1373 = vmatprep.subr.mxu0 0.0
    %1374 = vmatpush1.msra.mxu0 %v26
    %1375 = vmatprep.subr.mxu0 0.0
    %1376 = vmatpush2.msra.mxu0 0.0
    %1377 = vmatprep.subr.mxu0 0.0
    %1378 = vmatpush2.msra.mxu0 0.0
    %1379 = vmatprep.subr.mxu0 0.0
    %1380 = vmatpush2.msra.mxu0 0.0
    %1381 = vmatprep.subr.mxu0 0.0
    %1382 = vmatpush2.msra.mxu0 0.0
    %1383 = vmatprep.subr.mxu0 0.0
    %1384 = vmatpush2.msra.mxu0 0.0
    %1385 = vmatprep.subr.mxu0 0.0
    %1386 = vmatpush2.msra.mxu0 0.0
    %1387 = vmatprep.subr.mxu0 0.0
    %1388 = vmatpush2.msra.mxu0 0.0
    %1389 = vmatprep.subr.mxu0 0.0
    %1390 = vmatpush2.msra.mxu0 0.0
    %1391 = vmatprep.subr.mxu0 0.0
    %1392 = vmatpush2.msra.mxu0 0.0
    %1393 = vmatprep.subr.mxu0 0.0
    %1394 = vmatpush2.msra.mxu0 0.0
    %1395 = vmatprep.subr.mxu0 0.0
    %1396 = vmatpush2.msra.mxu0 0.0
    %1397 = vmatprep.subr.mxu0 0.0
    %1398 = vmatpush2.msra.mxu0 0.0
    %1399 = vmatprep.subr.mxu0 0.0
    %1400 = vmatpush2.msra.mxu0 0.0
    %1401 = vmatprep.subr.mxu0 0.0
    %1402 = vmatpush2.msra.mxu0 0.0
    %1403 = vmatprep.subr.mxu0 0.0
    %1404 = vmatpush2.msra.mxu0 0.0
    %1405 = vmatprep.subr.mxu0 0.0
    %1406 = vmatpush2.msra.mxu0 0.0
    %1407 = vmatprep.mubr.f32.mxu0 0.0
    %1408 = vmatmul.mubr.f32.gmra.mxu0 %v1341
    %v1409 = vpop.f32.mrf.mxu0
    %v1410 = vadd.f32 0.0, %v1409
    %v1411 = vpop.f32.mrf.mxu0
    %1412 = vdwg.mxu0
    %v1413 = vadd.f32 %v1340, %v1410
    %s1414 = scalar_lea.vmem %s0, 48
    %v1415 = vld [vmem:[%s1414] sm:$0xf]
    %1416 = vmatprep.subr.mxu0 0.0
    %1417 = vmatpush1.msra.mxu0 0.0
    %1418 = vmatprep.subr.mxu0 0.0
    %1419 = vmatpush1.msra.mxu0 0.0
    %1420 = vmatprep.subr.mxu0 0.0
    %1421 = vmatpush1.msra.mxu0 0.0
    %1422 = vmatprep.subr.mxu0 0.0
    %1423 = vmatpush1.msra.mxu0 0.0
    %1424 = vmatprep.subr.mxu0 0.0
    %1425 = vmatpush1.msra.mxu0 0.0
    %1426 = vmatprep.subr.mxu0 0.0
    %1427 = vmatpush1.msra.mxu0 0.0
    %1428 = vmatprep.subr.mxu0 0.0
    %1429 = vmatpush1.msra.mxu0 0.0
    %1430 = vmatprep.subr.mxu0 0.0
    %1431 = vmatpush1.msra.mxu0 0.0
    %1432 = vmatprep.subr.mxu0 0.0
    %1433 = vmatpush1.msra.mxu0 0.0
    %1434 = vmatprep.subr.mxu0 0.0
    %1435 = vmatpush1.msra.mxu0 0.0
    %1436 = vmatprep.subr.mxu0 0.0
    %1437 = vmatpush1.msra.mxu0 0.0
    %1438 = vmatprep.subr.mxu0 0.0
    %1439 = vmatpush1.msra.mxu0 0.0
    %1440 = vmatprep.subr.mxu0 0.0
    %1441 = vmatpush1.msra.mxu0 %v34
    %1442 = vmatprep.subr.mxu0 0.0
    %1443 = vmatpush1.msra.mxu0 %v33
    %1444 = vmatprep.subr.mxu0 0.0
    %1445 = vmatpush1.msra.mxu0 %v32
    %1446 = vmatprep.subr.mxu0 0.0
    %1447 = vmatpush1.msra.mxu0 %v31
    %1448 = vmatprep.subr.mxu0 0.0
    %1449 = vmatpush2.msra.mxu0 0.0
    %1450 = vmatprep.subr.mxu0 0.0
    %1451 = vmatpush2.msra.mxu0 0.0
    %1452 = vmatprep.subr.mxu0 0.0
    %1453 = vmatpush2.msra.mxu0 0.0
    %1454 = vmatprep.subr.mxu0 0.0
    %1455 = vmatpush2.msra.mxu0 0.0
    %1456 = vmatprep.subr.mxu0 0.0
    %1457 = vmatpush2.msra.mxu0 0.0
    %1458 = vmatprep.subr.mxu0 0.0
    %1459 = vmatpush2.msra.mxu0 0.0
    %1460 = vmatprep.subr.mxu0 0.0
    %1461 = vmatpush2.msra.mxu0 0.0
    %1462 = vmatprep.subr.mxu0 0.0
    %1463 = vmatpush2.msra.mxu0 0.0
    %1464 = vmatprep.subr.mxu0 0.0
    %1465 = vmatpush2.msra.mxu0 0.0
    %1466 = vmatprep.subr.mxu0 0.0
    %1467 = vmatpush2.msra.mxu0 0.0
    %1468 = vmatprep.subr.mxu0 0.0
    %1469 = vmatpush2.msra.mxu0 0.0
    %1470 = vmatprep.subr.mxu0 0.0
    %1471 = vmatpush2.msra.mxu0 0.0
    %1472 = vmatprep.subr.mxu0 0.0
    %1473 = vmatpush2.msra.mxu0 0.0
    %1474 = vmatprep.subr.mxu0 0.0
    %1475 = vmatpush2.msra.mxu0 0.0
    %1476 = vmatprep.subr.mxu0 0.0
    %1477 = vmatpush2.msra.mxu0 0.0
    %1478 = vmatprep.subr.mxu0 0.0
    %1479 = vmatpush2.msra.mxu0 0.0
    %1480 = vmatprep.mubr.f32.mxu0 0.0
    %1481 = vmatmul.mubr.f32.gmra.mxu0 %v1341
    %v1482 = vpop.f32.mrf.mxu0
    %v1483 = vadd.f32 0.0, %v1482
    %v1484 = vpop.f32.mrf.mxu0
    %1485 = vdwg.mxu0
    %v1486 = vadd.f32 %v1415, %v1483
    %s1487 = scalar_lea.vmem %s0, 80
    %v1488 = vld [vmem:[%s1487] sm:$0xf]
    %1489 = vmatprep.subr.mxu0 0.0
    %1490 = vmatpush1.msra.mxu0 0.0
    %1491 = vmatprep.subr.mxu0 0.0
    %1492 = vmatpush1.msra.mxu0 0.0
    %1493 = vmatprep.subr.mxu0 0.0
    %1494 = vmatpush1.msra.mxu0 0.0
    %1495 = vmatprep.subr.mxu0 0.0
    %1496 = vmatpush1.msra.mxu0 0.0
    %1497 = vmatprep.subr.mxu0 0.0
    %1498 = vmatpush1.msra.mxu0 0.0
    %1499 = vmatprep.subr.mxu0 0.0
    %1500 = vmatpush1.msra.mxu0 0.0
    %1501 = vmatprep.subr.mxu0 0.0
    %1502 = vmatpush1.msra.mxu0 0.0
    %1503 = vmatprep.subr.mxu0 0.0
    %1504 = vmatpush1.msra.mxu0 0.0
    %1505 = vmatprep.subr.mxu0 0.0
    %1506 = vmatpush1.msra.mxu0 0.0
    %1507 = vmatprep.subr.mxu0 0.0
    %1508 = vmatpush1.msra.mxu0 0.0
    %1509 = vmatprep.subr.mxu0 0.0
    %1510 = vmatpush1.msra.mxu0 0.0
    %1511 = vmatprep.subr.mxu0 0.0
    %1512 = vmatpush1.msra.mxu0 0.0
    %1513 = vmatprep.subr.mxu0 0.0
    %1514 = vmatpush1.msra.mxu0 %v39
    %1515 = vmatprep.subr.mxu0 0.0
    %1516 = vmatpush1.msra.mxu0 %v38
    %1517 = vmatprep.subr.mxu0 0.0
    %1518 = vmatpush1.msra.mxu0 %v37
    %1519 = vmatprep.subr.mxu0 0.0
    %1520 = vmatpush1.msra.mxu0 %v36
    %1521 = vmatprep.subr.mxu0 0.0
    %1522 = vmatpush2.msra.mxu0 0.0
    %1523 = vmatprep.subr.mxu0 0.0
    %1524 = vmatpush2.msra.mxu0 0.0
    %1525 = vmatprep.subr.mxu0 0.0
    %1526 = vmatpush2.msra.mxu0 0.0
    %1527 = vmatprep.subr.mxu0 0.0
    %1528 = vmatpush2.msra.mxu0 0.0
    %1529 = vmatprep.subr.mxu0 0.0
    %1530 = vmatpush2.msra.mxu0 0.0
    %1531 = vmatprep.subr.mxu0 0.0
    %1532 = vmatpush2.msra.mxu0 0.0
    %1533 = vmatprep.subr.mxu0 0.0
    %1534 = vmatpush2.msra.mxu0 0.0
    %1535 = vmatprep.subr.mxu0 0.0
    %1536 = vmatpush2.msra.mxu0 0.0
    %1537 = vmatprep.subr.mxu0 0.0
    %1538 = vmatpush2.msra.mxu0 0.0
    %1539 = vmatprep.subr.mxu0 0.0
    %1540 = vmatpush2.msra.mxu0 0.0
    %1541 = vmatprep.subr.mxu0 0.0
    %1542 = vmatpush2.msra.mxu0 0.0
    %1543 = vmatprep.subr.mxu0 0.0
    %1544 = vmatpush2.msra.mxu0 0.0
    %1545 = vmatprep.subr.mxu0 0.0
    %1546 = vmatpush2.msra.mxu0 0.0
    %1547 = vmatprep.subr.mxu0 0.0
    %1548 = vmatpush2.msra.mxu0 0.0
    %1549 = vmatprep.subr.mxu0 0.0
    %1550 = vmatpush2.msra.mxu0 0.0
    %1551 = vmatprep.subr.mxu0 0.0
    %1552 = vmatpush2.msra.mxu0 0.0
    %1553 = vmatprep.mubr.f32.mxu0 0.0
    %1554 = vmatmul.mubr.f32.gmra.mxu0 %v1341
    %v1555 = vpop.f32.mrf.mxu0
    %v1556 = vadd.f32 0.0, %v1555
    %v1557 = vpop.f32.mrf.mxu0
    %1558 = vdwg.mxu0
    %v1559 = vadd.f32 %v1488, %v1556
    %s1560 = scalar_lea.vmem %s0, 112
    %v1561 = vld [vmem:[%s1560] sm:$0xf]
    %1562 = vmatprep.subr.mxu0 0.0
    %1563 = vmatpush1.msra.mxu0 0.0
    %1564 = vmatprep.subr.mxu0 0.0
    %1565 = vmatpush1.msra.mxu0 0.0
    %1566 = vmatprep.subr.mxu0 0.0
    %1567 = vmatpush1.msra.mxu0 0.0
    %1568 = vmatprep.subr.mxu0 0.0
    %1569 = vmatpush1.msra.mxu0 0.0
    %1570 = vmatprep.subr.mxu0 0.0
    %1571 = vmatpush1.msra.mxu0 0.0
    %1572 = vmatprep.subr.mxu0 0.0
    %1573 = vmatpush1.msra.mxu0 0.0
    %1574 = vmatprep.subr.mxu0 0.0
    %1575 = vmatpush1.msra.mxu0 0.0
    %1576 = vmatprep.subr.mxu0 0.0
    %1577 = vmatpush1.msra.mxu0 0.0
    %1578 = vmatprep.subr.mxu0 0.0
    %1579 = vmatpush1.msra.mxu0 0.0
    %1580 = vmatprep.subr.mxu0 0.0
    %1581 = vmatpush1.msra.mxu0 0.0
    %1582 = vmatprep.subr.mxu0 0.0
    %1583 = vmatpush1.msra.mxu0 0.0
    %1584 = vmatprep.subr.mxu0 0.0
    %1585 = vmatpush1.msra.mxu0 0.0
    %1586 = vmatprep.subr.mxu0 0.0
    %1587 = vmatpush1.msra.mxu0 %v44
    %1588 = vmatprep.subr.mxu0 0.0
    %1589 = vmatpush1.msra.mxu0 %v43
    %1590 = vmatprep.subr.mxu0 0.0
    %1591 = vmatpush1.msra.mxu0 %v42
    %1592 = vmatprep.subr.mxu0 0.0
    %1593 = vmatpush1.msra.mxu0 %v41
    %1594 = vmatprep.subr.mxu0 0.0
    %1595 = vmatpush2.msra.mxu0 0.0
    %1596 = vmatprep.subr.mxu0 0.0
    %1597 = vmatpush2.msra.mxu0 0.0
    %1598 = vmatprep.subr.mxu0 0.0
    %1599 = vmatpush2.msra.mxu0 0.0
    %1600 = vmatprep.subr.mxu0 0.0
    %1601 = vmatpush2.msra.mxu0 0.0
    %1602 = vmatprep.subr.mxu0 0.0
    %1603 = vmatpush2.msra.mxu0 0.0
    %1604 = vmatprep.subr.mxu0 0.0
    %1605 = vmatpush2.msra.mxu0 0.0
    %1606 = vmatprep.subr.mxu0 0.0
    %1607 = vmatpush2.msra.mxu0 0.0
    %1608 = vmatprep.subr.mxu0 0.0
    %1609 = vmatpush2.msra.mxu0 0.0
    %1610 = vmatprep.subr.mxu0 0.0
    %1611 = vmatpush2.msra.mxu0 0.0
    %1612 = vmatprep.subr.mxu0 0.0
    %1613 = vmatpush2.msra.mxu0 0.0
    %1614 = vmatprep.subr.mxu0 0.0
    %1615 = vmatpush2.msra.mxu0 0.0
    %1616 = vmatprep.subr.mxu0 0.0
    %1617 = vmatpush2.msra.mxu0 0.0
    %1618 = vmatprep.subr.mxu0 0.0
    %1619 = vmatpush2.msra.mxu0 0.0
    %1620 = vmatprep.subr.mxu0 0.0
    %1621 = vmatpush2.msra.mxu0 0.0
    %1622 = vmatprep.subr.mxu0 0.0
    %1623 = vmatpush2.msra.mxu0 0.0
    %1624 = vmatprep.subr.mxu0 0.0
    %1625 = vmatpush2.msra.mxu0 0.0
    %1626 = vmatprep.mubr.f32.mxu0 0.0
    %1627 = vmatmul.mubr.f32.gmra.mxu0 %v1341
    %v1628 = vpop.f32.mrf.mxu0
    %v1629 = vadd.f32 0.0, %v1628
    %v1630 = vpop.f32.mrf.mxu0
    %1631 = vdwg.mxu0
    %v1632 = vadd.f32 %v1561, %v1629
    %v1633 = vxor.u32 %v1413, 2147483648
    %v1634 = vmul.f32 %v1633, 1.442695
    %v1635 = vpow.pop %v1634
    %v1636 = vadd.f32 %v1635, 1.0
    %v1637 = vrcp.pop %v1636
    %v1638 = vmul.f32 1.0, %v1637
    %v1639 = vxor.u32 %v1486, 2147483648
    %v1640 = vmul.f32 %v1639, 1.442695
    %v1641 = vpow.pop %v1640
    %v1642 = vadd.f32 %v1641, 1.0
    %v1643 = vrcp.pop %v1642
    %v1644 = vmul.f32 1.0, %v1643
    %v1645 = vtanh.pop %v1559
    %v1646 = vxor.u32 %v1632, 2147483648
    %v1647 = vmul.f32 %v1646, 1.442695
    %v1648 = vpow.pop %v1647
    %v1649 = vadd.f32 %v1648, 1.0
    %v1650 = vrcp.pop %v1649
    %v1651 = vmul.f32 1.0, %v1650
    %v1652 = vmul.f32 %v1644, %v1330
    %v1653 = vmul.f32 %v1638, %v1645
    %v1654 = vadd.f32 %v1652, %v1653
    %v1655 = vtanh.pop %v1654
    %v1656 = vmul.f32 %v1651, %v1655
    %1657 = vst.msk [vmem:[#allocation2 + $0x4] sm:$0xf] %vm364, %v1656
    %s1658 = scalar_lea.vmem %s0, 20
    %v1659 = vld [vmem:[%s1658] sm:$0xf]
    %v1661 = vsel %vm46, %v1656, 0
    %1663 = vmatprep.subr.mxu0 0.0
    %1664 = vmatpush1.msra.mxu0 0.0
    %1665 = vmatprep.subr.mxu0 0.0
    %1666 = vmatpush1.msra.mxu0 0.0
    %1667 = vmatprep.subr.mxu0 0.0
    %1668 = vmatpush1.msra.mxu0 0.0
    %1669 = vmatprep.subr.mxu0 0.0
    %1670 = vmatpush1.msra.mxu0 0.0
    %1671 = vmatprep.subr.mxu0 0.0
    %1672 = vmatpush1.msra.mxu0 0.0
    %1673 = vmatprep.subr.mxu0 0.0
    %1674 = vmatpush1.msra.mxu0 0.0
    %1675 = vmatprep.subr.mxu0 0.0
    %1676 = vmatpush1.msra.mxu0 0.0
    %1677 = vmatprep.subr.mxu0 0.0
    %1678 = vmatpush1.msra.mxu0 0.0
    %1679 = vmatprep.subr.mxu0 0.0
    %1680 = vmatpush1.msra.mxu0 0.0
    %1681 = vmatprep.subr.mxu0 0.0
    %1682 = vmatpush1.msra.mxu0 0.0
    %1683 = vmatprep.subr.mxu0 0.0
    %1684 = vmatpush1.msra.mxu0 0.0
    %1685 = vmatprep.subr.mxu0 0.0
    %1686 = vmatpush1.msra.mxu0 0.0
    %1687 = vmatprep.subr.mxu0 0.0
    %1688 = vmatpush1.msra.mxu0 %v29
    %1689 = vmatprep.subr.mxu0 0.0
    %1690 = vmatpush1.msra.mxu0 %v28
    %1691 = vmatprep.subr.mxu0 0.0
    %1692 = vmatpush1.msra.mxu0 %v27
    %1693 = vmatprep.subr.mxu0 0.0
    %1694 = vmatpush1.msra.mxu0 %v26
    %1695 = vmatprep.subr.mxu0 0.0
    %1696 = vmatpush2.msra.mxu0 0.0
    %1697 = vmatprep.subr.mxu0 0.0
    %1698 = vmatpush2.msra.mxu0 0.0
    %1699 = vmatprep.subr.mxu0 0.0
    %1700 = vmatpush2.msra.mxu0 0.0
    %1701 = vmatprep.subr.mxu0 0.0
    %1702 = vmatpush2.msra.mxu0 0.0
    %1703 = vmatprep.subr.mxu0 0.0
    %1704 = vmatpush2.msra.mxu0 0.0
    %1705 = vmatprep.subr.mxu0 0.0
    %1706 = vmatpush2.msra.mxu0 0.0
    %1707 = vmatprep.subr.mxu0 0.0
    %1708 = vmatpush2.msra.mxu0 0.0
    %1709 = vmatprep.subr.mxu0 0.0
    %1710 = vmatpush2.msra.mxu0 0.0
    %1711 = vmatprep.subr.mxu0 0.0
    %1712 = vmatpush2.msra.mxu0 0.0
    %1713 = vmatprep.subr.mxu0 0.0
    %1714 = vmatpush2.msra.mxu0 0.0
    %1715 = vmatprep.subr.mxu0 0.0
    %1716 = vmatpush2.msra.mxu0 0.0
    %1717 = vmatprep.subr.mxu0 0.0
    %1718 = vmatpush2.msra.mxu0 0.0
    %1719 = vmatprep.subr.mxu0 0.0
    %1720 = vmatpush2.msra.mxu0 0.0
    %1721 = vmatprep.subr.mxu0 0.0
    %1722 = vmatpush2.msra.mxu0 0.0
    %1723 = vmatprep.subr.mxu0 0.0
    %1724 = vmatpush2.msra.mxu0 0.0
    %1725 = vmatprep.subr.mxu0 0.0
    %1726 = vmatpush2.msra.mxu0 0.0
    %1727 = vmatprep.mubr.f32.mxu0 0.0
    %1728 = vmatmul.mubr.f32.gmra.mxu0 %v1661
    %v1729 = vpop.f32.mrf.mxu0
    %v1730 = vadd.f32 0.0, %v1729
    %v1731 = vpop.f32.mrf.mxu0
    %1732 = vdwg.mxu0
    %v1733 = vadd.f32 %v1659, %v1730
    %s1734 = scalar_lea.vmem %s0, 52
    %v1735 = vld [vmem:[%s1734] sm:$0xf]
    %1736 = vmatprep.subr.mxu0 0.0
    %1737 = vmatpush1.msra.mxu0 0.0
    %1738 = vmatprep.subr.mxu0 0.0
    %1739 = vmatpush1.msra.mxu0 0.0
    %1740 = vmatprep.subr.mxu0 0.0
    %1741 = vmatpush1.msra.mxu0 0.0
    %1742 = vmatprep.subr.mxu0 0.0
    %1743 = vmatpush1.msra.mxu0 0.0
    %1744 = vmatprep.subr.mxu0 0.0
    %1745 = vmatpush1.msra.mxu0 0.0
    %1746 = vmatprep.subr.mxu0 0.0
    %1747 = vmatpush1.msra.mxu0 0.0
    %1748 = vmatprep.subr.mxu0 0.0
    %1749 = vmatpush1.msra.mxu0 0.0
    %1750 = vmatprep.subr.mxu0 0.0
    %1751 = vmatpush1.msra.mxu0 0.0
    %1752 = vmatprep.subr.mxu0 0.0
    %1753 = vmatpush1.msra.mxu0 0.0
    %1754 = vmatprep.subr.mxu0 0.0
    %1755 = vmatpush1.msra.mxu0 0.0
    %1756 = vmatprep.subr.mxu0 0.0
    %1757 = vmatpush1.msra.mxu0 0.0
    %1758 = vmatprep.subr.mxu0 0.0
    %1759 = vmatpush1.msra.mxu0 0.0
    %1760 = vmatprep.subr.mxu0 0.0
    %1761 = vmatpush1.msra.mxu0 %v34
    %1762 = vmatprep.subr.mxu0 0.0
    %1763 = vmatpush1.msra.mxu0 %v33
    %1764 = vmatprep.subr.mxu0 0.0
    %1765 = vmatpush1.msra.mxu0 %v32
    %1766 = vmatprep.subr.mxu0 0.0
    %1767 = vmatpush1.msra.mxu0 %v31
    %1768 = vmatprep.subr.mxu0 0.0
    %1769 = vmatpush2.msra.mxu0 0.0
    %1770 = vmatprep.subr.mxu0 0.0
    %1771 = vmatpush2.msra.mxu0 0.0
    %1772 = vmatprep.subr.mxu0 0.0
    %1773 = vmatpush2.msra.mxu0 0.0
    %1774 = vmatprep.subr.mxu0 0.0
    %1775 = vmatpush2.msra.mxu0 0.0
    %1776 = vmatprep.subr.mxu0 0.0
    %1777 = vmatpush2.msra.mxu0 0.0
    %1778 = vmatprep.subr.mxu0 0.0
    %1779 = vmatpush2.msra.mxu0 0.0
    %1780 = vmatprep.subr.mxu0 0.0
    %1781 = vmatpush2.msra.mxu0 0.0
    %1782 = vmatprep.subr.mxu0 0.0
    %1783 = vmatpush2.msra.mxu0 0.0
    %1784 = vmatprep.subr.mxu0 0.0
    %1785 = vmatpush2.msra.mxu0 0.0
    %1786 = vmatprep.subr.mxu0 0.0
    %1787 = vmatpush2.msra.mxu0 0.0
    %1788 = vmatprep.subr.mxu0 0.0
    %1789 = vmatpush2.msra.mxu0 0.0
    %1790 = vmatprep.subr.mxu0 0.0
    %1791 = vmatpush2.msra.mxu0 0.0
    %1792 = vmatprep.subr.mxu0 0.0
    %1793 = vmatpush2.msra.mxu0 0.0
    %1794 = vmatprep.subr.mxu0 0.0
    %1795 = vmatpush2.msra.mxu0 0.0
    %1796 = vmatprep.subr.mxu0 0.0
    %1797 = vmatpush2.msra.mxu0 0.0
    %1798 = vmatprep.subr.mxu0 0.0
    %1799 = vmatpush2.msra.mxu0 0.0
    %1800 = vmatprep.mubr.f32.mxu0 0.0
    %1801 = vmatmul.mubr.f32.gmra.mxu0 %v1661
    %v1802 = vpop.f32.mrf.mxu0
    %v1803 = vadd.f32 0.0, %v1802
    %v1804 = vpop.f32.mrf.mxu0
    %1805 = vdwg.mxu0
    %v1806 = vadd.f32 %v1735, %v1803
    %s1807 = scalar_lea.vmem %s0, 84
    %v1808 = vld [vmem:[%s1807] sm:$0xf]
    %1809 = vmatprep.subr.mxu0 0.0
    %1810 = vmatpush1.msra.mxu0 0.0
    %1811 = vmatprep.subr.mxu0 0.0
    %1812 = vmatpush1.msra.mxu0 0.0
    %1813 = vmatprep.subr.mxu0 0.0
    %1814 = vmatpush1.msra.mxu0 0.0
    %1815 = vmatprep.subr.mxu0 0.0
    %1816 = vmatpush1.msra.mxu0 0.0
    %1817 = vmatprep.subr.mxu0 0.0
    %1818 = vmatpush1.msra.mxu0 0.0
    %1819 = vmatprep.subr.mxu0 0.0
    %1820 = vmatpush1.msra.mxu0 0.0
    %1821 = vmatprep.subr.mxu0 0.0
    %1822 = vmatpush1.msra.mxu0 0.0
    %1823 = vmatprep.subr.mxu0 0.0
    %1824 = vmatpush1.msra.mxu0 0.0
    %1825 = vmatprep.subr.mxu0 0.0
    %1826 = vmatpush1.msra.mxu0 0.0
    %1827 = vmatprep.subr.mxu0 0.0
    %1828 = vmatpush1.msra.mxu0 0.0
    %1829 = vmatprep.subr.mxu0 0.0
    %1830 = vmatpush1.msra.mxu0 0.0
    %1831 = vmatprep.subr.mxu0 0.0
    %1832 = vmatpush1.msra.mxu0 0.0
    %1833 = vmatprep.subr.mxu0 0.0
    %1834 = vmatpush1.msra.mxu0 %v39
    %1835 = vmatprep.subr.mxu0 0.0
    %1836 = vmatpush1.msra.mxu0 %v38
    %1837 = vmatprep.subr.mxu0 0.0
    %1838 = vmatpush1.msra.mxu0 %v37
    %1839 = vmatprep.subr.mxu0 0.0
    %1840 = vmatpush1.msra.mxu0 %v36
    %1841 = vmatprep.subr.mxu0 0.0
    %1842 = vmatpush2.msra.mxu0 0.0
    %1843 = vmatprep.subr.mxu0 0.0
    %1844 = vmatpush2.msra.mxu0 0.0
    %1845 = vmatprep.subr.mxu0 0.0
    %1846 = vmatpush2.msra.mxu0 0.0
    %1847 = vmatprep.subr.mxu0 0.0
    %1848 = vmatpush2.msra.mxu0 0.0
    %1849 = vmatprep.subr.mxu0 0.0
    %1850 = vmatpush2.msra.mxu0 0.0
    %1851 = vmatprep.subr.mxu0 0.0
    %1852 = vmatpush2.msra.mxu0 0.0
    %1853 = vmatprep.subr.mxu0 0.0
    %1854 = vmatpush2.msra.mxu0 0.0
    %1855 = vmatprep.subr.mxu0 0.0
    %1856 = vmatpush2.msra.mxu0 0.0
    %1857 = vmatprep.subr.mxu0 0.0
    %1858 = vmatpush2.msra.mxu0 0.0
    %1859 = vmatprep.subr.mxu0 0.0
    %1860 = vmatpush2.msra.mxu0 0.0
    %1861 = vmatprep.subr.mxu0 0.0
    %1862 = vmatpush2.msra.mxu0 0.0
    %1863 = vmatprep.subr.mxu0 0.0
    %1864 = vmatpush2.msra.mxu0 0.0
    %1865 = vmatprep.subr.mxu0 0.0
    %1866 = vmatpush2.msra.mxu0 0.0
    %1867 = vmatprep.subr.mxu0 0.0
    %1868 = vmatpush2.msra.mxu0 0.0
    %1869 = vmatprep.subr.mxu0 0.0
    %1870 = vmatpush2.msra.mxu0 0.0
    %1871 = vmatprep.subr.mxu0 0.0
    %1872 = vmatpush2.msra.mxu0 0.0
    %1873 = vmatprep.mubr.f32.mxu0 0.0
    %1874 = vmatmul.mubr.f32.gmra.mxu0 %v1661
    %v1875 = vpop.f32.mrf.mxu0
    %v1876 = vadd.f32 0.0, %v1875
    %v1877 = vpop.f32.mrf.mxu0
    %1878 = vdwg.mxu0
    %v1879 = vadd.f32 %v1808, %v1876
    %s1880 = scalar_lea.vmem %s0, 116
    %v1881 = vld [vmem:[%s1880] sm:$0xf]
    %1882 = vmatprep.subr.mxu0 0.0
    %1883 = vmatpush1.msra.mxu0 0.0
    %1884 = vmatprep.subr.mxu0 0.0
    %1885 = vmatpush1.msra.mxu0 0.0
    %1886 = vmatprep.subr.mxu0 0.0
    %1887 = vmatpush1.msra.mxu0 0.0
    %1888 = vmatprep.subr.mxu0 0.0
    %1889 = vmatpush1.msra.mxu0 0.0
    %1890 = vmatprep.subr.mxu0 0.0
    %1891 = vmatpush1.msra.mxu0 0.0
    %1892 = vmatprep.subr.mxu0 0.0
    %1893 = vmatpush1.msra.mxu0 0.0
    %1894 = vmatprep.subr.mxu0 0.0
    %1895 = vmatpush1.msra.mxu0 0.0
    %1896 = vmatprep.subr.mxu0 0.0
    %1897 = vmatpush1.msra.mxu0 0.0
    %1898 = vmatprep.subr.mxu0 0.0
    %1899 = vmatpush1.msra.mxu0 0.0
    %1900 = vmatprep.subr.mxu0 0.0
    %1901 = vmatpush1.msra.mxu0 0.0
    %1902 = vmatprep.subr.mxu0 0.0
    %1903 = vmatpush1.msra.mxu0 0.0
    %1904 = vmatprep.subr.mxu0 0.0
    %1905 = vmatpush1.msra.mxu0 0.0
    %1906 = vmatprep.subr.mxu0 0.0
    %1907 = vmatpush1.msra.mxu0 %v44
    %1908 = vmatprep.subr.mxu0 0.0
    %1909 = vmatpush1.msra.mxu0 %v43
    %1910 = vmatprep.subr.mxu0 0.0
    %1911 = vmatpush1.msra.mxu0 %v42
    %1912 = vmatprep.subr.mxu0 0.0
    %1913 = vmatpush1.msra.mxu0 %v41
    %1914 = vmatprep.subr.mxu0 0.0
    %1915 = vmatpush2.msra.mxu0 0.0
    %1916 = vmatprep.subr.mxu0 0.0
    %1917 = vmatpush2.msra.mxu0 0.0
    %1918 = vmatprep.subr.mxu0 0.0
    %1919 = vmatpush2.msra.mxu0 0.0
    %1920 = vmatprep.subr.mxu0 0.0
    %1921 = vmatpush2.msra.mxu0 0.0
    %1922 = vmatprep.subr.mxu0 0.0
    %1923 = vmatpush2.msra.mxu0 0.0
    %1924 = vmatprep.subr.mxu0 0.0
    %1925 = vmatpush2.msra.mxu0 0.0
    %1926 = vmatprep.subr.mxu0 0.0
    %1927 = vmatpush2.msra.mxu0 0.0
    %1928 = vmatprep.subr.mxu0 0.0
    %1929 = vmatpush2.msra.mxu0 0.0
    %1930 = vmatprep.subr.mxu0 0.0
    %1931 = vmatpush2.msra.mxu0 0.0
    %1932 = vmatprep.subr.mxu0 0.0
    %1933 = vmatpush2.msra.mxu0 0.0
    %1934 = vmatprep.subr.mxu0 0.0
    %1935 = vmatpush2.msra.mxu0 0.0
    %1936 = vmatprep.subr.mxu0 0.0
    %1937 = vmatpush2.msra.mxu0 0.0
    %1938 = vmatprep.subr.mxu0 0.0
    %1939 = vmatpush2.msra.mxu0 0.0
    %1940 = vmatprep.subr.mxu0 0.0
    %1941 = vmatpush2.msra.mxu0 0.0
    %1942 = vmatprep.subr.mxu0 0.0
    %1943 = vmatpush2.msra.mxu0 0.0
    %1944 = vmatprep.subr.mxu0 0.0
    %1945 = vmatpush2.msra.mxu0 0.0
    %1946 = vmatprep.mubr.f32.mxu0 0.0
    %1947 = vmatmul.mubr.f32.gmra.mxu0 %v1661
    %v1948 = vpop.f32.mrf.mxu0
    %v1949 = vadd.f32 0.0, %v1948
    %v1950 = vpop.f32.mrf.mxu0
    %1951 = vdwg.mxu0
    %v1952 = vadd.f32 %v1881, %v1949
    %v1953 = vxor.u32 %v1733, 2147483648
    %v1954 = vmul.f32 %v1953, 1.442695
    %v1955 = vpow.pop %v1954
    %v1956 = vadd.f32 %v1955, 1.0
    %v1957 = vrcp.pop %v1956
    %v1958 = vmul.f32 1.0, %v1957
    %v1959 = vxor.u32 %v1806, 2147483648
    %v1960 = vmul.f32 %v1959, 1.442695
    %v1961 = vpow.pop %v1960
    %v1962 = vadd.f32 %v1961, 1.0
    %v1963 = vrcp.pop %v1962
    %v1964 = vmul.f32 1.0, %v1963
    %v1965 = vtanh.pop %v1879
    %v1966 = vxor.u32 %v1952, 2147483648
    %v1967 = vmul.f32 %v1966, 1.442695
    %v1968 = vpow.pop %v1967
    %v1969 = vadd.f32 %v1968, 1.0
    %v1970 = vrcp.pop %v1969
    %v1971 = vmul.f32 1.0, %v1970
    %v1972 = vmul.f32 %v1964, %v1654
    %v1973 = vmul.f32 %v1958, %v1965
    %v1974 = vadd.f32 %v1972, %v1973
    %v1975 = vtanh.pop %v1974
    %v1976 = vmul.f32 %v1971, %v1975
    %1978 = vrot.lane.b32.xlu0 %v1976, 32
    %v1979 = vpop.permute.xlu0 %1978
    %1981 = vst.msk [vmem:[#allocation2 + $0x4] sm:$0xf] %vm689, %v1979
    %s1982 = scalar_lea.vmem %s0, 24
    %v1983 = vld [vmem:[%s1982] sm:$0xf]
    %v1984 = vsel %vm46, %v1976, 0
    %1986 = vmatprep.subr.mxu0 0.0
    %1987 = vmatpush1.msra.mxu0 0.0
    %1988 = vmatprep.subr.mxu0 0.0
    %1989 = vmatpush1.msra.mxu0 0.0
    %1990 = vmatprep.subr.mxu0 0.0
    %1991 = vmatpush1.msra.mxu0 0.0
    %1992 = vmatprep.subr.mxu0 0.0
    %1993 = vmatpush1.msra.mxu0 0.0
    %1994 = vmatprep.subr.mxu0 0.0
    %1995 = vmatpush1.msra.mxu0 0.0
    %1996 = vmatprep.subr.mxu0 0.0
    %1997 = vmatpush1.msra.mxu0 0.0
    %1998 = vmatprep.subr.mxu0 0.0
    %1999 = vmatpush1.msra.mxu0 0.0
    %2000 = vmatprep.subr.mxu0 0.0
    %2001 = vmatpush1.msra.mxu0 0.0
    %2002 = vmatprep.subr.mxu0 0.0
    %2003 = vmatpush1.msra.mxu0 0.0
    %2004 = vmatprep.subr.mxu0 0.0
    %2005 = vmatpush1.msra.mxu0 0.0
    %2006 = vmatprep.subr.mxu0 0.0
    %2007 = vmatpush1.msra.mxu0 0.0
    %2008 = vmatprep.subr.mxu0 0.0
    %2009 = vmatpush1.msra.mxu0 0.0
    %2010 = vmatprep.subr.mxu0 0.0
    %2011 = vmatpush1.msra.mxu0 %v29
    %2012 = vmatprep.subr.mxu0 0.0
    %2013 = vmatpush1.msra.mxu0 %v28
    %2014 = vmatprep.subr.mxu0 0.0
    %2015 = vmatpush1.msra.mxu0 %v27
    %2016 = vmatprep.subr.mxu0 0.0
    %2017 = vmatpush1.msra.mxu0 %v26
    %2018 = vmatprep.subr.mxu0 0.0
    %2019 = vmatpush2.msra.mxu0 0.0
    %2020 = vmatprep.subr.mxu0 0.0
    %2021 = vmatpush2.msra.mxu0 0.0
    %2022 = vmatprep.subr.mxu0 0.0
    %2023 = vmatpush2.msra.mxu0 0.0
    %2024 = vmatprep.subr.mxu0 0.0
    %2025 = vmatpush2.msra.mxu0 0.0
    %2026 = vmatprep.subr.mxu0 0.0
    %2027 = vmatpush2.msra.mxu0 0.0
    %2028 = vmatprep.subr.mxu0 0.0
    %2029 = vmatpush2.msra.mxu0 0.0
    %2030 = vmatprep.subr.mxu0 0.0
    %2031 = vmatpush2.msra.mxu0 0.0
    %2032 = vmatprep.subr.mxu0 0.0
    %2033 = vmatpush2.msra.mxu0 0.0
    %2034 = vmatprep.subr.mxu0 0.0
    %2035 = vmatpush2.msra.mxu0 0.0
    %2036 = vmatprep.subr.mxu0 0.0
    %2037 = vmatpush2.msra.mxu0 0.0
    %2038 = vmatprep.subr.mxu0 0.0
    %2039 = vmatpush2.msra.mxu0 0.0
    %2040 = vmatprep.subr.mxu0 0.0
    %2041 = vmatpush2.msra.mxu0 0.0
    %2042 = vmatprep.subr.mxu0 0.0
    %2043 = vmatpush2.msra.mxu0 0.0
    %2044 = vmatprep.subr.mxu0 0.0
    %2045 = vmatpush2.msra.mxu0 0.0
    %2046 = vmatprep.subr.mxu0 0.0
    %2047 = vmatpush2.msra.mxu0 0.0
    %2048 = vmatprep.subr.mxu0 0.0
    %2049 = vmatpush2.msra.mxu0 0.0
    %2050 = vmatprep.mubr.f32.mxu0 0.0
    %2051 = vmatmul.mubr.f32.gmra.mxu0 %v1984
    %v2052 = vpop.f32.mrf.mxu0
    %v2053 = vadd.f32 0.0, %v2052
    %v2054 = vpop.f32.mrf.mxu0
    %2055 = vdwg.mxu0
    %v2056 = vadd.f32 %v1983, %v2053
    %s2057 = scalar_lea.vmem %s0, 56
    %v2058 = vld [vmem:[%s2057] sm:$0xf]
    %2059 = vmatprep.subr.mxu0 0.0
    %2060 = vmatpush1.msra.mxu0 0.0
    %2061 = vmatprep.subr.mxu0 0.0
    %2062 = vmatpush1.msra.mxu0 0.0
    %2063 = vmatprep.subr.mxu0 0.0
    %2064 = vmatpush1.msra.mxu0 0.0
    %2065 = vmatprep.subr.mxu0 0.0
    %2066 = vmatpush1.msra.mxu0 0.0
    %2067 = vmatprep.subr.mxu0 0.0
    %2068 = vmatpush1.msra.mxu0 0.0
    %2069 = vmatprep.subr.mxu0 0.0
    %2070 = vmatpush1.msra.mxu0 0.0
    %2071 = vmatprep.subr.mxu0 0.0
    %2072 = vmatpush1.msra.mxu0 0.0
    %2073 = vmatprep.subr.mxu0 0.0
    %2074 = vmatpush1.msra.mxu0 0.0
    %2075 = vmatprep.subr.mxu0 0.0
    %2076 = vmatpush1.msra.mxu0 0.0
    %2077 = vmatprep.subr.mxu0 0.0
    %2078 = vmatpush1.msra.mxu0 0.0
    %2079 = vmatprep.subr.mxu0 0.0
    %2080 = vmatpush1.msra.mxu0 0.0
    %2081 = vmatprep.subr.mxu0 0.0
    %2082 = vmatpush1.msra.mxu0 0.0
    %2083 = vmatprep.subr.mxu0 0.0
    %2084 = vmatpush1.msra.mxu0 %v34
    %2085 = vmatprep.subr.mxu0 0.0
    %2086 = vmatpush1.msra.mxu0 %v33
    %2087 = vmatprep.subr.mxu0 0.0
    %2088 = vmatpush1.msra.mxu0 %v32
    %2089 = vmatprep.subr.mxu0 0.0
    %2090 = vmatpush1.msra.mxu0 %v31
    %2091 = vmatprep.subr.mxu0 0.0
    %2092 = vmatpush2.msra.mxu0 0.0
    %2093 = vmatprep.subr.mxu0 0.0
    %2094 = vmatpush2.msra.mxu0 0.0
    %2095 = vmatprep.subr.mxu0 0.0
    %2096 = vmatpush2.msra.mxu0 0.0
    %2097 = vmatprep.subr.mxu0 0.0
    %2098 = vmatpush2.msra.mxu0 0.0
    %2099 = vmatprep.subr.mxu0 0.0
    %2100 = vmatpush2.msra.mxu0 0.0
    %2101 = vmatprep.subr.mxu0 0.0
    %2102 = vmatpush2.msra.mxu0 0.0
    %2103 = vmatprep.subr.mxu0 0.0
    %2104 = vmatpush2.msra.mxu0 0.0
    %2105 = vmatprep.subr.mxu0 0.0
    %2106 = vmatpush2.msra.mxu0 0.0
    %2107 = vmatprep.subr.mxu0 0.0
    %2108 = vmatpush2.msra.mxu0 0.0
    %2109 = vmatprep.subr.mxu0 0.0
    %2110 = vmatpush2.msra.mxu0 0.0
    %2111 = vmatprep.subr.mxu0 0.0
    %2112 = vmatpush2.msra.mxu0 0.0
    %2113 = vmatprep.subr.mxu0 0.0
    %2114 = vmatpush2.msra.mxu0 0.0
    %2115 = vmatprep.subr.mxu0 0.0
    %2116 = vmatpush2.msra.mxu0 0.0
    %2117 = vmatprep.subr.mxu0 0.0
    %2118 = vmatpush2.msra.mxu0 0.0
    %2119 = vmatprep.subr.mxu0 0.0
    %2120 = vmatpush2.msra.mxu0 0.0
    %2121 = vmatprep.subr.mxu0 0.0
    %2122 = vmatpush2.msra.mxu0 0.0
    %2123 = vmatprep.mubr.f32.mxu0 0.0
    %2124 = vmatmul.mubr.f32.gmra.mxu0 %v1984
    %v2125 = vpop.f32.mrf.mxu0
    %v2126 = vadd.f32 0.0, %v2125
    %v2127 = vpop.f32.mrf.mxu0
    %2128 = vdwg.mxu0
    %v2129 = vadd.f32 %v2058, %v2126
    %s2130 = scalar_lea.vmem %s0, 88
    %v2131 = vld [vmem:[%s2130] sm:$0xf]
    %2132 = vmatprep.subr.mxu0 0.0
    %2133 = vmatpush1.msra.mxu0 0.0
    %2134 = vmatprep.subr.mxu0 0.0
    %2135 = vmatpush1.msra.mxu0 0.0
    %2136 = vmatprep.subr.mxu0 0.0
    %2137 = vmatpush1.msra.mxu0 0.0
    %2138 = vmatprep.subr.mxu0 0.0
    %2139 = vmatpush1.msra.mxu0 0.0
    %2140 = vmatprep.subr.mxu0 0.0
    %2141 = vmatpush1.msra.mxu0 0.0
    %2142 = vmatprep.subr.mxu0 0.0
    %2143 = vmatpush1.msra.mxu0 0.0
    %2144 = vmatprep.subr.mxu0 0.0
    %2145 = vmatpush1.msra.mxu0 0.0
    %2146 = vmatprep.subr.mxu0 0.0
    %2147 = vmatpush1.msra.mxu0 0.0
    %2148 = vmatprep.subr.mxu0 0.0
    %2149 = vmatpush1.msra.mxu0 0.0
    %2150 = vmatprep.subr.mxu0 0.0
    %2151 = vmatpush1.msra.mxu0 0.0
    %2152 = vmatprep.subr.mxu0 0.0
    %2153 = vmatpush1.msra.mxu0 0.0
    %2154 = vmatprep.subr.mxu0 0.0
    %2155 = vmatpush1.msra.mxu0 0.0
    %2156 = vmatprep.subr.mxu0 0.0
    %2157 = vmatpush1.msra.mxu0 %v39
    %2158 = vmatprep.subr.mxu0 0.0
    %2159 = vmatpush1.msra.mxu0 %v38
    %2160 = vmatprep.subr.mxu0 0.0
    %2161 = vmatpush1.msra.mxu0 %v37
    %2162 = vmatprep.subr.mxu0 0.0
    %2163 = vmatpush1.msra.mxu0 %v36
    %2164 = vmatprep.subr.mxu0 0.0
    %2165 = vmatpush2.msra.mxu0 0.0
    %2166 = vmatprep.subr.mxu0 0.0
    %2167 = vmatpush2.msra.mxu0 0.0
    %2168 = vmatprep.subr.mxu0 0.0
    %2169 = vmatpush2.msra.mxu0 0.0
    %2170 = vmatprep.subr.mxu0 0.0
    %2171 = vmatpush2.msra.mxu0 0.0
    %2172 = vmatprep.subr.mxu0 0.0
    %2173 = vmatpush2.msra.mxu0 0.0
    %2174 = vmatprep.subr.mxu0 0.0
    %2175 = vmatpush2.msra.mxu0 0.0
    %2176 = vmatprep.subr.mxu0 0.0
    %2177 = vmatpush2.msra.mxu0 0.0
    %2178 = vmatprep.subr.mxu0 0.0
    %2179 = vmatpush2.msra.mxu0 0.0
    %2180 = vmatprep.subr.mxu0 0.0
    %2181 = vmatpush2.msra.mxu0 0.0
    %2182 = vmatprep.subr.mxu0 0.0
    %2183 = vmatpush2.msra.mxu0 0.0
    %2184 = vmatprep.subr.mxu0 0.0
    %2185 = vmatpush2.msra.mxu0 0.0
    %2186 = vmatprep.subr.mxu0 0.0
    %2187 = vmatpush2.msra.mxu0 0.0
    %2188 = vmatprep.subr.mxu0 0.0
    %2189 = vmatpush2.msra.mxu0 0.0
    %2190 = vmatprep.subr.mxu0 0.0
    %2191 = vmatpush2.msra.mxu0 0.0
    %2192 = vmatprep.subr.mxu0 0.0
    %2193 = vmatpush2.msra.mxu0 0.0
    %2194 = vmatprep.subr.mxu0 0.0
    %2195 = vmatpush2.msra.mxu0 0.0
    %2196 = vmatprep.mubr.f32.mxu0 0.0
    %2197 = vmatmul.mubr.f32.gmra.mxu0 %v1984
    %v2198 = vpop.f32.mrf.mxu0
    %v2199 = vadd.f32 0.0, %v2198
    %v2200 = vpop.f32.mrf.mxu0
    %2201 = vdwg.mxu0
    %v2202 = vadd.f32 %v2131, %v2199
    %s2203 = scalar_lea.vmem %s0, 120
    %v2204 = vld [vmem:[%s2203] sm:$0xf]
    %2205 = vmatprep.subr.mxu0 0.0
    %2206 = vmatpush1.msra.mxu0 0.0
    %2207 = vmatprep.subr.mxu0 0.0
    %2208 = vmatpush1.msra.mxu0 0.0
    %2209 = vmatprep.subr.mxu0 0.0
    %2210 = vmatpush1.msra.mxu0 0.0
    %2211 = vmatprep.subr.mxu0 0.0
    %2212 = vmatpush1.msra.mxu0 0.0
    %2213 = vmatprep.subr.mxu0 0.0
    %2214 = vmatpush1.msra.mxu0 0.0
    %2215 = vmatprep.subr.mxu0 0.0
    %2216 = vmatpush1.msra.mxu0 0.0
    %2217 = vmatprep.subr.mxu0 0.0
    %2218 = vmatpush1.msra.mxu0 0.0
    %2219 = vmatprep.subr.mxu0 0.0
    %2220 = vmatpush1.msra.mxu0 0.0
    %2221 = vmatprep.subr.mxu0 0.0
    %2222 = vmatpush1.msra.mxu0 0.0
    %2223 = vmatprep.subr.mxu0 0.0
    %2224 = vmatpush1.msra.mxu0 0.0
    %2225 = vmatprep.subr.mxu0 0.0
    %2226 = vmatpush1.msra.mxu0 0.0
    %2227 = vmatprep.subr.mxu0 0.0
    %2228 = vmatpush1.msra.mxu0 0.0
    %2229 = vmatprep.subr.mxu0 0.0
    %2230 = vmatpush1.msra.mxu0 %v44
    %2231 = vmatprep.subr.mxu0 0.0
    %2232 = vmatpush1.msra.mxu0 %v43
    %2233 = vmatprep.subr.mxu0 0.0
    %2234 = vmatpush1.msra.mxu0 %v42
    %2235 = vmatprep.subr.mxu0 0.0
    %2236 = vmatpush1.msra.mxu0 %v41
    %2237 = vmatprep.subr.mxu0 0.0
    %2238 = vmatpush2.msra.mxu0 0.0
    %2239 = vmatprep.subr.mxu0 0.0
    %2240 = vmatpush2.msra.mxu0 0.0
    %2241 = vmatprep.subr.mxu0 0.0
    %2242 = vmatpush2.msra.mxu0 0.0
    %2243 = vmatprep.subr.mxu0 0.0
    %2244 = vmatpush2.msra.mxu0 0.0
    %2245 = vmatprep.subr.mxu0 0.0
    %2246 = vmatpush2.msra.mxu0 0.0
    %2247 = vmatprep.subr.mxu0 0.0
    %2248 = vmatpush2.msra.mxu0 0.0
    %2249 = vmatprep.subr.mxu0 0.0
    %2250 = vmatpush2.msra.mxu0 0.0
    %2251 = vmatprep.subr.mxu0 0.0
    %2252 = vmatpush2.msra.mxu0 0.0
    %2253 = vmatprep.subr.mxu0 0.0
    %2254 = vmatpush2.msra.mxu0 0.0
    %2255 = vmatprep.subr.mxu0 0.0
    %2256 = vmatpush2.msra.mxu0 0.0
    %2257 = vmatprep.subr.mxu0 0.0
    %2258 = vmatpush2.msra.mxu0 0.0
    %2259 = vmatprep.subr.mxu0 0.0
    %2260 = vmatpush2.msra.mxu0 0.0
    %2261 = vmatprep.subr.mxu0 0.0
    %2262 = vmatpush2.msra.mxu0 0.0
    %2263 = vmatprep.subr.mxu0 0.0
    %2264 = vmatpush2.msra.mxu0 0.0
    %2265 = vmatprep.subr.mxu0 0.0
    %2266 = vmatpush2.msra.mxu0 0.0
    %2267 = vmatprep.subr.mxu0 0.0
    %2268 = vmatpush2.msra.mxu0 0.0
    %2269 = vmatprep.mubr.f32.mxu0 0.0
    %2270 = vmatmul.mubr.f32.gmra.mxu0 %v1984
    %v2271 = vpop.f32.mrf.mxu0
    %v2272 = vadd.f32 0.0, %v2271
    %v2273 = vpop.f32.mrf.mxu0
    %2274 = vdwg.mxu0
    %v2275 = vadd.f32 %v2204, %v2272
    %v2276 = vxor.u32 %v2056, 2147483648
    %v2277 = vmul.f32 %v2276, 1.442695
    %v2278 = vpow.pop %v2277
    %v2279 = vadd.f32 %v2278, 1.0
    %v2280 = vrcp.pop %v2279
    %v2281 = vmul.f32 1.0, %v2280
    %v2282 = vxor.u32 %v2129, 2147483648
    %v2283 = vmul.f32 %v2282, 1.442695
    %v2284 = vpow.pop %v2283
    %v2285 = vadd.f32 %v2284, 1.0
    %v2286 = vrcp.pop %v2285
    %v2287 = vmul.f32 1.0, %v2286
    %v2288 = vtanh.pop %v2202
    %v2289 = vxor.u32 %v2275, 2147483648
    %v2290 = vmul.f32 %v2289, 1.442695
    %v2291 = vpow.pop %v2290
    %v2292 = vadd.f32 %v2291, 1.0
    %v2293 = vrcp.pop %v2292
    %v2294 = vmul.f32 1.0, %v2293
    %v2295 = vmul.f32 %v2287, %v1974
    %v2296 = vmul.f32 %v2281, %v2288
    %v2297 = vadd.f32 %v2295, %v2296
    %v2298 = vtanh.pop %v2297
    %v2299 = vmul.f32 %v2294, %v2298
    %2301 = vrot.lane.b32.xlu0 %v2299, 64
    %v2302 = vpop.permute.xlu0 %2301
    %2304 = vst.msk [vmem:[#allocation2 + $0x4] sm:$0xf] %vm1013, %v2302
    %s2305 = scalar_lea.vmem %s0, 28
    %v2306 = vld [vmem:[%s2305] sm:$0xf]
    %v2307 = vsel %vm46, %v2299, 0
    %2309 = vmatprep.subr.mxu0 0.0
    %2310 = vmatpush1.msra.mxu0 0.0
    %2311 = vmatprep.subr.mxu0 0.0
    %2312 = vmatpush1.msra.mxu0 0.0
    %2313 = vmatprep.subr.mxu0 0.0
    %2314 = vmatpush1.msra.mxu0 0.0
    %2315 = vmatprep.subr.mxu0 0.0
    %2316 = vmatpush1.msra.mxu0 0.0
    %2317 = vmatprep.subr.mxu0 0.0
    %2318 = vmatpush1.msra.mxu0 0.0
    %2319 = vmatprep.subr.mxu0 0.0
    %2320 = vmatpush1.msra.mxu0 0.0
    %2321 = vmatprep.subr.mxu0 0.0
    %2322 = vmatpush1.msra.mxu0 0.0
    %2323 = vmatprep.subr.mxu0 0.0
    %2324 = vmatpush1.msra.mxu0 0.0
    %2325 = vmatprep.subr.mxu0 0.0
    %2326 = vmatpush1.msra.mxu0 0.0
    %2327 = vmatprep.subr.mxu0 0.0
    %2328 = vmatpush1.msra.mxu0 0.0
    %2329 = vmatprep.subr.mxu0 0.0
    %2330 = vmatpush1.msra.mxu0 0.0
    %2331 = vmatprep.subr.mxu0 0.0
    %2332 = vmatpush1.msra.mxu0 0.0
    %2333 = vmatprep.subr.mxu0 0.0
    %2334 = vmatpush1.msra.mxu0 %v29
    %2335 = vmatprep.subr.mxu0 0.0
    %2336 = vmatpush1.msra.mxu0 %v28
    %2337 = vmatprep.subr.mxu0 0.0
    %2338 = vmatpush1.msra.mxu0 %v27
    %2339 = vmatprep.subr.mxu0 0.0
    %2340 = vmatpush1.msra.mxu0 %v26
    %2341 = vmatprep.subr.mxu0 0.0
    %2342 = vmatpush2.msra.mxu0 0.0
    %2343 = vmatprep.subr.mxu0 0.0
    %2344 = vmatpush2.msra.mxu0 0.0
    %2345 = vmatprep.subr.mxu0 0.0
    %2346 = vmatpush2.msra.mxu0 0.0
    %2347 = vmatprep.subr.mxu0 0.0
    %2348 = vmatpush2.msra.mxu0 0.0
    %2349 = vmatprep.subr.mxu0 0.0
    %2350 = vmatpush2.msra.mxu0 0.0
    %2351 = vmatprep.subr.mxu0 0.0
    %2352 = vmatpush2.msra.mxu0 0.0
    %2353 = vmatprep.subr.mxu0 0.0
    %2354 = vmatpush2.msra.mxu0 0.0
    %2355 = vmatprep.subr.mxu0 0.0
    %2356 = vmatpush2.msra.mxu0 0.0
    %2357 = vmatprep.subr.mxu0 0.0
    %2358 = vmatpush2.msra.mxu0 0.0
    %2359 = vmatprep.subr.mxu0 0.0
    %2360 = vmatpush2.msra.mxu0 0.0
    %2361 = vmatprep.subr.mxu0 0.0
    %2362 = vmatpush2.msra.mxu0 0.0
    %2363 = vmatprep.subr.mxu0 0.0
    %2364 = vmatpush2.msra.mxu0 0.0
    %2365 = vmatprep.subr.mxu0 0.0
    %2366 = vmatpush2.msra.mxu0 0.0
    %2367 = vmatprep.subr.mxu0 0.0
    %2368 = vmatpush2.msra.mxu0 0.0
    %2369 = vmatprep.subr.mxu0 0.0
    %2370 = vmatpush2.msra.mxu0 0.0
    %2371 = vmatprep.subr.mxu0 0.0
    %2372 = vmatpush2.msra.mxu0 0.0
    %2373 = vmatprep.mubr.f32.mxu0 0.0
    %2374 = vmatmul.mubr.f32.gmra.mxu0 %v2307
    %v2375 = vpop.f32.mrf.mxu0
    %v2376 = vadd.f32 0.0, %v2375
    %v2377 = vpop.f32.mrf.mxu0
    %2378 = vdwg.mxu0
    %v2379 = vadd.f32 %v2306, %v2376
    %s2380 = scalar_lea.vmem %s0, 60
    %v2381 = vld [vmem:[%s2380] sm:$0xf]
    %2382 = vmatprep.subr.mxu0 0.0
    %2383 = vmatpush1.msra.mxu0 0.0
    %2384 = vmatprep.subr.mxu0 0.0
    %2385 = vmatpush1.msra.mxu0 0.0
    %2386 = vmatprep.subr.mxu0 0.0
    %2387 = vmatpush1.msra.mxu0 0.0
    %2388 = vmatprep.subr.mxu0 0.0
    %2389 = vmatpush1.msra.mxu0 0.0
    %2390 = vmatprep.subr.mxu0 0.0
    %2391 = vmatpush1.msra.mxu0 0.0
    %2392 = vmatprep.subr.mxu0 0.0
    %2393 = vmatpush1.msra.mxu0 0.0
    %2394 = vmatprep.subr.mxu0 0.0
    %2395 = vmatpush1.msra.mxu0 0.0
    %2396 = vmatprep.subr.mxu0 0.0
    %2397 = vmatpush1.msra.mxu0 0.0
    %2398 = vmatprep.subr.mxu0 0.0
    %2399 = vmatpush1.msra.mxu0 0.0
    %2400 = vmatprep.subr.mxu0 0.0
    %2401 = vmatpush1.msra.mxu0 0.0
    %2402 = vmatprep.subr.mxu0 0.0
    %2403 = vmatpush1.msra.mxu0 0.0
    %2404 = vmatprep.subr.mxu0 0.0
    %2405 = vmatpush1.msra.mxu0 0.0
    %2406 = vmatprep.subr.mxu0 0.0
    %2407 = vmatpush1.msra.mxu0 %v34
    %2408 = vmatprep.subr.mxu0 0.0
    %2409 = vmatpush1.msra.mxu0 %v33
    %2410 = vmatprep.subr.mxu0 0.0
    %2411 = vmatpush1.msra.mxu0 %v32
    %2412 = vmatprep.subr.mxu0 0.0
    %2413 = vmatpush1.msra.mxu0 %v31
    %2414 = vmatprep.subr.mxu0 0.0
    %2415 = vmatpush2.msra.mxu0 0.0
    %2416 = vmatprep.subr.mxu0 0.0
    %2417 = vmatpush2.msra.mxu0 0.0
    %2418 = vmatprep.subr.mxu0 0.0
    %2419 = vmatpush2.msra.mxu0 0.0
    %2420 = vmatprep.subr.mxu0 0.0
    %2421 = vmatpush2.msra.mxu0 0.0
    %2422 = vmatprep.subr.mxu0 0.0
    %2423 = vmatpush2.msra.mxu0 0.0
    %2424 = vmatprep.subr.mxu0 0.0
    %2425 = vmatpush2.msra.mxu0 0.0
    %2426 = vmatprep.subr.mxu0 0.0
    %2427 = vmatpush2.msra.mxu0 0.0
    %2428 = vmatprep.subr.mxu0 0.0
    %2429 = vmatpush2.msra.mxu0 0.0
    %2430 = vmatprep.subr.mxu0 0.0
    %2431 = vmatpush2.msra.mxu0 0.0
    %2432 = vmatprep.subr.mxu0 0.0
    %2433 = vmatpush2.msra.mxu0 0.0
    %2434 = vmatprep.subr.mxu0 0.0
    %2435 = vmatpush2.msra.mxu0 0.0
    %2436 = vmatprep.subr.mxu0 0.0
    %2437 = vmatpush2.msra.mxu0 0.0
    %2438 = vmatprep.subr.mxu0 0.0
    %2439 = vmatpush2.msra.mxu0 0.0
    %2440 = vmatprep.subr.mxu0 0.0
    %2441 = vmatpush2.msra.mxu0 0.0
    %2442 = vmatprep.subr.mxu0 0.0
    %2443 = vmatpush2.msra.mxu0 0.0
    %2444 = vmatprep.subr.mxu0 0.0
    %2445 = vmatpush2.msra.mxu0 0.0
    %2446 = vmatprep.mubr.f32.mxu0 0.0
    %2447 = vmatmul.mubr.f32.gmra.mxu0 %v2307
    %v2448 = vpop.f32.mrf.mxu0
    %v2449 = vadd.f32 0.0, %v2448
    %v2450 = vpop.f32.mrf.mxu0
    %2451 = vdwg.mxu0
    %v2452 = vadd.f32 %v2381, %v2449
    %s2453 = scalar_lea.vmem %s0, 92
    %v2454 = vld [vmem:[%s2453] sm:$0xf]
    %2455 = vmatprep.subr.mxu0 0.0
    %2456 = vmatpush1.msra.mxu0 0.0
    %2457 = vmatprep.subr.mxu0 0.0
    %2458 = vmatpush1.msra.mxu0 0.0
    %2459 = vmatprep.subr.mxu0 0.0
    %2460 = vmatpush1.msra.mxu0 0.0
    %2461 = vmatprep.subr.mxu0 0.0
    %2462 = vmatpush1.msra.mxu0 0.0
    %2463 = vmatprep.subr.mxu0 0.0
    %2464 = vmatpush1.msra.mxu0 0.0
    %2465 = vmatprep.subr.mxu0 0.0
    %2466 = vmatpush1.msra.mxu0 0.0
    %2467 = vmatprep.subr.mxu0 0.0
    %2468 = vmatpush1.msra.mxu0 0.0
    %2469 = vmatprep.subr.mxu0 0.0
    %2470 = vmatpush1.msra.mxu0 0.0
    %2471 = vmatprep.subr.mxu0 0.0
    %2472 = vmatpush1.msra.mxu0 0.0
    %2473 = vmatprep.subr.mxu0 0.0
    %2474 = vmatpush1.msra.mxu0 0.0
    %2475 = vmatprep.subr.mxu0 0.0
    %2476 = vmatpush1.msra.mxu0 0.0
    %2477 = vmatprep.subr.mxu0 0.0
    %2478 = vmatpush1.msra.mxu0 0.0
    %2479 = vmatprep.subr.mxu0 0.0
    %2480 = vmatpush1.msra.mxu0 %v39
    %2481 = vmatprep.subr.mxu0 0.0
    %2482 = vmatpush1.msra.mxu0 %v38
    %2483 = vmatprep.subr.mxu0 0.0
    %2484 = vmatpush1.msra.mxu0 %v37
    %2485 = vmatprep.subr.mxu0 0.0
    %2486 = vmatpush1.msra.mxu0 %v36
    %2487 = vmatprep.subr.mxu0 0.0
    %2488 = vmatpush2.msra.mxu0 0.0
    %2489 = vmatprep.subr.mxu0 0.0
    %2490 = vmatpush2.msra.mxu0 0.0
    %2491 = vmatprep.subr.mxu0 0.0
    %2492 = vmatpush2.msra.mxu0 0.0
    %2493 = vmatprep.subr.mxu0 0.0
    %2494 = vmatpush2.msra.mxu0 0.0
    %2495 = vmatprep.subr.mxu0 0.0
    %2496 = vmatpush2.msra.mxu0 0.0
    %2497 = vmatprep.subr.mxu0 0.0
    %2498 = vmatpush2.msra.mxu0 0.0
    %2499 = vmatprep.subr.mxu0 0.0
    %2500 = vmatpush2.msra.mxu0 0.0
    %2501 = vmatprep.subr.mxu0 0.0
    %2502 = vmatpush2.msra.mxu0 0.0
    %2503 = vmatprep.subr.mxu0 0.0
    %2504 = vmatpush2.msra.mxu0 0.0
    %2505 = vmatprep.subr.mxu0 0.0
    %2506 = vmatpush2.msra.mxu0 0.0
    %2507 = vmatprep.subr.mxu0 0.0
    %2508 = vmatpush2.msra.mxu0 0.0
    %2509 = vmatprep.subr.mxu0 0.0
    %2510 = vmatpush2.msra.mxu0 0.0
    %2511 = vmatprep.subr.mxu0 0.0
    %2512 = vmatpush2.msra.mxu0 0.0
    %2513 = vmatprep.subr.mxu0 0.0
    %2514 = vmatpush2.msra.mxu0 0.0
    %2515 = vmatprep.subr.mxu0 0.0
    %2516 = vmatpush2.msra.mxu0 0.0
    %2517 = vmatprep.subr.mxu0 0.0
    %2518 = vmatpush2.msra.mxu0 0.0
    %2519 = vmatprep.mubr.f32.mxu0 0.0
    %2520 = vmatmul.mubr.f32.gmra.mxu0 %v2307
    %v2521 = vpop.f32.mrf.mxu0
    %v2522 = vadd.f32 0.0, %v2521
    %v2523 = vpop.f32.mrf.mxu0
    %2524 = vdwg.mxu0
    %v2525 = vadd.f32 %v2454, %v2522
    %s2526 = scalar_lea.vmem %s0, 124
    %v2527 = vld [vmem:[%s2526] sm:$0xf]
    %2528 = vmatprep.subr.mxu0 0.0
    %2529 = vmatpush1.msra.mxu0 0.0
    %2530 = vmatprep.subr.mxu0 0.0
    %2531 = vmatpush1.msra.mxu0 0.0
    %2532 = vmatprep.subr.mxu0 0.0
    %2533 = vmatpush1.msra.mxu0 0.0
    %2534 = vmatprep.subr.mxu0 0.0
    %2535 = vmatpush1.msra.mxu0 0.0
    %2536 = vmatprep.subr.mxu0 0.0
    %2537 = vmatpush1.msra.mxu0 0.0
    %2538 = vmatprep.subr.mxu0 0.0
    %2539 = vmatpush1.msra.mxu0 0.0
    %2540 = vmatprep.subr.mxu0 0.0
    %2541 = vmatpush1.msra.mxu0 0.0
    %2542 = vmatprep.subr.mxu0 0.0
    %2543 = vmatpush1.msra.mxu0 0.0
    %2544 = vmatprep.subr.mxu0 0.0
    %2545 = vmatpush1.msra.mxu0 0.0
    %2546 = vmatprep.subr.mxu0 0.0
    %2547 = vmatpush1.msra.mxu0 0.0
    %2548 = vmatprep.subr.mxu0 0.0
    %2549 = vmatpush1.msra.mxu0 0.0
    %2550 = vmatprep.subr.mxu0 0.0
    %2551 = vmatpush1.msra.mxu0 0.0
    %2552 = vmatprep.subr.mxu0 0.0
    %2553 = vmatpush1.msra.mxu0 %v44
    %2554 = vmatprep.subr.mxu0 0.0
    %2555 = vmatpush1.msra.mxu0 %v43
    %2556 = vmatprep.subr.mxu0 0.0
    %2557 = vmatpush1.msra.mxu0 %v42
    %2558 = vmatprep.subr.mxu0 0.0
    %2559 = vmatpush1.msra.mxu0 %v41
    %2560 = vmatprep.subr.mxu0 0.0
    %2561 = vmatpush2.msra.mxu0 0.0
    %2562 = vmatprep.subr.mxu0 0.0
    %2563 = vmatpush2.msra.mxu0 0.0
    %2564 = vmatprep.subr.mxu0 0.0
    %2565 = vmatpush2.msra.mxu0 0.0
    %2566 = vmatprep.subr.mxu0 0.0
    %2567 = vmatpush2.msra.mxu0 0.0
    %2568 = vmatprep.subr.mxu0 0.0
    %2569 = vmatpush2.msra.mxu0 0.0
    %2570 = vmatprep.subr.mxu0 0.0
    %2571 = vmatpush2.msra.mxu0 0.0
    %2572 = vmatprep.subr.mxu0 0.0
    %2573 = vmatpush2.msra.mxu0 0.0
    %2574 = vmatprep.subr.mxu0 0.0
    %2575 = vmatpush2.msra.mxu0 0.0
    %2576 = vmatprep.subr.mxu0 0.0
    %2577 = vmatpush2.msra.mxu0 0.0
    %2578 = vmatprep.subr.mxu0 0.0
    %2579 = vmatpush2.msra.mxu0 0.0
    %2580 = vmatprep.subr.mxu0 0.0
    %2581 = vmatpush2.msra.mxu0 0.0
    %2582 = vmatprep.subr.mxu0 0.0
    %2583 = vmatpush2.msra.mxu0 0.0
    %2584 = vmatprep.subr.mxu0 0.0
    %2585 = vmatpush2.msra.mxu0 0.0
    %2586 = vmatprep.subr.mxu0 0.0
    %2587 = vmatpush2.msra.mxu0 0.0
    %2588 = vmatprep.subr.mxu0 0.0
    %2589 = vmatpush2.msra.mxu0 0.0
    %2590 = vmatprep.subr.mxu0 0.0
    %2591 = vmatpush2.msra.mxu0 0.0
    %2592 = vmatprep.mubr.f32.mxu0 0.0
    %2593 = vmatmul.mubr.f32.gmra.mxu0 %v2307
    %v2594 = vpop.f32.mrf.mxu0
    %v2595 = vadd.f32 0.0, %v2594
    %v2596 = vpop.f32.mrf.mxu0
    %2597 = vdwg.mxu0
    %v2598 = vadd.f32 %v2527, %v2595
    %v2599 = vxor.u32 %v2379, 2147483648
    %v2600 = vmul.f32 %v2599, 1.442695
    %v2601 = vpow.pop %v2600
    %v2602 = vadd.f32 %v2601, 1.0
    %v2603 = vrcp.pop %v2602
    %v2604 = vmul.f32 1.0, %v2603
    %v2605 = vxor.u32 %v2452, 2147483648
    %v2606 = vmul.f32 %v2605, 1.442695
    %v2607 = vpow.pop %v2606
    %v2608 = vadd.f32 %v2607, 1.0
    %v2609 = vrcp.pop %v2608
    %v2610 = vmul.f32 1.0, %v2609
    %v2611 = vtanh.pop %v2525
    %v2612 = vxor.u32 %v2598, 2147483648
    %v2613 = vmul.f32 %v2612, 1.442695
    %v2614 = vpow.pop %v2613
    %v2615 = vadd.f32 %v2614, 1.0
    %v2616 = vrcp.pop %v2615
    %v2617 = vmul.f32 1.0, %v2616
    %v2618 = vmul.f32 %v2610, %v2297
    %v2619 = vmul.f32 %v2604, %v2611
    %v2620 = vadd.f32 %v2618, %v2619
    %v2621 = vtanh.pop %v2620
    %v2622 = vmul.f32 %v2617, %v2621
    %2624 = vrot.lane.b32.xlu0 %v2622, 96
    %v2625 = vpop.permute.xlu0 %2624
    %2627 = vst.msk [vmem:[#allocation2 + $0x4] sm:$0xf] %vm1337, %v2625
    %v2628 = vld [vmem:[#allocation2] sm:$0xff]
    %v2629 = vld [vmem:[%s4] sm:$0xff]
    %v2630 = vld [vmem:[%s4 + $0x8] sm:$0xff]
    %v2631 = vld [vmem:[%s4 + $0x10] sm:$0xff]
    %v2632 = vld [vmem:[%s4 + $0x18] sm:$0xff]
    %v2633 = vld [vmem:[%s4 + $0x20] sm:$0xff]
    %v2634 = vld [vmem:[%s4 + $0x28] sm:$0xff]
    %v2635 = vld [vmem:[%s4 + $0x30] sm:$0xff]
    %v2636 = vld [vmem:[%s4 + $0x38] sm:$0xff]
    %v2637 = vld [vmem:[%s4 + $0x40] sm:$0xff]
    %v2638 = vld [vmem:[%s4 + $0x48] sm:$0xff]
    %v2639 = vld [vmem:[%s4 + $0x50] sm:$0xff]
    %v2640 = vld [vmem:[%s4 + $0x58] sm:$0xff]
    %v2641 = vld [vmem:[%s4 + $0x60] sm:$0xff]
    %v2642 = vld [vmem:[%s4 + $0x68] sm:$0xff]
    %v2643 = vld [vmem:[%s4 + $0x70] sm:$0xff]
    %v2644 = vld [vmem:[%s4 + $0x78] sm:$0xff]
    %v2645 = vld [vmem:[%s4 + $0x80] sm:$0xff]
    %v2646 = vld [vmem:[%s4 + $0x88] sm:$0xff]
    %v2647 = vld [vmem:[%s4 + $0x90] sm:$0xff]
    %v2648 = vld [vmem:[%s4 + $0x98] sm:$0xff]
    %v2649 = vld [vmem:[%s4 + $0xa0] sm:$0xff]
    %v2650 = vld [vmem:[%s4 + $0xa8] sm:$0xff]
    %v2651 = vld [vmem:[%s4 + $0xb0] sm:$0xff]
    %v2652 = vld [vmem:[%s4 + $0xb8] sm:$0xff]
    %v2653 = vld [vmem:[%s4 + $0xc0] sm:$0xff]
    %v2654 = vld [vmem:[%s4 + $0xc8] sm:$0xff]
    %v2655 = vld [vmem:[%s4 + $0xd0] sm:$0xff]
    %v2656 = vld [vmem:[%s4 + $0xd8] sm:$0xff]
    %v2657 = vld [vmem:[%s4 + $0xe0] sm:$0xff]
    %v2658 = vld [vmem:[%s4 + $0xe8] sm:$0xff]
    %v2659 = vld [vmem:[%s4 + $0xf0] sm:$0xff]
    %v2660 = vld [vmem:[%s4 + $0xf8] sm:$0xff]
    %v2661 = vld [vmem:[%s5] sm:$0x1]
    %v2663 = vlaneseq
    %v2664 = vshrl.u32 %v2663, 7
    %v2665 = vsub.s32 0, %v2664
    %v2666 = vrot.slane %v2661, %v2665
    %v2669 = vcombine.high %v2628, %v2628
    %2671 = vmatprep.subr.mxu0 0.0
    %2672 = vmatpush1.msra.mxu0 %v2644
    %2673 = vmatprep.subr.mxu0 0.0
    %2674 = vmatpush1.msra.mxu0 %v2643
    %2675 = vmatprep.subr.mxu0 0.0
    %2676 = vmatpush1.msra.mxu0 %v2642
    %2677 = vmatprep.subr.mxu0 0.0
    %2678 = vmatpush1.msra.mxu0 %v2641
    %2679 = vmatprep.subr.mxu0 0.0
    %2680 = vmatpush1.msra.mxu0 %v2640
    %2681 = vmatprep.subr.mxu0 0.0
    %2682 = vmatpush1.msra.mxu0 %v2639
    %2683 = vmatprep.subr.mxu0 0.0
    %2684 = vmatpush1.msra.mxu0 %v2638
    %2685 = vmatprep.subr.mxu0 0.0
    %2686 = vmatpush1.msra.mxu0 %v2637
    %2687 = vmatprep.subr.mxu0 0.0
    %2688 = vmatpush1.msra.mxu0 %v2636
    %2689 = vmatprep.subr.mxu0 0.0
    %2690 = vmatpush1.msra.mxu0 %v2635
    %2691 = vmatprep.subr.mxu0 0.0
    %2692 = vmatpush1.msra.mxu0 %v2634
    %2693 = vmatprep.subr.mxu0 0.0
    %2694 = vmatpush1.msra.mxu0 %v2633
    %2695 = vmatprep.subr.mxu0 0.0
    %2696 = vmatpush1.msra.mxu0 %v2632
    %2697 = vmatprep.subr.mxu0 0.0
    %2698 = vmatpush1.msra.mxu0 %v2631
    %2699 = vmatprep.subr.mxu0 0.0
    %2700 = vmatpush1.msra.mxu0 %v2630
    %2701 = vmatprep.subr.mxu0 0.0
    %2702 = vmatpush1.msra.mxu0 %v2629
    %2703 = vmatprep.subr.mxu0 0.0
    %2704 = vmatpush2.msra.mxu0 %v2660
    %2705 = vmatprep.subr.mxu0 0.0
    %2706 = vmatpush2.msra.mxu0 %v2659
    %2707 = vmatprep.subr.mxu0 0.0
    %2708 = vmatpush2.msra.mxu0 %v2658
    %2709 = vmatprep.subr.mxu0 0.0
    %2710 = vmatpush2.msra.mxu0 %v2657
    %2711 = vmatprep.subr.mxu0 0.0
    %2712 = vmatpush2.msra.mxu0 %v2656
    %2713 = vmatprep.subr.mxu0 0.0
    %2714 = vmatpush2.msra.mxu0 %v2655
    %2715 = vmatprep.subr.mxu0 0.0
    %2716 = vmatpush2.msra.mxu0 %v2654
    %2717 = vmatprep.subr.mxu0 0.0
    %2718 = vmatpush2.msra.mxu0 %v2653
    %2719 = vmatprep.subr.mxu0 0.0
    %2720 = vmatpush2.msra.mxu0 %v2652
    %2721 = vmatprep.subr.mxu0 0.0
    %2722 = vmatpush2.msra.mxu0 %v2651
    %2723 = vmatprep.subr.mxu0 0.0
    %2724 = vmatpush2.msra.mxu0 %v2650
    %2725 = vmatprep.subr.mxu0 0.0
    %2726 = vmatpush2.msra.mxu0 %v2649
    %2727 = vmatprep.subr.mxu0 0.0
    %2728 = vmatpush2.msra.mxu0 %v2648
    %2729 = vmatprep.subr.mxu0 0.0
    %2730 = vmatpush2.msra.mxu0 %v2647
    %2731 = vmatprep.subr.mxu0 0.0
    %2732 = vmatpush2.msra.mxu0 %v2646
    %2733 = vmatprep.subr.mxu0 0.0
    %2734 = vmatpush2.msra.mxu0 %v2645
    %2735 = vmatprep.mubr.f32.mxu0 %v2669
    %2736 = vmatmul.mubr.f32.gmra.mxu0 %v2628
    %v2737 = vpop.f32.mrf.mxu0
    %v2738 = vadd.f32 %v2666, %v2737
    %v2739 = vpop.f32.mrf.mxu0
    %2740 = vdwg.mxu0
    %vm2741 = vcmask 27648
    %2742 = vst.msk [vmem:[#allocation3] sm:$0xf] %vm2741, %v2738
    // Predicated region
    $region26: #{tpu_custom_call.1} parent=1 // pred_check
      _
    $region27: #{tpu_custom_call.1} parent=1 // pred_check_branch
      %2744 = sbr.rel (0) target = $region29
    $region28: #{tpu_custom_call.1} parent=1 // pred_region
      %s2746 = ssub.s32 64, 64
      %2747 = vsyncadd [#allocation4], %s2746
      %s2749 = sshll.u32 [#allocation3], 4
      %s2750 = int_to_ptr.vmem [resolvable:$true] %s2749
      %2752 = dma.vmem_to_hbm [thread:$0]  %s2750, 64, %s6, [#allocation4]
    $region29: #{tpu_custom_call.1} parent=1 // pred_fallthru
      _
    // Predicated region
    $region30: #{tpu_custom_call.1} parent=1 // pred_check
      _
    $region31: #{tpu_custom_call.1} parent=1 // pred_check_branch
      %2754 = sbr.rel (0) target = $region33
    $region32: #{tpu_custom_call.1} parent=1 // pred_region
      %2755 = dma.done [#allocation4], 64
    $region33: #{tpu_custom_call.1} parent=1 // pred_fallthru
      _
    %2756 = vsyncpa [#allocation4], 1

</llo_original>
